<compile_context>
chip_gen: v5e
topology: v5e:2x2
jax: 0.10.0
libtpu: 0.0.40
codegen_flags: <defaults>
</compile_context>

<pallas_src>
import numpy as np
import jax
import jax.numpy as jnp
from jax import lax
from jax.experimental import pallas as pl
from jax.experimental.pallas import tpu as pltpu


# ---------------------------------------------------------------------------
# Parameter init (deterministic, synthetic) + eval-mode BN folding
# ---------------------------------------------------------------------------
def init_cbr_params(key, cin, cout, ks):
    kw, kb, kg, kbe, km, kv = jax.random.split(key, 6)
    w = 0.05 * jax.random.normal(kw, (ks * ks, cin, cout), jnp.float32)
    conv_b = 0.05 * jax.random.normal(kb, (cout,), jnp.float32)
    gamma = 1.0 + 0.1 * jax.random.normal(kg, (cout,), jnp.float32)
    beta = 0.1 * jax.random.normal(kbe, (cout,), jnp.float32)
    rmean = 0.1 * jax.random.normal(km, (cout,), jnp.float32)
    rvar = jnp.abs(jax.random.normal(kv, (cout,), jnp.float32)) + 0.5
    eps = 1e-5
    scale = gamma / jnp.sqrt(rvar + eps)          # folded BN scale
    bias = (conv_b - rmean) * scale + beta        # folded conv-bias + BN shift
    return {"w": w, "scale": scale, "bias": bias}


def live_row_offsets(H, dilations):
    """Row offsets (ki-1)*d that can ever touch a valid input row."""
    offs = {0}
    for d in dilations:
        if d < H:                 # |offset| >= H never intersects the image
            offs.update((-d, d))
    return sorted(offs)


# ---------------------------------------------------------------------------
# Fully fused ASPP forward kernel
# ---------------------------------------------------------------------------
def make_fused_aspp(N, H, W, Cin, Cout, dilations=(6, 12, 18),
                    out_dtype=jnp.float32):
    drs = live_row_offsets(H, dilations)
    n_dr = len(drs)
    WC = W * Cin                  # lane-dense input row width   (256 here)
    C4 = 4 * Cout                 # packed per-pixel branch width (32 here)
    WC4 = W * C4                  # packed pre-activation width  (512 here)
    WCo = W * Cout                # lane-dense output row width  (128 here)

    def kernel(x_ref, a_ref, b_ref, sb14_ref, w1x1t_ref, sb5_ref,
               wout5t_ref, bt_ref, o_ref):
        x32 = x_ref[0]                                  # (H, W*Cin) f32
        xq = x32.astype(jnp.bfloat16)                   # quantized once

        # Branches 1..4: one matmul per live row offset.  Column offsets,
        # image-boundary zeros and statically dead taps are all folded into
        # the host-built block-structured A matrices; only the row shift
        # (a few-vreg sublane slice+concat) remains in the kernel.
        acc = None
        for t, dr in enumerate(drs):
            if dr == 0:
                xs = xq
            else:
                zpad = jnp.zeros((abs(dr), WC), jnp.float32)
                if dr > 0:        # xs[i] = x[i+dr] for i < H-dr, else 0
                    xs32 = jnp.concatenate([x32[dr:, :], zpad], axis=0)
                else:             # xs[i] = x[i+dr] for i >= -dr, else 0
                    xs32 = jnp.concatenate([zpad, x32[:H + dr, :]], axis=0)
                xs = xs32.astype(jnp.bfloat16)
            part = jnp.dot(xs, a_ref[t],
                           preferred_element_type=jnp.float32)   # (H, W*4C)
            acc = part if acc is None else acc + part

        # Folded BN affine + ReLU, packed per pixel as [j, branch, cout].
        feat = jnp.maximum(acc * sb14_ref[0:1, :] + sb14_ref[1:2, :], 0.0)

        # Global-average-pool branch: the spatial mean is folded into a
        # matmul with a j-tiled 1x1 weight followed by a row-sum (no
        # reshapes), then affine+ReLU and the pooled conv_out rows (tiled
        # over j so the broadcast over all pixels is a plain row add).
        t5 = jnp.dot(xq, w1x1t_ref[...],
                     preferred_element_type=jnp.float32)          # (H, C)
        t5 = jnp.sum(t5, axis=0, keepdims=True) * (1.0 / (H * W))  # (1, C)
        f5 = jnp.maximum(t5 * sb5_ref[0:1, :] + sb5_ref[1:2, :], 0.0)
        f5b = jnp.broadcast_to(f5.astype(jnp.bfloat16), (8, Cout))
        f5c = jnp.dot(f5b, wout5t_ref[...],
                      preferred_element_type=jnp.float32)         # (8, W*C)

        # Final 1x1 conv_out (BN scale pre-folded into B / wout5t).
        out = jnp.dot(feat.astype(jnp.bfloat16), b_ref[...],
                      preferred_element_type=jnp.float32)         # (H, W*C)
        out = out + f5c[0:1, :] + bt_ref[...]
        o_ref[0] = jnp.maximum(out, 0.0).astype(o_ref.dtype)      # unmasked vst

    def full2d(r, c):
        return pl.BlockSpec((r, c), lambda n: (0, 0))

    fused = pl.pallas_call(
        kernel,
        out_shape=jax.ShapeDtypeStruct((N, H, WCo), out_dtype),
        grid=(N,),
        in_specs=[
            pl.BlockSpec((1, H, WC), lambda n: (n, 0, 0)),   # x, lane-dense rows
            pl.BlockSpec((n_dr, WC, WC4), lambda n: (0, 0, 0)),  # folded branch W
            full2d(WC4, WCo),      # conv_out rows, branches 1..4 (block-diag)
            full2d(2, WC4),        # packed BN scale / bias, branches 1..4
            full2d(WC, Cout),      # pooled-branch 1x1 weight, j-tiled
            full2d(2, Cout),       # pooled-branch BN scale / bias
            full2d(Cout, WCo),     # conv_out rows, pooled branch, j-tiled
            full2d(1, WCo),        # conv_out folded bias, j-tiled
        ],
        out_specs=pl.BlockSpec((1, H, WCo), lambda n: (n, 0, 0)),
        compiler_params=pltpu.CompilerParams(
            # batch axis is independent -> megacore sharding
            dimension_semantics=("parallel",),
            # well below v7x's 64 MiB physical VMEM; actual usage is ~3 MiB
            vmem_limit_bytes=32 * 1024 * 1024),
    )

    def fn(x, *packed):
        # contiguous (free) reshape to lane-dense rows; NO host-side padding
        out = fused(x.reshape(N, H, WC), *packed)
        return out.reshape(N, H, W, Cout)

    return jax.jit(fn)


# ---------------------------------------------------------------------------
# ASPP module (with_gp=True): parameters + weight packing for the fused kernel
# ---------------------------------------------------------------------------
class ASPPPallas:
    DILATIONS = (6, 12, 18)

    def __init__(self, N, H, W, in_chan, out_chan, key):
        self.N, self.H, self.W = N, H, W
        self.in_chan, self.out_chan = in_chan, out_chan
        keys = jax.random.split(key, 6)
        self.params = {
            "conv1":    init_cbr_params(keys[0], in_chan, out_chan, 1),
            "conv2":    init_cbr_params(keys[1], in_chan, out_chan, 3),
            "conv3":    init_cbr_params(keys[2], in_chan, out_chan, 3),
            "conv4":    init_cbr_params(keys[3], in_chan, out_chan, 3),
            "conv1x1":  init_cbr_params(keys[4], in_chan, out_chan, 1),
            "conv_out": init_cbr_params(keys[5], out_chan * 5, out_chan, 1),
        }
        self._packed = self._pack_params()
        self._fwd = make_fused_aspp(N, H, W, in_chan, out_chan, self.DILATIONS)

    def _pack_params(self):
        p = self.params
        H, W, Cin, C = self.H, self.W, self.in_chan, self.out_chan
        C4, WC, WC4, WCo = 4 * C, W * Cin, W * 4 * C, W * C
        drs = live_row_offsets(H, self.DILATIONS)
        branch_defs = [("conv1", 1, 1),
                       ("conv2", 3, self.DILATIONS[0]),
                       ("conv3", 3, self.DILATIONS[1]),
                       ("conv4", 3, self.DILATIONS[2])]

        # A[t]: maps an x row shifted by drs[t] (lanes [j, cin]) to the packed
        # pre-activation row (lanes [j, branch, cout]).  Column (kj) offsets
        # and image-boundary zeros are baked in; taps that never see a valid
        # pixel (e.g. all off-center d=18 taps at 16x16) are simply absent.
        A = np.zeros((len(drs), WC, WC4), np.float32)
        for t, dr in enumerate(drs):
            for b, (name, ks, d) in enumerate(branch_defs):
                w = np.asarray(p[name]["w"])          # (ks*ks, Cin, C)
                half = ks // 2
                for ki in range(ks):
                    if (ki - half) * d != dr:
                        continue
                    for kj in range(ks):
                        coff = (kj - half) * d
                        tapw = w[ki * ks + kj]        # (Cin, C)
                        for j in range(W):
                            jin = j + coff
                            if 0 <= jin < W:
                                A[t, jin * Cin:(jin + 1) * Cin,
                                  j * C4 + b * C:j * C4 + (b + 1) * C] += tapw

        names = ("conv1", "conv2", "conv3", "conv4")
        scale14 = np.concatenate([np.asarray(p[n]["scale"]) for n in names])
        bias14 = np.concatenate([np.asarray(p[n]["bias"]) for n in names])
        sb14_t = np.stack([np.tile(scale14, W), np.tile(bias14, W)])  # (2, W*4C)

        # conv_out: fold its BN scale into the weights; block-diagonal rows for
        # branches 1..4, j-tiled rows for the pooled branch, j-tiled bias.
        wout = (np.asarray(p["conv_out"]["w"][0]) *
                np.asarray(p["conv_out"]["scale"])[None, :])           # (5C, C)
        B = np.zeros((WC4, WCo), np.float32)
        for j in range(W):
            B[j * C4:(j + 1) * C4, j * C:(j + 1) * C] = wout[:4 * C]
        wout5t = np.tile(wout[4 * C:], (1, W))                          # (C, W*C)
        bias_t = np.tile(np.asarray(p["conv_out"]["bias"]), W)[None, :]  # (1,W*C)

        # Pooled-branch 1x1 weight, j-tiled so mean == (x @ w) then row-sum.
        w1x1t = np.tile(np.asarray(p["conv1x1"]["w"][0]), (W, 1))       # (W*Cin,C)
        sb5 = np.stack([np.asarray(p["conv1x1"]["scale"]),
                        np.asarray(p["conv1x1"]["bias"])])              # (2, C)

        bf16 = jnp.bfloat16
        return (jnp.asarray(A, bf16), jnp.asarray(B, bf16),
                jnp.asarray(sb14_t, jnp.float32), jnp.asarray(w1x1t, bf16),
                jnp.asarray(sb5, jnp.float32), jnp.asarray(wout5t, bf16),
                jnp.asarray(bias_t, jnp.float32))

    def __call__(self, x):                         # x: (N, H, W, Cin) float32
        return self._fwd(x, *self._packed)


# ---------------------------------------------------------------------------
# Pure-JAX reference (lax convolutions) for validation.
# quantize=True mirrors the kernel's bf16 quantization points (x, conv
# weights, feat14, f5), so the comparison tolerance can stay tight.
# ---------------------------------------------------------------------------
def _q(a):
    return a.astype(jnp.bfloat16).astype(jnp.float32)


def _conv_ref(x, w, ks, dilation, padding):
    cin, cout = x.shape[-1], w.shape[-1]
    return lax.conv_general_dilated(
        x, w.reshape(ks, ks, cin, cout), (1, 1),
        [(padding, padding), (padding, padding)],
        rhs_dilation=(dilation, dilation),
        dimension_numbers=("NHWC", "HWIO", "NHWC"),
        precision=lax.Precision.HIGHEST)


def aspp_ref(x, params, dilations=(6, 12, 18), quantize=False):
    q = _q if quantize else (lambda a: a)
    xq = q(x)
    feats = []
    branches = [("conv1", 1, 1, 0)] + [
        ("conv%d" % (i + 2), 3, d, d) for i, d in enumerate(dilations)]
    for name, ks, dil, pad in branches:
        p = params[name]
        y = _conv_ref(xq, q(p["w"]), ks, dil, pad)
        feats.append(jnp.maximum(y * p["scale"] + p["bias"], 0.0))
    feat14 = q(jnp.concatenate(feats, axis=-1))             # (N,H,W,4C)

    p5 = params["conv1x1"]
    # f32 spatial mean (the kernel folds the mean into a matmul + row-sum and
    # never materializes/rounds the pooled vector, so neither does this path).
    pool = jnp.mean(xq, axis=(1, 2), keepdims=True)          # (N,1,1,Cin)
    f5 = jnp.maximum(
        jnp.einsum("nhwc,cd->nhwd", pool, q(p5["w"][0]),
                   precision=lax.Precision.HIGHEST) * p5["scale"] + p5["bias"],
        0.0)
    f5 = q(f5)                                               # (N,1,1,C)

    po = params["conv_out"]
    C = po["w"].shape[-1]
    wout = po["w"][0] * po["scale"][None, :]                 # fold BN scale
    out = (jnp.einsum("nhwc,cd->nhwd", feat14, q(wout[:4 * C]),
                      precision=lax.Precision.HIGHEST)
           + jnp.einsum("nhwc,cd->nhwd", f5, q(wout[4 * C:]),
                        precision=lax.Precision.HIGHEST)
           + po["bias"])
    return jnp.maximum(out, 0.0)


# ---------------------------------------------------------------------------
if __name__ == "__main__":
    # Small shapes consistent with ASPP(in_chan, out_chan) on a feature map.
    N, H, W = 2, 16, 16
    IN_CHAN, OUT_CHAN = 16, 8

    key = jax.random.PRNGKey(0)
    k_x, k_p = jax.random.split(key)
    # NHWC input (the PyTorch module takes NCHW; same data, different layout).
    x = jax.random.normal(k_x, (N, H, W, IN_CHAN), jnp.float32)

    aspp = ASPPPallas(N, H, W, IN_CHAN, OUT_CHAN, k_p)
    out = jax.block_until_ready(aspp(x))
    assert out.shape == (N, H, W, OUT_CHAN), out.shape

    # Tight check vs. a reference that mirrors the kernel's bf16 quantization
    # points (remaining differences are accumulation order / rounding ties).
    ref_q = jax.block_until_ready(aspp_ref(x, aspp.params, quantize=True))
    err_q = float(jnp.max(jnp.abs(out - ref_q)))
    assert err_q < 5e-3, f"mismatch vs bf16-matched reference: {err_q}"

    # Looser sanity check vs. the pure-f32 model (bf16 activations/weights
    # introduce a small, documented quantization error).
    ref_f = jax.block_until_ready(aspp_ref(x, aspp.params, quantize=False))
    err_f = float(jnp.max(jnp.abs(out - ref_f)))
    assert err_f < 8e-2, f"mismatch vs f32 reference: {err_f}"

    print("KERNEL_OK")
</pallas_src>

<mosaic_0001>
module attributes {stable_mosaic.version = 11 : i64} {
  func.func @kernel(%arg0: i32, %arg1: memref<1x16x256xf32, #tpu.memory_space<vmem>>, %arg2: memref<5x256x512xbf16, #tpu.memory_space<vmem>>, %arg3: memref<512x128xbf16, #tpu.memory_space<vmem>>, %arg4: memref<2x512xf32, #tpu.memory_space<vmem>>, %arg5: memref<256x8xbf16, #tpu.memory_space<vmem>>, %arg6: memref<2x8xf32, #tpu.memory_space<vmem>>, %arg7: memref<8x128xbf16, #tpu.memory_space<vmem>>, %arg8: memref<1x128xf32, #tpu.memory_space<vmem>>, %arg9: memref<1x16x128xf32, #tpu.memory_space<vmem>>) attributes {dimension_semantics = [#tpu.dimension_semantics<parallel>], iteration_bounds = array<i64: 2>, scalar_prefetch = 0 : i64, scratch_operands = 0 : i64, tpu.core_type = #tpu.core_type<tc>, window_params = [{transform_indices = @transform_0, window_bounds = array<i64: 1, 16, 256>}, {pipeline_mode = #tpu.pipeline_mode<synchronous>, transform_indices = @transform_1, window_bounds = array<i64: 5, 256, 512>}, {pipeline_mode = #tpu.pipeline_mode<synchronous>, transform_indices = @transform_2, window_bounds = array<i64: 512, 128>}, {pipeline_mode = #tpu.pipeline_mode<synchronous>, transform_indices = @transform_3, window_bounds = array<i64: 2, 512>}, {pipeline_mode = #tpu.pipeline_mode<synchronous>, transform_indices = @transform_4, window_bounds = array<i64: 256, 8>}, {pipeline_mode = #tpu.pipeline_mode<synchronous>, transform_indices = @transform_5, window_bounds = array<i64: 2, 8>}, {pipeline_mode = #tpu.pipeline_mode<synchronous>, transform_indices = @transform_6, window_bounds = array<i64: 8, 128>}, {pipeline_mode = #tpu.pipeline_mode<synchronous>, transform_indices = @transform_7, window_bounds = array<i64: 1, 128>}, {transform_indices = @transform_8, window_bounds = array<i64: 1, 16, 128>}]} {
    %c0 = arith.constant 0 : index
    %c0_0 = arith.constant 0 : index
    %c0_1 = arith.constant 0 : index
    %0 = vector.load %arg1[%c0, %c0_0, %c0_1] : memref<1x16x256xf32, #tpu.memory_space<vmem>>, vector<1x16x256xf32>
    %1 = vector.shape_cast %0 : vector<1x16x256xf32> to vector<16x256xf32>
    %2 = arith.truncf %1 : vector<16x256xf32> to vector<16x256xbf16>
    %cst = arith.constant 0.000000e+00 : f32
    %3 = vector.broadcast %cst : f32 to vector<12x256xf32>
    %4 = vector.extract_strided_slice %1 {offsets = [0, 0], sizes = [4, 256], strides = [1, 1]} : vector<16x256xf32> to vector<4x256xf32>
    %5 = tpu.concatenate %3, %4 in 0 : vector<12x256xf32>, vector<4x256xf32> -> vector<16x256xf32>
    %6 = arith.truncf %5 : vector<16x256xf32> to vector<16x256xbf16>
    %c0_2 = arith.constant 0 : index
    %c0_3 = arith.constant 0 : index
    %c0_4 = arith.constant 0 : index
    %7 = vector.load %arg2[%c0_2, %c0_3, %c0_4] : memref<5x256x512xbf16, #tpu.memory_space<vmem>>, vector<1x256x512xbf16>
    %8 = vector.shape_cast %7 : vector<1x256x512xbf16> to vector<256x512xbf16>
    %cst_5 = arith.constant dense<0.000000e+00> : vector<16x512xf32>
    %9 = tpu.matmul %6, %8, %cst_5 {dimension_numbers = #tpu.dot_dimension_numbers<[1], [0], [0], [1], [0, 0, 1, 1], [], []>} : vector<16x256xbf16>, vector<256x512xbf16>, vector<16x512xf32> -> vector<16x512xf32>
    %cst_6 = arith.constant 0.000000e+00 : f32
    %10 = vector.broadcast %cst_6 : f32 to vector<6x256xf32>
    %11 = vector.extract_strided_slice %1 {offsets = [0, 0], sizes = [10, 256], strides = [1, 1]} : vector<16x256xf32> to vector<10x256xf32>
    %12 = tpu.concatenate %10, %11 in 0 : vector<6x256xf32>, vector<10x256xf32> -> vector<16x256xf32>
    %13 = arith.truncf %12 : vector<16x256xf32> to vector<16x256xbf16>
    %c1 = arith.constant 1 : index
    %c0_7 = arith.constant 0 : index
    %c0_8 = arith.constant 0 : index
    %14 = vector.load %arg2[%c1, %c0_7, %c0_8] : memref<5x256x512xbf16, #tpu.memory_space<vmem>>, vector<1x256x512xbf16>
    %15 = vector.shape_cast %14 : vector<1x256x512xbf16> to vector<256x512xbf16>
    %cst_9 = arith.constant dense<0.000000e+00> : vector<16x512xf32>
    %16 = tpu.matmul %13, %15, %cst_9 {dimension_numbers = #tpu.dot_dimension_numbers<[1], [0], [0], [1], [0, 0, 1, 1], [], []>} : vector<16x256xbf16>, vector<256x512xbf16>, vector<16x512xf32> -> vector<16x512xf32>
    %17 = arith.addf %9, %16 : vector<16x512xf32>
    %c2 = arith.constant 2 : index
    %c0_10 = arith.constant 0 : index
    %c0_11 = arith.constant 0 : index
    %18 = vector.load %arg2[%c2, %c0_10, %c0_11] : memref<5x256x512xbf16, #tpu.memory_space<vmem>>, vector<1x256x512xbf16>
    %19 = vector.shape_cast %18 : vector<1x256x512xbf16> to vector<256x512xbf16>
    %cst_12 = arith.constant dense<0.000000e+00> : vector<16x512xf32>
    %20 = tpu.matmul %2, %19, %cst_12 {dimension_numbers = #tpu.dot_dimension_numbers<[1], [0], [0], [1], [0, 0, 1, 1], [], []>} : vector<16x256xbf16>, vector<256x512xbf16>, vector<16x512xf32> -> vector<16x512xf32>
    %21 = arith.addf %17, %20 : vector<16x512xf32>
    %cst_13 = arith.constant 0.000000e+00 : f32
    %22 = vector.broadcast %cst_13 : f32 to vector<6x256xf32>
    %23 = vector.extract_strided_slice %1 {offsets = [6, 0], sizes = [10, 256], strides = [1, 1]} : vector<16x256xf32> to vector<10x256xf32>
    %24 = tpu.concatenate %23, %22 in 0 : vector<10x256xf32>, vector<6x256xf32> -> vector<16x256xf32>
    %25 = arith.truncf %24 : vector<16x256xf32> to vector<16x256xbf16>
    %c3 = arith.constant 3 : index
    %c0_14 = arith.constant 0 : index
    %c0_15 = arith.constant 0 : index
    %26 = vector.load %arg2[%c3, %c0_14, %c0_15] : memref<5x256x512xbf16, #tpu.memory_space<vmem>>, vector<1x256x512xbf16>
    %27 = vector.shape_cast %26 : vector<1x256x512xbf16> to vector<256x512xbf16>
    %cst_16 = arith.constant dense<0.000000e+00> : vector<16x512xf32>
    %28 = tpu.matmul %25, %27, %cst_16 {dimension_numbers = #tpu.dot_dimension_numbers<[1], [0], [0], [1], [0, 0, 1, 1], [], []>} : vector<16x256xbf16>, vector<256x512xbf16>, vector<16x512xf32> -> vector<16x512xf32>
    %29 = arith.addf %21, %28 : vector<16x512xf32>
    %cst_17 = arith.constant 0.000000e+00 : f32
    %30 = vector.broadcast %cst_17 : f32 to vector<12x256xf32>
    %31 = vector.extract_strided_slice %1 {offsets = [12, 0], sizes = [4, 256], strides = [1, 1]} : vector<16x256xf32> to vector<4x256xf32>
    %32 = tpu.concatenate %31, %30 in 0 : vector<4x256xf32>, vector<12x256xf32> -> vector<16x256xf32>
    %33 = arith.truncf %32 : vector<16x256xf32> to vector<16x256xbf16>
    %c4 = arith.constant 4 : index
    %c0_18 = arith.constant 0 : index
    %c0_19 = arith.constant 0 : index
    %34 = vector.load %arg2[%c4, %c0_18, %c0_19] : memref<5x256x512xbf16, #tpu.memory_space<vmem>>, vector<1x256x512xbf16>
    %35 = vector.shape_cast %34 : vector<1x256x512xbf16> to vector<256x512xbf16>
    %cst_20 = arith.constant dense<0.000000e+00> : vector<16x512xf32>
    %36 = tpu.matmul %33, %35, %cst_20 {dimension_numbers = #tpu.dot_dimension_numbers<[1], [0], [0], [1], [0, 0, 1, 1], [], []>} : vector<16x256xbf16>, vector<256x512xbf16>, vector<16x512xf32> -> vector<16x512xf32>
    %37 = arith.addf %29, %36 : vector<16x512xf32>
    %c0_21 = arith.constant 0 : index
    %c0_22 = arith.constant 0 : index
    %38 = vector.load %arg4[%c0_21, %c0_22] : memref<2x512xf32, #tpu.memory_space<vmem>>, vector<1x512xf32>
    %39 = vector.broadcast %38 : vector<1x512xf32> to vector<16x512xf32>
    %40 = arith.mulf %37, %39 : vector<16x512xf32>
    %c1_23 = arith.constant 1 : index
    %c0_24 = arith.constant 0 : index
    %41 = vector.load %arg4[%c1_23, %c0_24] : memref<2x512xf32, #tpu.memory_space<vmem>>, vector<1x512xf32>
    %42 = vector.broadcast %41 : vector<1x512xf32> to vector<16x512xf32>
    %43 = arith.addf %40, %42 : vector<16x512xf32>
    %cst_25 = arith.constant 0.000000e+00 : f32
    %44 = vector.broadcast %cst_25 : f32 to vector<16x512xf32>
    %45 = arith.maximumf %43, %44 : vector<16x512xf32>
    %c0_26 = arith.constant 0 : index
    %c0_27 = arith.constant 0 : index
    %46 = vector.load %arg5[%c0_26, %c0_27] : memref<256x8xbf16, #tpu.memory_space<vmem>>, vector<256x8xbf16>
    %cst_28 = arith.constant dense<0.000000e+00> : vector<16x8xf32>
    %47 = tpu.matmul %2, %46, %cst_28 {dimension_numbers = #tpu.dot_dimension_numbers<[1], [0], [0], [1], [0, 0, 1, 1], [], []>} : vector<16x256xbf16>, vector<256x8xbf16>, vector<16x8xf32> -> vector<16x8xf32>
    %cst_29 = arith.constant dense<0.000000e+00> : vector<8xf32>
    %48 = vector.multi_reduction <add>, %47, %cst_29 [0] : vector<16x8xf32> to vector<8xf32>
    %49 = vector.shape_cast %48 : vector<8xf32> to vector<1x8xf32>
    %cst_30 = arith.constant 3.906250e-03 : f32
    %50 = vector.broadcast %cst_30 : f32 to vector<1x8xf32>
    %51 = arith.mulf %49, %50 : vector<1x8xf32>
    %c0_31 = arith.constant 0 : index
    %c0_32 = arith.constant 0 : index
    %52 = vector.load %arg6[%c0_31, %c0_32] : memref<2x8xf32, #tpu.memory_space<vmem>>, vector<1x8xf32>
    %53 = arith.mulf %51, %52 : vector<1x8xf32>
    %c1_33 = arith.constant 1 : index
    %c0_34 = arith.constant 0 : index
    %54 = vector.load %arg6[%c1_33, %c0_34] : memref<2x8xf32, #tpu.memory_space<vmem>>, vector<1x8xf32>
    %55 = arith.addf %53, %54 : vector<1x8xf32>
    %cst_35 = arith.constant 0.000000e+00 : f32
    %56 = vector.broadcast %cst_35 : f32 to vector<1x8xf32>
    %57 = arith.maximumf %55, %56 : vector<1x8xf32>
    %58 = arith.truncf %57 : vector<1x8xf32> to vector<1x8xbf16>
    %59 = vector.shape_cast %58 : vector<1x8xbf16> to vector<1x8xbf16>
    %60 = vector.broadcast %59 : vector<1x8xbf16> to vector<8x8xbf16>
    %c0_36 = arith.constant 0 : index
    %c0_37 = arith.constant 0 : index
    %61 = vector.load %arg7[%c0_36, %c0_37] : memref<8x128xbf16, #tpu.memory_space<vmem>>, vector<8x128xbf16>
    %cst_38 = arith.constant dense<0.000000e+00> : vector<8x128xf32>
    %62 = tpu.matmul %60, %61, %cst_38 {dimension_numbers = #tpu.dot_dimension_numbers<[1], [0], [0], [1], [0, 0, 1, 1], [], []>} : vector<8x8xbf16>, vector<8x128xbf16>, vector<8x128xf32> -> vector<8x128xf32>
    %63 = arith.truncf %45 : vector<16x512xf32> to vector<16x512xbf16>
    %c0_39 = arith.constant 0 : index
    %c0_40 = arith.constant 0 : index
    %64 = vector.load %arg3[%c0_39, %c0_40] : memref<512x128xbf16, #tpu.memory_space<vmem>>, vector<512x128xbf16>
    %cst_41 = arith.constant dense<0.000000e+00> : vector<16x128xf32>
    %65 = tpu.matmul %63, %64, %cst_41 {dimension_numbers = #tpu.dot_dimension_numbers<[1], [0], [0], [1], [0, 0, 1, 1], [], []>} : vector<16x512xbf16>, vector<512x128xbf16>, vector<16x128xf32> -> vector<16x128xf32>
    %66 = vector.extract_strided_slice %62 {offsets = [0, 0], sizes = [1, 128], strides = [1, 1]} : vector<8x128xf32> to vector<1x128xf32>
    %67 = vector.broadcast %66 : vector<1x128xf32> to vector<16x128xf32>
    %68 = arith.addf %65, %67 : vector<16x128xf32>
    %c0_42 = arith.constant 0 : index
    %c0_43 = arith.constant 0 : index
    %69 = vector.load %arg8[%c0_42, %c0_43] : memref<1x128xf32, #tpu.memory_space<vmem>>, vector<1x128xf32>
    %70 = vector.broadcast %69 : vector<1x128xf32> to vector<16x128xf32>
    %71 = arith.addf %68, %70 : vector<16x128xf32>
    %cst_44 = arith.constant 0.000000e+00 : f32
    %72 = vector.broadcast %cst_44 : f32 to vector<16x128xf32>
    %73 = arith.maximumf %71, %72 : vector<16x128xf32>
    %c0_45 = arith.constant 0 : index
    %c0_46 = arith.constant 0 : index
    %c0_47 = arith.constant 0 : index
    %74 = vector.load %arg9[%c0_45, %c0_46, %c0_47] : memref<1x16x128xf32, #tpu.memory_space<vmem>>, vector<1x16x128xf32>
    %75 = vector.shape_cast %74 : vector<1x16x128xf32> to vector<16x128xf32>
    %76 = vector.shape_cast %73 : vector<16x128xf32> to vector<1x16x128xf32>
    tpu.vector_store %arg9[%c0_45, %c0_46, %c0_47], %76 {strides = array<i32>} : memref<1x16x128xf32, #tpu.memory_space<vmem>>, vector<1x16x128xf32>,
    return
  }
  func.func @transform_0(%arg0: i32) -> (i32, i32, i32) {
    %c0_i32 = arith.constant 0 : i32
    %c0_i32_0 = arith.constant 0 : i32
    %c0_i32_1 = arith.constant 0 : i32
    return %arg0, %c0_i32, %c0_i32_0 : i32, i32, i32
  }
  func.func @transform_1(%arg0: i32) -> (i32, i32, i32) {
    %c0_i32 = arith.constant 0 : i32
    %c0_i32_0 = arith.constant 0 : i32
    %c0_i32_1 = arith.constant 0 : i32
    %c0_i32_2 = arith.constant 0 : i32
    return %c0_i32, %c0_i32_0, %c0_i32_1 : i32, i32, i32
  }
  func.func @transform_2(%arg0: i32) -> (i32, i32) {
    %c0_i32 = arith.constant 0 : i32
    %c0_i32_0 = arith.constant 0 : i32
    %c0_i32_1 = arith.constant 0 : i32
    return %c0_i32, %c0_i32_0 : i32, i32
  }
  func.func @transform_3(%arg0: i32) -> (i32, i32) {
    %c0_i32 = arith.constant 0 : i32
    %c0_i32_0 = arith.constant 0 : i32
    %c0_i32_1 = arith.constant 0 : i32
    return %c0_i32, %c0_i32_0 : i32, i32
  }
  func.func @transform_4(%arg0: i32) -> (i32, i32) {
    %c0_i32 = arith.constant 0 : i32
    %c0_i32_0 = arith.constant 0 : i32
    %c0_i32_1 = arith.constant 0 : i32
    return %c0_i32, %c0_i32_0 : i32, i32
  }
  func.func @transform_5(%arg0: i32) -> (i32, i32) {
    %c0_i32 = arith.constant 0 : i32
    %c0_i32_0 = arith.constant 0 : i32
    %c0_i32_1 = arith.constant 0 : i32
    return %c0_i32, %c0_i32_0 : i32, i32
  }
  func.func @transform_6(%arg0: i32) -> (i32, i32) {
    %c0_i32 = arith.constant 0 : i32
    %c0_i32_0 = arith.constant 0 : i32
    %c0_i32_1 = arith.constant 0 : i32
    return %c0_i32, %c0_i32_0 : i32, i32
  }
  func.func @transform_7(%arg0: i32) -> (i32, i32) {
    %c0_i32 = arith.constant 0 : i32
    %c0_i32_0 = arith.constant 0 : i32
    %c0_i32_1 = arith.constant 0 : i32
    return %c0_i32, %c0_i32_0 : i32, i32
  }
  func.func @transform_8(%arg0: i32) -> (i32, i32, i32) {
    %c0_i32 = arith.constant 0 : i32
    %c0_i32_0 = arith.constant 0 : i32
    %c0_i32_1 = arith.constant 0 : i32
    return %arg0, %c0_i32, %c0_i32_0 : i32, i32, i32
  }
}

</mosaic_0001>

<llo_original>
// kernel: fn.1
$region0: #{fn.1}
  #allocation0 [shape = 'u32[]', space=smem, size = 0x4, offset = 0x4, fixed_abs, tag = 'smem constant byte address 0x4 - core index']
  #allocation1 [shape = 'u32[72,128]{1,0:T(1,128)}', space=vmem, size = 0x9000, scoped, tag = 'internal scratch']
  %s0 = inlined_call_operand.vmem [shape: f32[2,16,256], index: 0, kind: input, shape index: {}]
  %s1 = inlined_call_operand.hbm [shape: bf16[5,256,512], index: 1, kind: input, shape index: {}]
  %s2 = inlined_call_operand.hbm [shape: bf16[512,128], index: 2, kind: input, shape index: {}]
  %s3 = inlined_call_operand.hbm [shape: f32[2,512], index: 3, kind: input, shape index: {}]
  %s4 = inlined_call_operand.vmem [shape: bf16[256,8], index: 4, kind: input, shape index: {}]
  %s5 = inlined_call_operand.hbm [shape: f32[2,8], index: 5, kind: input, shape index: {}]
  %s6 = inlined_call_operand.hbm [shape: bf16[8,128], index: 6, kind: input, shape index: {}]
  %s7 = inlined_call_operand.hbm [shape: f32[1,128], index: 7, kind: input, shape index: {}]
  %s8 = inlined_call_operand.vmem [shape: f32[2,16,128], index: 8, kind: output, shape index: {}]
  %s9 = sld [smem:[#allocation0]]
  $region89: #{fn.1} parent=0
    _
  %s11 = ssub.s32 1, %s9
  %s12 = scalar_select 0, %s11, %s9
  $region1: #{fn.1} parent=0
    #allocation2 [shape = 'u8[1310720]{0}', space=vmem, size = 0x140000, scoped, tag = 'input window, operand 1, single buffered']
    #allocation3 [shape = 's32[2]{0}', space=sflag, size = 0x8, scoped, tag = 'scoped memory for fn.1']
    #allocation4 [shape = 'u8[131072]{0}', space=vmem, size = 0x20000, scoped, tag = 'input window, operand 2, single buffered']
    #allocation5 [shape = 's32[1]{0}', space=sflag, size = 0x4, scoped, tag = 'scoped memory for fn.1']
    #allocation6 [shape = 'u8[4096]{0}', space=vmem, size = 0x1000, scoped, tag = 'input window, operand 3, single buffered']
    #allocation7 [shape = 'u8[1024]{0}', space=vmem, size = 0x400, scoped, tag = 'input window, operand 5, single buffered']
    #allocation8 [shape = 's32[1]{0}', space=sflag, size = 0x4, scoped, tag = 'scoped memory for fn.1']
    #allocation9 [shape = 'u8[2048]{0}', space=vmem, size = 0x800, scoped, tag = 'input window, operand 6, single buffered']
    #allocation10 [shape = 'u8[512]{0}', space=vmem, size = 0x400, scoped, tag = 'input window, operand 7, single buffered']
    #allocation11 [shape = 's32[1]{0}', space=sflag, size = 0x4, scoped, tag = 'scoped memory for fn.1']
    %13 = vsyncpa [#allocation3], 0
    %14 = vsyncpa [#allocation5], 0
    %15 = vsyncpa [#allocation8], 0
    %16 = vsyncpa [#allocation11], 0
    loop: start=0, step=1, limit=4
    $region2: #{fn.1} parent=1 // loop_pre_header
      _
    $region3: #{fn.1} parent=1 // loop_header
      %s18 = sphi 0, %s22
      %p19 = scmp.ge.s32.totalorder %s18, 4
      %s28 = sphi 0, %s30
      %s31 = sphi 0, %s28
      %s32 = sphi 0, %s31
      %s48 = sphi 0, %s32
      %s52 = sphi 0, %s52
      %s54 = sphi 0, %s52
      %s55 = sphi 0, %s54
      %s69 = sphi 0, %s55
      %s73 = sphi 0, %s73
      %s75 = sphi 0, %s73
      %s76 = sphi 0, %s75
      %s90 = sphi 0, %s76
      %s94 = sphi 0, %s94
      %s96 = sphi 0, %s94
      %s97 = sphi 0, %s96
      %s111 = sphi 0, %s97
      %s115 = sphi 0, %s115
      %s117 = sphi 0, %s115
      %s118 = sphi 0, %s117
      %s132 = sphi 0, %s118
      %s136 = sphi 0, %s136
      %s138 = sphi 0, %s136
      %s139 = sphi 0, %s138
      %s153 = sphi 0, %s139
      %s157 = sphi 0, %s157
      %s159 = sphi 0, %s157
      %s160 = sphi 0, %s159
      %s174 = sphi 0, %s160
      %s178 = sphi 0, %s178
      %s180 = sphi 0, %s178
      %s181 = sphi 0, %s180
      %s195 = sphi 0, %s181
      %s201 = sphi 0, %s203
      %s204 = sphi 0, %s201
      %s205 = sphi 0, %s204
      %s221 = sphi 0, %s205
    $region4: #{fn.1} parent=1 // loop_header_branch
      %21 = sbr.rel (%p19) target = $region8
    $region5: #{fn.1} parent=1 // loop_body
      %s23 = ssub.s32 %s18, 1
      %s24 = ssub.s32 %s18, 2
      %s25 = sadd.s32 %s18, 1
      %s26 = ssub.s32 %s18, %s25
      %p27 = scmp.eq.s32.totalorder %s26, 0
      %s29 = sadd.s32 %s28, 1
      %s30 = scalar_select %p27, %s28, %s29
      %p33 = pneg %p27
      %p34 = scmp.eq.s32.totalorder %s18, 1
      %p35 = por %p33, %p34
      %p36 = scmp.ne.s32.totalorder %s28, %s31
      %p37 = scmp.eq.s32.totalorder %s18, 0
      %p38 = por %p36, %p37
      %p39 = scmp.ne.s32.totalorder %s28, %s31
      %p40 = scmp.eq.s32.totalorder %s23, 1
      %p41 = por %p39, %p40
      %p42 = scmp.ne.s32.totalorder %s31, %s32
      %p43 = scmp.eq.s32.totalorder %s23, 0
      %p44 = por %p42, %p43
      %p45 = scmp.ne.s32.totalorder %s31, %s32
      %p46 = scmp.eq.s32.totalorder %s24, 1
      %p47 = por %p45, %p46
      %p49 = scmp.ne.s32.totalorder %s32, %s48
      %p50 = scmp.eq.s32.totalorder %s24, 0
      %p51 = por %p49, %p50
      %s53 = sadd.s32 %s52, 1
      %p56 = scmp.eq.s32.totalorder %s18, 1
      %p57 = scmp.ne.s32.totalorder %s52, %s54
      %p58 = scmp.eq.s32.totalorder %s18, 0
      %p59 = por %p57, %p58
      %p60 = scmp.ne.s32.totalorder %s52, %s54
      %p61 = scmp.eq.s32.totalorder %s23, 1
      %p62 = por %p60, %p61
      %p63 = scmp.ne.s32.totalorder %s54, %s55
      %p64 = scmp.eq.s32.totalorder %s23, 0
      %p65 = por %p63, %p64
      %p66 = scmp.ne.s32.totalorder %s54, %s55
      %p67 = scmp.eq.s32.totalorder %s24, 1
      %p68 = por %p66, %p67
      %p70 = scmp.ne.s32.totalorder %s55, %s69
      %p71 = scmp.eq.s32.totalorder %s24, 0
      %p72 = por %p70, %p71
      %s74 = sadd.s32 %s73, 1
      %p77 = scmp.eq.s32.totalorder %s18, 1
      %p78 = scmp.ne.s32.totalorder %s73, %s75
      %p79 = scmp.eq.s32.totalorder %s18, 0
      %p80 = por %p78, %p79
      %p81 = scmp.ne.s32.totalorder %s73, %s75
      %p82 = scmp.eq.s32.totalorder %s23, 1
      %p83 = por %p81, %p82
      %p84 = scmp.ne.s32.totalorder %s75, %s76
      %p85 = scmp.eq.s32.totalorder %s23, 0
      %p86 = por %p84, %p85
      %p87 = scmp.ne.s32.totalorder %s75, %s76
      %p88 = scmp.eq.s32.totalorder %s24, 1
      %p89 = por %p87, %p88
      %p91 = scmp.ne.s32.totalorder %s76, %s90
      %p92 = scmp.eq.s32.totalorder %s24, 0
      %p93 = por %p91, %p92
      %s95 = sadd.s32 %s94, 1
      %p98 = scmp.eq.s32.totalorder %s18, 1
      %p99 = scmp.ne.s32.totalorder %s94, %s96
      %p100 = scmp.eq.s32.totalorder %s18, 0
      %p101 = por %p99, %p100
      %p102 = scmp.ne.s32.totalorder %s94, %s96
      %p103 = scmp.eq.s32.totalorder %s23, 1
      %p104 = por %p102, %p103
      %p105 = scmp.ne.s32.totalorder %s96, %s97
      %p106 = scmp.eq.s32.totalorder %s23, 0
      %p107 = por %p105, %p106
      %p108 = scmp.ne.s32.totalorder %s96, %s97
      %p109 = scmp.eq.s32.totalorder %s24, 1
      %p110 = por %p108, %p109
      %p112 = scmp.ne.s32.totalorder %s97, %s111
      %p113 = scmp.eq.s32.totalorder %s24, 0
      %p114 = por %p112, %p113
      %s116 = sadd.s32 %s115, 1
      %p119 = scmp.eq.s32.totalorder %s18, 1
      %p120 = scmp.ne.s32.totalorder %s115, %s117
      %p121 = scmp.eq.s32.totalorder %s18, 0
      %p122 = por %p120, %p121
      %p123 = scmp.ne.s32.totalorder %s115, %s117
      %p124 = scmp.eq.s32.totalorder %s23, 1
      %p125 = por %p123, %p124
      %p126 = scmp.ne.s32.totalorder %s117, %s118
      %p127 = scmp.eq.s32.totalorder %s23, 0
      %p128 = por %p126, %p127
      %p129 = scmp.ne.s32.totalorder %s117, %s118
      %p130 = scmp.eq.s32.totalorder %s24, 1
      %p131 = por %p129, %p130
      %p133 = scmp.ne.s32.totalorder %s118, %s132
      %p134 = scmp.eq.s32.totalorder %s24, 0
      %p135 = por %p133, %p134
      %s137 = sadd.s32 %s136, 1
      %p140 = scmp.eq.s32.totalorder %s18, 1
      %p141 = scmp.ne.s32.totalorder %s136, %s138
      %p142 = scmp.eq.s32.totalorder %s18, 0
      %p143 = por %p141, %p142
      %p144 = scmp.ne.s32.totalorder %s136, %s138
      %p145 = scmp.eq.s32.totalorder %s23, 1
      %p146 = por %p144, %p145
      %p147 = scmp.ne.s32.totalorder %s138, %s139
      %p148 = scmp.eq.s32.totalorder %s23, 0
      %p149 = por %p147, %p148
      %p150 = scmp.ne.s32.totalorder %s138, %s139
      %p151 = scmp.eq.s32.totalorder %s24, 1
      %p152 = por %p150, %p151
      %p154 = scmp.ne.s32.totalorder %s139, %s153
      %p155 = scmp.eq.s32.totalorder %s24, 0
      %p156 = por %p154, %p155
      %s158 = sadd.s32 %s157, 1
      %p161 = scmp.eq.s32.totalorder %s18, 1
      %p162 = scmp.ne.s32.totalorder %s157, %s159
      %p163 = scmp.eq.s32.totalorder %s18, 0
      %p164 = por %p162, %p163
      %p165 = scmp.ne.s32.totalorder %s157, %s159
      %p166 = scmp.eq.s32.totalorder %s23, 1
      %p167 = por %p165, %p166
      %p168 = scmp.ne.s32.totalorder %s159, %s160
      %p169 = scmp.eq.s32.totalorder %s23, 0
      %p170 = por %p168, %p169
      %p171 = scmp.ne.s32.totalorder %s159, %s160
      %p172 = scmp.eq.s32.totalorder %s24, 1
      %p173 = por %p171, %p172
      %p175 = scmp.ne.s32.totalorder %s160, %s174
      %p176 = scmp.eq.s32.totalorder %s24, 0
      %p177 = por %p175, %p176
      %s179 = sadd.s32 %s178, 1
      %p182 = scmp.eq.s32.totalorder %s18, 1
      %p183 = scmp.ne.s32.totalorder %s178, %s180
      %p184 = scmp.eq.s32.totalorder %s18, 0
      %p185 = por %p183, %p184
      %p186 = scmp.ne.s32.totalorder %s178, %s180
      %p187 = scmp.eq.s32.totalorder %s23, 1
      %p188 = por %p186, %p187
      %p189 = scmp.ne.s32.totalorder %s180, %s181
      %p190 = scmp.eq.s32.totalorder %s23, 0
      %p191 = por %p189, %p190
      %p192 = scmp.ne.s32.totalorder %s180, %s181
      %p193 = scmp.eq.s32.totalorder %s24, 1
      %p194 = por %p192, %p193
      %p196 = scmp.ne.s32.totalorder %s181, %s195
      %p197 = scmp.eq.s32.totalorder %s24, 0
      %p198 = por %p196, %p197
      %s199 = ssub.s32 %s18, %s25
      %p200 = scmp.eq.s32.totalorder %s199, 0
      %s202 = sadd.s32 %s201, 1
      %s203 = scalar_select %p200, %s201, %s202
      %p206 = pneg %p200
      %p207 = scmp.eq.s32.totalorder %s18, 1
      %p208 = por %p206, %p207
      %p209 = scmp.ne.s32.totalorder %s201, %s204
      %p210 = scmp.eq.s32.totalorder %s18, 0
      %p211 = por %p209, %p210
      %p212 = scmp.ne.s32.totalorder %s201, %s204
      %p213 = scmp.eq.s32.totalorder %s23, 1
      %p214 = por %p212, %p213
      %p215 = scmp.ne.s32.totalorder %s204, %s205
      %p216 = scmp.eq.s32.totalorder %s23, 0
      %p217 = por %p215, %p216
      %p218 = scmp.ne.s32.totalorder %s204, %s205
      %p219 = scmp.eq.s32.totalorder %s24, 1
      %p220 = por %p218, %p219
      %p222 = scmp.ne.s32.totalorder %s205, %s221
      %p223 = scmp.eq.s32.totalorder %s24, 0
      %p224 = por %p222, %p223
      %p225 = scmp.le.s32.totalorder 1, %s18
      %p226 = scmp.lt.s32.totalorder %s18, 3
      %p227 = pnand %p225, %p226
      %p228 = pneg %p227
      // Predicated region
      $region9: #{fn.1} parent=5 // pred_check
        _
      $region10: #{fn.1} parent=5 // pred_check_branch
        %230 = sbr.rel (%p227) target = $region12
      $region11: #{fn.1} parent=5 // pred_region
        %s231 = ssub.s32 %s18, 1
        // Predicated region
        $region13: #{fn.1} parent=11 // pred_check
          %p232 = pneg %p65
        $region14: #{fn.1} parent=11 // pred_check_branch
          %234 = sbr.rel (%p232) target = $region16
        $region15: #{fn.1} parent=11 // pred_region
          %236 = vsyncadd [#allocation3], 0
          %s237 = sshll.u32 %s1, 4
          %s238 = int_to_ptr.hbm [resolvable:$true] %s237
          %s239 = sshll.u32 [#allocation2], 4
          %s240 = int_to_ptr.vmem [resolvable:$true] %s239
          %245 = dma.hbm_to_vmem [thread:$0]  %s238, 40960, %s240, [#allocation3], 256, 256, 16
        $region16: #{fn.1} parent=11 // pred_fallthru
          _
        // Predicated region
        $region17: #{fn.1} parent=11 // pred_check
          %p246 = pneg %p86
        $region18: #{fn.1} parent=11 // pred_check_branch
          %248 = sbr.rel (%p246) target = $region20
        $region19: #{fn.1} parent=11 // pred_region
          %250 = vsyncadd [#allocation5], 0
          %s251 = sshll.u32 %s2, 4
          %s252 = int_to_ptr.hbm [resolvable:$true] %s251
          %s253 = sshll.u32 [#allocation4], 4
          %s254 = int_to_ptr.vmem [resolvable:$true] %s253
          %259 = dma.hbm_to_vmem [thread:$0]  %s252, 4096, %s254, [#allocation5], 64, 64, 4
        $region20: #{fn.1} parent=11 // pred_fallthru
          _
        // Predicated region
        $region21: #{fn.1} parent=11 // pred_check
          %p260 = pneg %p107
        $region22: #{fn.1} parent=11 // pred_check_branch
          %262 = sbr.rel (%p260) target = $region24
        $region23: #{fn.1} parent=11 // pred_region
          %264 = vsyncadd [#allocation5], 0
          %s266 = sshll.u32 %s3, 4
          %s267 = int_to_ptr.hbm [resolvable:$true] %s266
          %s268 = sshll.u32 [#allocation6], 4
          %s269 = int_to_ptr.vmem [resolvable:$true] %s268
          %271 = dma.hbm_to_vmem [thread:$0]  %s267, 128, %s269, [#allocation5]
        $region24: #{fn.1} parent=11 // pred_fallthru
          _
        // Predicated region
        $region25: #{fn.1} parent=11 // pred_check
          %p272 = pneg %p128
        $region26: #{fn.1} parent=11 // pred_check_branch
          %274 = sbr.rel (%p272) target = $region28
        $region27: #{fn.1} parent=11 // pred_region
          _
        $region28: #{fn.1} parent=11 // pred_fallthru
          _
        // Predicated region
        $region29: #{fn.1} parent=11 // pred_check
          %p275 = pneg %p149
        $region30: #{fn.1} parent=11 // pred_check_branch
          %277 = sbr.rel (%p275) target = $region32
        $region31: #{fn.1} parent=11 // pred_region
          %279 = vsyncadd [#allocation8], 0
          %s281 = sshll.u32 %s5, 4
          %s282 = int_to_ptr.hbm [resolvable:$true] %s281
          %s283 = sshll.u32 [#allocation7], 4
          %s284 = int_to_ptr.vmem [resolvable:$true] %s283
          %286 = dma.hbm_to_vmem [thread:$0]  %s282, 32, %s284, [#allocation8]
        $region32: #{fn.1} parent=11 // pred_fallthru
          _
        // Predicated region
        $region33: #{fn.1} parent=11 // pred_check
          %p287 = pneg %p170
        $region34: #{fn.1} parent=11 // pred_check_branch
          %289 = sbr.rel (%p287) target = $region36
        $region35: #{fn.1} parent=11 // pred_region
          %291 = vsyncadd [#allocation8], 0
          %s293 = sshll.u32 %s6, 4
          %s294 = int_to_ptr.hbm [resolvable:$true] %s293
          %s295 = sshll.u32 [#allocation9], 4
          %s296 = int_to_ptr.vmem [resolvable:$true] %s295
          %298 = dma.hbm_to_vmem [thread:$0]  %s294, 64, %s296, [#allocation8]
        $region36: #{fn.1} parent=11 // pred_fallthru
          _
        // Predicated region
        $region37: #{fn.1} parent=11 // pred_check
          %p299 = pneg %p191
        $region38: #{fn.1} parent=11 // pred_check_branch
          %301 = sbr.rel (%p299) target = $region40
        $region39: #{fn.1} parent=11 // pred_region
          %303 = vsyncadd [#allocation11], 0
          %s305 = sshll.u32 %s7, 4
          %s306 = int_to_ptr.hbm [resolvable:$true] %s305
          %s307 = sshll.u32 [#allocation10], 4
          %s308 = int_to_ptr.vmem [resolvable:$true] %s307
          %310 = dma.hbm_to_vmem [thread:$0]  %s306, 16, %s308, [#allocation11]
        $region40: #{fn.1} parent=11 // pred_fallthru
          _
      $region12: #{fn.1} parent=5 // pred_fallthru
        _
      %p311 = scmp.lt.s32.totalorder %s18, 2
      // Predicated region
      $region41: #{fn.1} parent=5 // pred_check
        %p312 = pneg %p311
      $region42: #{fn.1} parent=5 // pred_check_branch
        %314 = sbr.rel (%p312) target = $region44
      $region43: #{fn.1} parent=5 // pred_region
        // Predicated region
        $region45: #{fn.1} parent=43 // pred_check
          %p315 = pneg %p38
        $region46: #{fn.1} parent=43 // pred_check_branch
          %317 = sbr.rel (%p315) target = $region48
        $region47: #{fn.1} parent=43 // pred_region
          %p318 = scmp.lt.s32.totalorder %s18, 1
          %s319 = scalar_select %p318, %s18, 1
          %s320 = smul.addr %s319, 4
          %s321 = smul.addr %s320, 8
          %s322 = scalar_lea.vmem %s0, %s321
        $region48: #{fn.1} parent=43 // pred_fallthru
          _
      $region44: #{fn.1} parent=5 // pred_fallthru
        _
      %p323 = scmp.le.s32.totalorder 1, %s18
      %p324 = scmp.lt.s32.totalorder %s18, 3
      %p325 = pnand %p323, %p324
      %p326 = pneg %p325
      // Predicated region
      $region49: #{fn.1} parent=5 // pred_check
        _
      $region50: #{fn.1} parent=5 // pred_check_branch
        %328 = sbr.rel (%p325) target = $region52
      $region51: #{fn.1} parent=5 // pred_region
        %s329 = ssub.s32 %s18, 1
        // Predicated region
        $region53: #{fn.1} parent=51 // pred_check
          %p330 = pneg %p65
        $region54: #{fn.1} parent=51 // pred_check_branch
          %332 = sbr.rel (%p330) target = $region56
        $region55: #{fn.1} parent=51 // pred_region
          %334 = dma.done [#allocation3], 40960
        $region56: #{fn.1} parent=51 // pred_fallthru
          _
        // Predicated region
        $region57: #{fn.1} parent=51 // pred_check
          %p335 = pneg %p86
        $region58: #{fn.1} parent=51 // pred_check_branch
          %337 = sbr.rel (%p335) target = $region60
        $region59: #{fn.1} parent=51 // pred_region
          %339 = dma.done [#allocation5], 4096
        $region60: #{fn.1} parent=51 // pred_fallthru
          _
        // Predicated region
        $region61: #{fn.1} parent=51 // pred_check
          %p340 = pneg %p107
        $region62: #{fn.1} parent=51 // pred_check_branch
          %342 = sbr.rel (%p340) target = $region64
        $region63: #{fn.1} parent=51 // pred_region
          %344 = dma.done [#allocation5], 128
        $region64: #{fn.1} parent=51 // pred_fallthru
          _
        // Predicated region
        $region65: #{fn.1} parent=51 // pred_check
          %p345 = pneg %p149
        $region66: #{fn.1} parent=51 // pred_check_branch
          %347 = sbr.rel (%p345) target = $region68
        $region67: #{fn.1} parent=51 // pred_region
          %349 = dma.done [#allocation8], 32
        $region68: #{fn.1} parent=51 // pred_fallthru
          _
        // Predicated region
        $region69: #{fn.1} parent=51 // pred_check
          %p350 = pneg %p170
        $region70: #{fn.1} parent=51 // pred_check_branch
          %352 = sbr.rel (%p350) target = $region72
        $region71: #{fn.1} parent=51 // pred_region
          %354 = dma.done [#allocation8], 64
        $region72: #{fn.1} parent=51 // pred_fallthru
          _
        // Predicated region
        $region73: #{fn.1} parent=51 // pred_check
          %p355 = pneg %p191
        $region74: #{fn.1} parent=51 // pred_check_branch
          %357 = sbr.rel (%p355) target = $region76
        $region75: #{fn.1} parent=51 // pred_region
          %359 = dma.done [#allocation11], 16
        $region76: #{fn.1} parent=51 // pred_fallthru
          _
        %p360 = scmp.lt.s32.totalorder %s23, 1
        %s361 = scalar_select %p360, %s23, 1
        %s362 = smul.addr %s361, 4
        %s363 = smul.addr %s362, 8
        %s364 = scalar_lea.vmem %s0, %s363
        %p365 = pneg %p44
        %p366 = pneg %p41
        %p367 = pneg %p65
        %p368 = pneg %p62
        %p369 = pneg %p86
        %p370 = pneg %p83
        %p371 = pneg %p107
        %p372 = pneg %p104
        %p373 = pneg %p128
        %p374 = pneg %p125
        %p375 = pneg %p149
        %p376 = pneg %p146
        %p377 = pneg %p170
        %p378 = pneg %p167
        %p379 = pneg %p191
        %p380 = pneg %p188
        %p381 = pneg %p217
        %p382 = pneg %p214
        %p383 = scmp.lt.s32.totalorder %s23, 1
        %s384 = scalar_select %p383, %s23, 1
        %s385 = smul.addr %s384, 2
        %s386 = smul.addr %s385, 8
        %s387 = scalar_lea.vmem %s8, %s386
        %p388 = scmp.lt.s32.totalorder %s23, 1
        %s389 = scalar_select %p388, %s23, 1
        %s390 = smul.addr %s389, 4
        %s391 = smul.addr %s390, 8
        %s392 = scalar_lea.vmem %s0, %s391
        %p393 = scmp.lt.s32.totalorder %s23, 1
        %s394 = scalar_select %p393, %s23, 1
        %s395 = smul.addr %s394, 2
        %s396 = smul.addr %s395, 8
        %s397 = scalar_lea.vmem %s8, %s396
        %v399 = vld [vmem:[%s392] sm:$0xff]
        %v400 = vld [vmem:[%s392 + $0x8] sm:$0xff]
        %v401 = vld [vmem:[%s392 + $0x10] sm:$0xff]
        %v402 = vld [vmem:[%s392 + $0x18] sm:$0xff]
        %v403 = vpack.c.bf16 %v401, %v399
        %v404 = vpack.c.bf16 %v402, %v400
        %v407 = vrot.slane %v399, 4
        %v408 = vrot.slane %v400, 4
        %vm411 = vcmask 1043456
        %v412 = vsel %vm411, 0.0, %v407
        %v413 = vsel %vm411, 0.0, %v408
        %v414 = vpack.c.bf16 %v412, 0.0
        %v415 = vpack.c.bf16 %v413, 0.0
        %v416 = vld [vmem:[#allocation2] sm:$0xff]
        %v417 = vld [vmem:[#allocation2 + $0x8] sm:$0xff]
        %v418 = vld [vmem:[#allocation2 + $0x10] sm:$0xff]
        %v419 = vld [vmem:[#allocation2 + $0x18] sm:$0xff]
        %v420 = vld [vmem:[#allocation2 + $0x20] sm:$0xff]
        %v421 = vld [vmem:[#allocation2 + $0x28] sm:$0xff]
        %v422 = vld [vmem:[#allocation2 + $0x30] sm:$0xff]
        %v423 = vld [vmem:[#allocation2 + $0x38] sm:$0xff]
        %v424 = vld [vmem:[#allocation2 + $0x40] sm:$0xff]
        %v425 = vld [vmem:[#allocation2 + $0x48] sm:$0xff]
        %v426 = vld [vmem:[#allocation2 + $0x50] sm:$0xff]
        %v427 = vld [vmem:[#allocation2 + $0x58] sm:$0xff]
        %v428 = vld [vmem:[#allocation2 + $0x60] sm:$0xff]
        %v429 = vld [vmem:[#allocation2 + $0x68] sm:$0xff]
        %v430 = vld [vmem:[#allocation2 + $0x70] sm:$0xff]
        %v431 = vld [vmem:[#allocation2 + $0x78] sm:$0xff]
        %v432 = vld [vmem:[#allocation2 + $0x80] sm:$0xff]
        %v433 = vld [vmem:[#allocation2 + $0x88] sm:$0xff]
        %v434 = vld [vmem:[#allocation2 + $0x90] sm:$0xff]
        %v435 = vld [vmem:[#allocation2 + $0x98] sm:$0xff]
        %v436 = vld [vmem:[#allocation2 + $0xa0] sm:$0xff]
        %v437 = vld [vmem:[#allocation2 + $0xa8] sm:$0xff]
        %v438 = vld [vmem:[#allocation2 + $0xb0] sm:$0xff]
        %v439 = vld [vmem:[#allocation2 + $0xb8] sm:$0xff]
        %v440 = vld [vmem:[#allocation2 + $0xc0] sm:$0xff]
        %v441 = vld [vmem:[#allocation2 + $0xc8] sm:$0xff]
        %v442 = vld [vmem:[#allocation2 + $0xd0] sm:$0xff]
        %v443 = vld [vmem:[#allocation2 + $0xd8] sm:$0xff]
        %v444 = vld [vmem:[#allocation2 + $0xe0] sm:$0xff]
        %v445 = vld [vmem:[#allocation2 + $0xe8] sm:$0xff]
        %v446 = vld [vmem:[#allocation2 + $0xf0] sm:$0xff]
        %v447 = vld [vmem:[#allocation2 + $0xf8] sm:$0xff]
        %v448 = vld [vmem:[#allocation2 + $0x100] sm:$0xff]
        %v449 = vld [vmem:[#allocation2 + $0x108] sm:$0xff]
        %v450 = vld [vmem:[#allocation2 + $0x110] sm:$0xff]
        %v451 = vld [vmem:[#allocation2 + $0x118] sm:$0xff]
        %v452 = vld [vmem:[#allocation2 + $0x120] sm:$0xff]
        %v453 = vld [vmem:[#allocation2 + $0x128] sm:$0xff]
        %v454 = vld [vmem:[#allocation2 + $0x130] sm:$0xff]
        %v455 = vld [vmem:[#allocation2 + $0x138] sm:$0xff]
        %v456 = vld [vmem:[#allocation2 + $0x140] sm:$0xff]
        %v457 = vld [vmem:[#allocation2 + $0x148] sm:$0xff]
        %v458 = vld [vmem:[#allocation2 + $0x150] sm:$0xff]
        %v459 = vld [vmem:[#allocation2 + $0x158] sm:$0xff]
        %v460 = vld [vmem:[#allocation2 + $0x160] sm:$0xff]
        %v461 = vld [vmem:[#allocation2 + $0x168] sm:$0xff]
        %v462 = vld [vmem:[#allocation2 + $0x170] sm:$0xff]
        %v463 = vld [vmem:[#allocation2 + $0x178] sm:$0xff]
        %v464 = vld [vmem:[#allocation2 + $0x180] sm:$0xff]
        %v465 = vld [vmem:[#allocation2 + $0x188] sm:$0xff]
        %v466 = vld [vmem:[#allocation2 + $0x190] sm:$0xff]
        %v467 = vld [vmem:[#allocation2 + $0x198] sm:$0xff]
        %v468 = vld [vmem:[#allocation2 + $0x1a0] sm:$0xff]
        %v469 = vld [vmem:[#allocation2 + $0x1a8] sm:$0xff]
        %v470 = vld [vmem:[#allocation2 + $0x1b0] sm:$0xff]
        %v471 = vld [vmem:[#allocation2 + $0x1b8] sm:$0xff]
        %v472 = vld [vmem:[#allocation2 + $0x1c0] sm:$0xff]
        %v473 = vld [vmem:[#allocation2 + $0x1c8] sm:$0xff]
        %v474 = vld [vmem:[#allocation2 + $0x1d0] sm:$0xff]
        %v475 = vld [vmem:[#allocation2 + $0x1d8] sm:$0xff]
        %v476 = vld [vmem:[#allocation2 + $0x1e0] sm:$0xff]
        %v477 = vld [vmem:[#allocation2 + $0x1e8] sm:$0xff]
        %v478 = vld [vmem:[#allocation2 + $0x1f0] sm:$0xff]
        %v479 = vld [vmem:[#allocation2 + $0x1f8] sm:$0xff]
        %vm482 = vcmask 1045504
        %v483 = vrot.slane %v399, 2
        %v484 = vrot.slane %v400, 2
        %v485 = vrot.slane %v401, 2
        %v486 = vsel %vm482, %v483, %v485
        %v487 = vrot.slane %v402, 2
        %v488 = vsel %vm482, %v484, %v487
        %v493 = vsel %vm482, 0.0, %v483
        %v494 = vsel %vm482, 0.0, %v484
        %v495 = vpack.c.bf16 %v486, %v493
        %v496 = vpack.c.bf16 %v488, %v494
        %s497 = scalar_lea.vmem [#allocation2], 512
        %v498 = vld [vmem:[%s497] sm:$0xff]
        %v499 = vld [vmem:[%s497 + $0x8] sm:$0xff]
        %v500 = vld [vmem:[%s497 + $0x10] sm:$0xff]
        %v501 = vld [vmem:[%s497 + $0x18] sm:$0xff]
        %v502 = vld [vmem:[%s497 + $0x20] sm:$0xff]
        %v503 = vld [vmem:[%s497 + $0x28] sm:$0xff]
        %v504 = vld [vmem:[%s497 + $0x30] sm:$0xff]
        %v505 = vld [vmem:[%s497 + $0x38] sm:$0xff]
        %v506 = vld [vmem:[%s497 + $0x40] sm:$0xff]
        %v507 = vld [vmem:[%s497 + $0x48] sm:$0xff]
        %v508 = vld [vmem:[%s497 + $0x50] sm:$0xff]
        %v509 = vld [vmem:[%s497 + $0x58] sm:$0xff]
        %v510 = vld [vmem:[%s497 + $0x60] sm:$0xff]
        %v511 = vld [vmem:[%s497 + $0x68] sm:$0xff]
        %v512 = vld [vmem:[%s497 + $0x70] sm:$0xff]
        %v513 = vld [vmem:[%s497 + $0x78] sm:$0xff]
        %v514 = vld [vmem:[%s497 + $0x80] sm:$0xff]
        %v515 = vld [vmem:[%s497 + $0x88] sm:$0xff]
        %v516 = vld [vmem:[%s497 + $0x90] sm:$0xff]
        %v517 = vld [vmem:[%s497 + $0x98] sm:$0xff]
        %v518 = vld [vmem:[%s497 + $0xa0] sm:$0xff]
        %v519 = vld [vmem:[%s497 + $0xa8] sm:$0xff]
        %v520 = vld [vmem:[%s497 + $0xb0] sm:$0xff]
        %v521 = vld [vmem:[%s497 + $0xb8] sm:$0xff]
        %v522 = vld [vmem:[%s497 + $0xc0] sm:$0xff]
        %v523 = vld [vmem:[%s497 + $0xc8] sm:$0xff]
        %v524 = vld [vmem:[%s497 + $0xd0] sm:$0xff]
        %v525 = vld [vmem:[%s497 + $0xd8] sm:$0xff]
        %v526 = vld [vmem:[%s497 + $0xe0] sm:$0xff]
        %v527 = vld [vmem:[%s497 + $0xe8] sm:$0xff]
        %v528 = vld [vmem:[%s497 + $0xf0] sm:$0xff]
        %v529 = vld [vmem:[%s497 + $0xf8] sm:$0xff]
        %v530 = vld [vmem:[%s497 + $0x100] sm:$0xff]
        %v531 = vld [vmem:[%s497 + $0x108] sm:$0xff]
        %v532 = vld [vmem:[%s497 + $0x110] sm:$0xff]
        %v533 = vld [vmem:[%s497 + $0x118] sm:$0xff]
        %v534 = vld [vmem:[%s497 + $0x120] sm:$0xff]
        %v535 = vld [vmem:[%s497 + $0x128] sm:$0xff]
        %v536 = vld [vmem:[%s497 + $0x130] sm:$0xff]
        %v537 = vld [vmem:[%s497 + $0x138] sm:$0xff]
        %v538 = vld [vmem:[%s497 + $0x140] sm:$0xff]
        %v539 = vld [vmem:[%s497 + $0x148] sm:$0xff]
        %v540 = vld [vmem:[%s497 + $0x150] sm:$0xff]
        %v541 = vld [vmem:[%s497 + $0x158] sm:$0xff]
        %v542 = vld [vmem:[%s497 + $0x160] sm:$0xff]
        %v543 = vld [vmem:[%s497 + $0x168] sm:$0xff]
        %v544 = vld [vmem:[%s497 + $0x170] sm:$0xff]
        %v545 = vld [vmem:[%s497 + $0x178] sm:$0xff]
        %v546 = vld [vmem:[%s497 + $0x180] sm:$0xff]
        %v547 = vld [vmem:[%s497 + $0x188] sm:$0xff]
        %v548 = vld [vmem:[%s497 + $0x190] sm:$0xff]
        %v549 = vld [vmem:[%s497 + $0x198] sm:$0xff]
        %v550 = vld [vmem:[%s497 + $0x1a0] sm:$0xff]
        %v551 = vld [vmem:[%s497 + $0x1a8] sm:$0xff]
        %v552 = vld [vmem:[%s497 + $0x1b0] sm:$0xff]
        %v553 = vld [vmem:[%s497 + $0x1b8] sm:$0xff]
        %v554 = vld [vmem:[%s497 + $0x1c0] sm:$0xff]
        %v555 = vld [vmem:[%s497 + $0x1c8] sm:$0xff]
        %v556 = vld [vmem:[%s497 + $0x1d0] sm:$0xff]
        %v557 = vld [vmem:[%s497 + $0x1d8] sm:$0xff]
        %v558 = vld [vmem:[%s497 + $0x1e0] sm:$0xff]
        %v559 = vld [vmem:[%s497 + $0x1e8] sm:$0xff]
        %v560 = vld [vmem:[%s497 + $0x1f0] sm:$0xff]
        %v561 = vld [vmem:[%s497 + $0x1f8] sm:$0xff]
        %v626 = vunpack.c.l.b16 %v498
        %v627 = vunpack.c.h.b16 %v498
        %v628 = vunpack.c.l.b16 %v499
        %v629 = vunpack.c.h.b16 %v499
        %v630 = vunpack.c.l.b16 %v500
        %v631 = vunpack.c.h.b16 %v500
        %v632 = vunpack.c.l.b16 %v501
        %v633 = vunpack.c.h.b16 %v501
        %v634 = vunpack.c.l.b16 %v502
        %v635 = vunpack.c.h.b16 %v502
        %v636 = vunpack.c.l.b16 %v503
        %v637 = vunpack.c.h.b16 %v503
        %v638 = vunpack.c.l.b16 %v504
        %v639 = vunpack.c.h.b16 %v504
        %v640 = vunpack.c.l.b16 %v505
        %v641 = vunpack.c.h.b16 %v505
        %v642 = vunpack.c.l.b16 %v506
        %v643 = vunpack.c.h.b16 %v506
        %v644 = vunpack.c.l.b16 %v507
        %v645 = vunpack.c.h.b16 %v507
        %v646 = vunpack.c.l.b16 %v508
        %v647 = vunpack.c.h.b16 %v508
        %v648 = vunpack.c.l.b16 %v509
        %v649 = vunpack.c.h.b16 %v509
        %v650 = vunpack.c.l.b16 %v510
        %v651 = vunpack.c.h.b16 %v510
        %v652 = vunpack.c.l.b16 %v511
        %v653 = vunpack.c.h.b16 %v511
        %v654 = vunpack.c.l.b16 %v512
        %v655 = vunpack.c.h.b16 %v512
        %v656 = vunpack.c.l.b16 %v513
        %v657 = vunpack.c.h.b16 %v513
        %v658 = vunpack.c.l.b16 %v514
        %v659 = vunpack.c.h.b16 %v514
        %v660 = vunpack.c.l.b16 %v515
        %v661 = vunpack.c.h.b16 %v515
        %v662 = vunpack.c.l.b16 %v516
        %v663 = vunpack.c.h.b16 %v516
        %v664 = vunpack.c.l.b16 %v517
        %v665 = vunpack.c.h.b16 %v517
        %v666 = vunpack.c.l.b16 %v518
        %v667 = vunpack.c.h.b16 %v518
        %v668 = vunpack.c.l.b16 %v519
        %v669 = vunpack.c.h.b16 %v519
        %v670 = vunpack.c.l.b16 %v520
        %v671 = vunpack.c.h.b16 %v520
        %v672 = vunpack.c.l.b16 %v521
        %v673 = vunpack.c.h.b16 %v521
        %v674 = vunpack.c.l.b16 %v522
        %v675 = vunpack.c.h.b16 %v522
        %v676 = vunpack.c.l.b16 %v523
        %v677 = vunpack.c.h.b16 %v523
        %v678 = vunpack.c.l.b16 %v524
        %v679 = vunpack.c.h.b16 %v524
        %v680 = vunpack.c.l.b16 %v525
        %v681 = vunpack.c.h.b16 %v525
        %v682 = vunpack.c.l.b16 %v526
        %v683 = vunpack.c.h.b16 %v526
        %v684 = vunpack.c.l.b16 %v527
        %v685 = vunpack.c.h.b16 %v527
        %v686 = vunpack.c.l.b16 %v528
        %v687 = vunpack.c.h.b16 %v528
        %v688 = vunpack.c.l.b16 %v529
        %v689 = vunpack.c.h.b16 %v529
        %v690 = vunpack.c.l.b16 %v530
        %v691 = vunpack.c.h.b16 %v530
        %v692 = vunpack.c.l.b16 %v531
        %v693 = vunpack.c.h.b16 %v531
        %v694 = vunpack.c.l.b16 %v532
        %v695 = vunpack.c.h.b16 %v532
        %v696 = vunpack.c.l.b16 %v533
        %v697 = vunpack.c.h.b16 %v533
        %v698 = vunpack.c.l.b16 %v534
        %v699 = vunpack.c.h.b16 %v534
        %v700 = vunpack.c.l.b16 %v535
        %v701 = vunpack.c.h.b16 %v535
        %v702 = vunpack.c.l.b16 %v536
        %v703 = vunpack.c.h.b16 %v536
        %v704 = vunpack.c.l.b16 %v537
        %v705 = vunpack.c.h.b16 %v537
        %v706 = vunpack.c.l.b16 %v538
        %v707 = vunpack.c.h.b16 %v538
        %v708 = vunpack.c.l.b16 %v539
        %v709 = vunpack.c.h.b16 %v539
        %v710 = vunpack.c.l.b16 %v540
        %v711 = vunpack.c.h.b16 %v540
        %v712 = vunpack.c.l.b16 %v541
        %v713 = vunpack.c.h.b16 %v541
        %v714 = vunpack.c.l.b16 %v542
        %v715 = vunpack.c.h.b16 %v542
        %v716 = vunpack.c.l.b16 %v543
        %v717 = vunpack.c.h.b16 %v543
        %v718 = vunpack.c.l.b16 %v544
        %v719 = vunpack.c.h.b16 %v544
        %v720 = vunpack.c.l.b16 %v545
        %v721 = vunpack.c.h.b16 %v545
        %v722 = vunpack.c.l.b16 %v546
        %v723 = vunpack.c.h.b16 %v546
        %v724 = vunpack.c.l.b16 %v547
        %v725 = vunpack.c.h.b16 %v547
        %v726 = vunpack.c.l.b16 %v548
        %v727 = vunpack.c.h.b16 %v548
        %v728 = vunpack.c.l.b16 %v549
        %v729 = vunpack.c.h.b16 %v549
        %v730 = vunpack.c.l.b16 %v550
        %v731 = vunpack.c.h.b16 %v550
        %v732 = vunpack.c.l.b16 %v551
        %v733 = vunpack.c.h.b16 %v551
        %v734 = vunpack.c.l.b16 %v552
        %v735 = vunpack.c.h.b16 %v552
        %v736 = vunpack.c.l.b16 %v553
        %v737 = vunpack.c.h.b16 %v553
        %v738 = vunpack.c.l.b16 %v554
        %v739 = vunpack.c.h.b16 %v554
        %v740 = vunpack.c.l.b16 %v555
        %v741 = vunpack.c.h.b16 %v555
        %v742 = vunpack.c.l.b16 %v556
        %v743 = vunpack.c.h.b16 %v556
        %v744 = vunpack.c.l.b16 %v557
        %v745 = vunpack.c.h.b16 %v557
        %v746 = vunpack.c.l.b16 %v558
        %v747 = vunpack.c.h.b16 %v558
        %v748 = vunpack.c.l.b16 %v559
        %v749 = vunpack.c.h.b16 %v559
        %v750 = vunpack.c.l.b16 %v560
        %v751 = vunpack.c.h.b16 %v560
        %v752 = vunpack.c.l.b16 %v561
        %v753 = vunpack.c.h.b16 %v561
        %v754 = vpack.c.b16 %v630, %v626
        %v755 = vpack.c.b16 %v631, %v627
        %v756 = vpack.c.b16 %v632, %v628
        %v757 = vpack.c.b16 %v633, %v629
        %v758 = vpack.c.b16 %v638, %v634
        %v759 = vpack.c.b16 %v639, %v635
        %v760 = vpack.c.b16 %v640, %v636
        %v761 = vpack.c.b16 %v641, %v637
        %v762 = vpack.c.b16 %v646, %v642
        %v763 = vpack.c.b16 %v647, %v643
        %v764 = vpack.c.b16 %v648, %v644
        %v765 = vpack.c.b16 %v649, %v645
        %v766 = vpack.c.b16 %v654, %v650
        %v767 = vpack.c.b16 %v655, %v651
        %v768 = vpack.c.b16 %v656, %v652
        %v769 = vpack.c.b16 %v657, %v653
        %v770 = vpack.c.b16 %v662, %v658
        %v771 = vpack.c.b16 %v663, %v659
        %v772 = vpack.c.b16 %v664, %v660
        %v773 = vpack.c.b16 %v665, %v661
        %v774 = vpack.c.b16 %v670, %v666
        %v775 = vpack.c.b16 %v671, %v667
        %v776 = vpack.c.b16 %v672, %v668
        %v777 = vpack.c.b16 %v673, %v669
        %v778 = vpack.c.b16 %v678, %v674
        %v779 = vpack.c.b16 %v679, %v675
        %v780 = vpack.c.b16 %v680, %v676
        %v781 = vpack.c.b16 %v681, %v677
        %v782 = vpack.c.b16 %v686, %v682
        %v783 = vpack.c.b16 %v687, %v683
        %v784 = vpack.c.b16 %v688, %v684
        %v785 = vpack.c.b16 %v689, %v685
        %v786 = vpack.c.b16 %v694, %v690
        %v787 = vpack.c.b16 %v695, %v691
        %v788 = vpack.c.b16 %v696, %v692
        %v789 = vpack.c.b16 %v697, %v693
        %v790 = vpack.c.b16 %v702, %v698
        %v791 = vpack.c.b16 %v703, %v699
        %v792 = vpack.c.b16 %v704, %v700
        %v793 = vpack.c.b16 %v705, %v701
        %v794 = vpack.c.b16 %v710, %v706
        %v795 = vpack.c.b16 %v711, %v707
        %v796 = vpack.c.b16 %v712, %v708
        %v797 = vpack.c.b16 %v713, %v709
        %v798 = vpack.c.b16 %v718, %v714
        %v799 = vpack.c.b16 %v719, %v715
        %v800 = vpack.c.b16 %v720, %v716
        %v801 = vpack.c.b16 %v721, %v717
        %v802 = vpack.c.b16 %v726, %v722
        %v803 = vpack.c.b16 %v727, %v723
        %v804 = vpack.c.b16 %v728, %v724
        %v805 = vpack.c.b16 %v729, %v725
        %v806 = vpack.c.b16 %v734, %v730
        %v807 = vpack.c.b16 %v735, %v731
        %v808 = vpack.c.b16 %v736, %v732
        %v809 = vpack.c.b16 %v737, %v733
        %v810 = vpack.c.b16 %v742, %v738
        %v811 = vpack.c.b16 %v743, %v739
        %v812 = vpack.c.b16 %v744, %v740
        %v813 = vpack.c.b16 %v745, %v741
        %v814 = vpack.c.b16 %v750, %v746
        %v815 = vpack.c.b16 %v751, %v747
        %v816 = vpack.c.b16 %v752, %v748
        %v817 = vpack.c.b16 %v753, %v749
        %882 = vmatpush.bf16.msra.mxu0 %v782
        %883 = vmatpush.bf16.msra.mxu0 %v778
        %884 = vmatpush.bf16.msra.mxu0 %v774
        %885 = vmatpush.bf16.msra.mxu0 %v770
        %886 = vmatpush.bf16.msra.mxu0 %v766
        %887 = vmatpush.bf16.msra.mxu0 %v762
        %888 = vmatpush.bf16.msra.mxu0 %v758
        %889 = vmatpush.bf16.msra.mxu0 %v754
        %890 = vmatmul.bf16.gmra.mxu0 %v495
        %v891 = vpop.f32.mrf.mxu0
        %v892 = vadd.f32 0.0, %v891
        %v893 = vpop.f32.mrf.mxu0
        %v894 = vadd.f32 0.0, %v893
        %895 = vdwg.mxu0
        %896 = vmatpush.bf16.msra.mxu0 %v814
        %897 = vmatpush.bf16.msra.mxu0 %v810
        %898 = vmatpush.bf16.msra.mxu0 %v806
        %899 = vmatpush.bf16.msra.mxu0 %v802
        %900 = vmatpush.bf16.msra.mxu0 %v798
        %901 = vmatpush.bf16.msra.mxu0 %v794
        %902 = vmatpush.bf16.msra.mxu0 %v790
        %903 = vmatpush.bf16.msra.mxu0 %v786
        %904 = vmatmul.bf16.gmra.mxu0 %v496
        %v905 = vpop.f32.mrf.mxu0
        %v906 = vadd.f32 %v892, %v905
        %v907 = vpop.f32.mrf.mxu0
        %v908 = vadd.f32 %v894, %v907
        %909 = vdwg.mxu0
        %910 = vmatpush.bf16.msra.mxu0 %v783
        %911 = vmatpush.bf16.msra.mxu0 %v779
        %912 = vmatpush.bf16.msra.mxu0 %v775
        %913 = vmatpush.bf16.msra.mxu0 %v771
        %914 = vmatpush.bf16.msra.mxu0 %v767
        %915 = vmatpush.bf16.msra.mxu0 %v763
        %916 = vmatpush.bf16.msra.mxu0 %v759
        %917 = vmatpush.bf16.msra.mxu0 %v755
        %918 = vmatmul.bf16.gmra.mxu0 %v495
        %v919 = vpop.f32.mrf.mxu0
        %v920 = vadd.f32 0.0, %v919
        %v921 = vpop.f32.mrf.mxu0
        %v922 = vadd.f32 0.0, %v921
        %923 = vdwg.mxu0
        %924 = vmatpush.bf16.msra.mxu0 %v815
        %925 = vmatpush.bf16.msra.mxu0 %v811
        %926 = vmatpush.bf16.msra.mxu0 %v807
        %927 = vmatpush.bf16.msra.mxu0 %v803
        %928 = vmatpush.bf16.msra.mxu0 %v799
        %929 = vmatpush.bf16.msra.mxu0 %v795
        %930 = vmatpush.bf16.msra.mxu0 %v791
        %931 = vmatpush.bf16.msra.mxu0 %v787
        %932 = vmatmul.bf16.gmra.mxu0 %v496
        %v933 = vpop.f32.mrf.mxu0
        %v934 = vadd.f32 %v920, %v933
        %v935 = vpop.f32.mrf.mxu0
        %v936 = vadd.f32 %v922, %v935
        %937 = vdwg.mxu0
        %938 = vmatpush.bf16.msra.mxu0 %v784
        %939 = vmatpush.bf16.msra.mxu0 %v780
        %940 = vmatpush.bf16.msra.mxu0 %v776
        %941 = vmatpush.bf16.msra.mxu0 %v772
        %942 = vmatpush.bf16.msra.mxu0 %v768
        %943 = vmatpush.bf16.msra.mxu0 %v764
        %944 = vmatpush.bf16.msra.mxu0 %v760
        %945 = vmatpush.bf16.msra.mxu0 %v756
        %946 = vmatmul.bf16.gmra.mxu0 %v495
        %v947 = vpop.f32.mrf.mxu0
        %v948 = vadd.f32 0.0, %v947
        %v949 = vpop.f32.mrf.mxu0
        %v950 = vadd.f32 0.0, %v949
        %951 = vdwg.mxu0
        %952 = vmatpush.bf16.msra.mxu0 %v816
        %953 = vmatpush.bf16.msra.mxu0 %v812
        %954 = vmatpush.bf16.msra.mxu0 %v808
        %955 = vmatpush.bf16.msra.mxu0 %v804
        %956 = vmatpush.bf16.msra.mxu0 %v800
        %957 = vmatpush.bf16.msra.mxu0 %v796
        %958 = vmatpush.bf16.msra.mxu0 %v792
        %959 = vmatpush.bf16.msra.mxu0 %v788
        %960 = vmatmul.bf16.gmra.mxu0 %v496
        %v961 = vpop.f32.mrf.mxu0
        %v962 = vadd.f32 %v948, %v961
        %v963 = vpop.f32.mrf.mxu0
        %v964 = vadd.f32 %v950, %v963
        %965 = vdwg.mxu0
        %966 = vmatpush.bf16.msra.mxu0 %v785
        %967 = vmatpush.bf16.msra.mxu0 %v781
        %968 = vmatpush.bf16.msra.mxu0 %v777
        %969 = vmatpush.bf16.msra.mxu0 %v773
        %970 = vmatpush.bf16.msra.mxu0 %v769
        %971 = vmatpush.bf16.msra.mxu0 %v765
        %972 = vmatpush.bf16.msra.mxu0 %v761
        %973 = vmatpush.bf16.msra.mxu0 %v757
        %974 = vmatmul.bf16.gmra.mxu0 %v495
        %v975 = vpop.f32.mrf.mxu0
        %v976 = vadd.f32 0.0, %v975
        %v977 = vpop.f32.mrf.mxu0
        %v978 = vadd.f32 0.0, %v977
        %979 = vdwg.mxu0
        %980 = vmatpush.bf16.msra.mxu0 %v817
        %981 = vmatpush.bf16.msra.mxu0 %v813
        %982 = vmatpush.bf16.msra.mxu0 %v809
        %983 = vmatpush.bf16.msra.mxu0 %v805
        %984 = vmatpush.bf16.msra.mxu0 %v801
        %985 = vmatpush.bf16.msra.mxu0 %v797
        %986 = vmatpush.bf16.msra.mxu0 %v793
        %987 = vmatpush.bf16.msra.mxu0 %v789
        %988 = vmatmul.bf16.gmra.mxu0 %v496
        %v989 = vpop.f32.mrf.mxu0
        %v990 = vadd.f32 %v976, %v989
        %v991 = vpop.f32.mrf.mxu0
        %v992 = vadd.f32 %v978, %v991
        %993 = vdwg.mxu0
        %v1058 = vunpack.c.l.b16 %v416
        %v1059 = vunpack.c.h.b16 %v416
        %v1060 = vunpack.c.l.b16 %v417
        %v1061 = vunpack.c.h.b16 %v417
        %v1062 = vunpack.c.l.b16 %v418
        %v1063 = vunpack.c.h.b16 %v418
        %v1064 = vunpack.c.l.b16 %v419
        %v1065 = vunpack.c.h.b16 %v419
        %v1066 = vunpack.c.l.b16 %v420
        %v1067 = vunpack.c.h.b16 %v420
        %v1068 = vunpack.c.l.b16 %v421
        %v1069 = vunpack.c.h.b16 %v421
        %v1070 = vunpack.c.l.b16 %v422
        %v1071 = vunpack.c.h.b16 %v422
        %v1072 = vunpack.c.l.b16 %v423
        %v1073 = vunpack.c.h.b16 %v423
        %v1074 = vunpack.c.l.b16 %v424
        %v1075 = vunpack.c.h.b16 %v424
        %v1076 = vunpack.c.l.b16 %v425
        %v1077 = vunpack.c.h.b16 %v425
        %v1078 = vunpack.c.l.b16 %v426
        %v1079 = vunpack.c.h.b16 %v426
        %v1080 = vunpack.c.l.b16 %v427
        %v1081 = vunpack.c.h.b16 %v427
        %v1082 = vunpack.c.l.b16 %v428
        %v1083 = vunpack.c.h.b16 %v428
        %v1084 = vunpack.c.l.b16 %v429
        %v1085 = vunpack.c.h.b16 %v429
        %v1086 = vunpack.c.l.b16 %v430
        %v1087 = vunpack.c.h.b16 %v430
        %v1088 = vunpack.c.l.b16 %v431
        %v1089 = vunpack.c.h.b16 %v431
        %v1090 = vunpack.c.l.b16 %v432
        %v1091 = vunpack.c.h.b16 %v432
        %v1092 = vunpack.c.l.b16 %v433
        %v1093 = vunpack.c.h.b16 %v433
        %v1094 = vunpack.c.l.b16 %v434
        %v1095 = vunpack.c.h.b16 %v434
        %v1096 = vunpack.c.l.b16 %v435
        %v1097 = vunpack.c.h.b16 %v435
        %v1098 = vunpack.c.l.b16 %v436
        %v1099 = vunpack.c.h.b16 %v436
        %v1100 = vunpack.c.l.b16 %v437
        %v1101 = vunpack.c.h.b16 %v437
        %v1102 = vunpack.c.l.b16 %v438
        %v1103 = vunpack.c.h.b16 %v438
        %v1104 = vunpack.c.l.b16 %v439
        %v1105 = vunpack.c.h.b16 %v439
        %v1106 = vunpack.c.l.b16 %v440
        %v1107 = vunpack.c.h.b16 %v440
        %v1108 = vunpack.c.l.b16 %v441
        %v1109 = vunpack.c.h.b16 %v441
        %v1110 = vunpack.c.l.b16 %v442
        %v1111 = vunpack.c.h.b16 %v442
        %v1112 = vunpack.c.l.b16 %v443
        %v1113 = vunpack.c.h.b16 %v443
        %v1114 = vunpack.c.l.b16 %v444
        %v1115 = vunpack.c.h.b16 %v444
        %v1116 = vunpack.c.l.b16 %v445
        %v1117 = vunpack.c.h.b16 %v445
        %v1118 = vunpack.c.l.b16 %v446
        %v1119 = vunpack.c.h.b16 %v446
        %v1120 = vunpack.c.l.b16 %v447
        %v1121 = vunpack.c.h.b16 %v447
        %v1122 = vunpack.c.l.b16 %v448
        %v1123 = vunpack.c.h.b16 %v448
        %v1124 = vunpack.c.l.b16 %v449
        %v1125 = vunpack.c.h.b16 %v449
        %v1126 = vunpack.c.l.b16 %v450
        %v1127 = vunpack.c.h.b16 %v450
        %v1128 = vunpack.c.l.b16 %v451
        %v1129 = vunpack.c.h.b16 %v451
        %v1130 = vunpack.c.l.b16 %v452
        %v1131 = vunpack.c.h.b16 %v452
        %v1132 = vunpack.c.l.b16 %v453
        %v1133 = vunpack.c.h.b16 %v453
        %v1134 = vunpack.c.l.b16 %v454
        %v1135 = vunpack.c.h.b16 %v454
        %v1136 = vunpack.c.l.b16 %v455
        %v1137 = vunpack.c.h.b16 %v455
        %v1138 = vunpack.c.l.b16 %v456
        %v1139 = vunpack.c.h.b16 %v456
        %v1140 = vunpack.c.l.b16 %v457
        %v1141 = vunpack.c.h.b16 %v457
        %v1142 = vunpack.c.l.b16 %v458
        %v1143 = vunpack.c.h.b16 %v458
        %v1144 = vunpack.c.l.b16 %v459
        %v1145 = vunpack.c.h.b16 %v459
        %v1146 = vunpack.c.l.b16 %v460
        %v1147 = vunpack.c.h.b16 %v460
        %v1148 = vunpack.c.l.b16 %v461
        %v1149 = vunpack.c.h.b16 %v461
        %v1150 = vunpack.c.l.b16 %v462
        %v1151 = vunpack.c.h.b16 %v462
        %v1152 = vunpack.c.l.b16 %v463
        %v1153 = vunpack.c.h.b16 %v463
        %v1154 = vunpack.c.l.b16 %v464
        %v1155 = vunpack.c.h.b16 %v464
        %v1156 = vunpack.c.l.b16 %v465
        %v1157 = vunpack.c.h.b16 %v465
        %v1158 = vunpack.c.l.b16 %v466
        %v1159 = vunpack.c.h.b16 %v466
        %v1160 = vunpack.c.l.b16 %v467
        %v1161 = vunpack.c.h.b16 %v467
        %v1162 = vunpack.c.l.b16 %v468
        %v1163 = vunpack.c.h.b16 %v468
        %v1164 = vunpack.c.l.b16 %v469
        %v1165 = vunpack.c.h.b16 %v469
        %v1166 = vunpack.c.l.b16 %v470
        %v1167 = vunpack.c.h.b16 %v470
        %v1168 = vunpack.c.l.b16 %v471
        %v1169 = vunpack.c.h.b16 %v471
        %v1170 = vunpack.c.l.b16 %v472
        %v1171 = vunpack.c.h.b16 %v472
        %v1172 = vunpack.c.l.b16 %v473
        %v1173 = vunpack.c.h.b16 %v473
        %v1174 = vunpack.c.l.b16 %v474
        %v1175 = vunpack.c.h.b16 %v474
        %v1176 = vunpack.c.l.b16 %v475
        %v1177 = vunpack.c.h.b16 %v475
        %v1178 = vunpack.c.l.b16 %v476
        %v1179 = vunpack.c.h.b16 %v476
        %v1180 = vunpack.c.l.b16 %v477
        %v1181 = vunpack.c.h.b16 %v477
        %v1182 = vunpack.c.l.b16 %v478
        %v1183 = vunpack.c.h.b16 %v478
        %v1184 = vunpack.c.l.b16 %v479
        %v1185 = vunpack.c.h.b16 %v479
        %v1186 = vpack.c.b16 %v1062, %v1058
        %v1187 = vpack.c.b16 %v1063, %v1059
        %v1188 = vpack.c.b16 %v1064, %v1060
        %v1189 = vpack.c.b16 %v1065, %v1061
        %v1190 = vpack.c.b16 %v1070, %v1066
        %v1191 = vpack.c.b16 %v1071, %v1067
        %v1192 = vpack.c.b16 %v1072, %v1068
        %v1193 = vpack.c.b16 %v1073, %v1069
        %v1194 = vpack.c.b16 %v1078, %v1074
        %v1195 = vpack.c.b16 %v1079, %v1075
        %v1196 = vpack.c.b16 %v1080, %v1076
        %v1197 = vpack.c.b16 %v1081, %v1077
        %v1198 = vpack.c.b16 %v1086, %v1082
        %v1199 = vpack.c.b16 %v1087, %v1083
        %v1200 = vpack.c.b16 %v1088, %v1084
        %v1201 = vpack.c.b16 %v1089, %v1085
        %v1202 = vpack.c.b16 %v1094, %v1090
        %v1203 = vpack.c.b16 %v1095, %v1091
        %v1204 = vpack.c.b16 %v1096, %v1092
        %v1205 = vpack.c.b16 %v1097, %v1093
        %v1206 = vpack.c.b16 %v1102, %v1098
        %v1207 = vpack.c.b16 %v1103, %v1099
        %v1208 = vpack.c.b16 %v1104, %v1100
        %v1209 = vpack.c.b16 %v1105, %v1101
        %v1210 = vpack.c.b16 %v1110, %v1106
        %v1211 = vpack.c.b16 %v1111, %v1107
        %v1212 = vpack.c.b16 %v1112, %v1108
        %v1213 = vpack.c.b16 %v1113, %v1109
        %v1214 = vpack.c.b16 %v1118, %v1114
        %v1215 = vpack.c.b16 %v1119, %v1115
        %v1216 = vpack.c.b16 %v1120, %v1116
        %v1217 = vpack.c.b16 %v1121, %v1117
        %v1218 = vpack.c.b16 %v1126, %v1122
        %v1219 = vpack.c.b16 %v1127, %v1123
        %v1220 = vpack.c.b16 %v1128, %v1124
        %v1221 = vpack.c.b16 %v1129, %v1125
        %v1222 = vpack.c.b16 %v1134, %v1130
        %v1223 = vpack.c.b16 %v1135, %v1131
        %v1224 = vpack.c.b16 %v1136, %v1132
        %v1225 = vpack.c.b16 %v1137, %v1133
        %v1226 = vpack.c.b16 %v1142, %v1138
        %v1227 = vpack.c.b16 %v1143, %v1139
        %v1228 = vpack.c.b16 %v1144, %v1140
        %v1229 = vpack.c.b16 %v1145, %v1141
        %v1230 = vpack.c.b16 %v1150, %v1146
        %v1231 = vpack.c.b16 %v1151, %v1147
        %v1232 = vpack.c.b16 %v1152, %v1148
        %v1233 = vpack.c.b16 %v1153, %v1149
        %v1234 = vpack.c.b16 %v1158, %v1154
        %v1235 = vpack.c.b16 %v1159, %v1155
        %v1236 = vpack.c.b16 %v1160, %v1156
        %v1237 = vpack.c.b16 %v1161, %v1157
        %v1238 = vpack.c.b16 %v1166, %v1162
        %v1239 = vpack.c.b16 %v1167, %v1163
        %v1240 = vpack.c.b16 %v1168, %v1164
        %v1241 = vpack.c.b16 %v1169, %v1165
        %v1242 = vpack.c.b16 %v1174, %v1170
        %v1243 = vpack.c.b16 %v1175, %v1171
        %v1244 = vpack.c.b16 %v1176, %v1172
        %v1245 = vpack.c.b16 %v1177, %v1173
        %v1246 = vpack.c.b16 %v1182, %v1178
        %v1247 = vpack.c.b16 %v1183, %v1179
        %v1248 = vpack.c.b16 %v1184, %v1180
        %v1249 = vpack.c.b16 %v1185, %v1181
        %1314 = vmatpush.bf16.msra.mxu0 %v1214
        %1315 = vmatpush.bf16.msra.mxu0 %v1210
        %1316 = vmatpush.bf16.msra.mxu0 %v1206
        %1317 = vmatpush.bf16.msra.mxu0 %v1202
        %1318 = vmatpush.bf16.msra.mxu0 %v1198
        %1319 = vmatpush.bf16.msra.mxu0 %v1194
        %1320 = vmatpush.bf16.msra.mxu0 %v1190
        %1321 = vmatpush.bf16.msra.mxu0 %v1186
        %1322 = vmatmul.bf16.gmra.mxu0 %v414
        %v1323 = vpop.f32.mrf.mxu0
        %v1324 = vadd.f32 %v906, %v1323
        %v1325 = vpop.f32.mrf.mxu0
        %v1326 = vadd.f32 %v908, %v1325
        %1327 = vdwg.mxu0
        %1328 = vmatpush.bf16.msra.mxu0 %v1246
        %1329 = vmatpush.bf16.msra.mxu0 %v1242
        %1330 = vmatpush.bf16.msra.mxu0 %v1238
        %1331 = vmatpush.bf16.msra.mxu0 %v1234
        %1332 = vmatpush.bf16.msra.mxu0 %v1230
        %1333 = vmatpush.bf16.msra.mxu0 %v1226
        %1334 = vmatpush.bf16.msra.mxu0 %v1222
        %1335 = vmatpush.bf16.msra.mxu0 %v1218
        %1336 = vmatmul.bf16.gmra.mxu0 %v415
        %v1337 = vpop.f32.mrf.mxu0
        %v1338 = vadd.f32 %v1324, %v1337
        %v1339 = vpop.f32.mrf.mxu0
        %v1340 = vadd.f32 %v1326, %v1339
        %1341 = vdwg.mxu0
        %1342 = vmatpush.bf16.msra.mxu0 %v1215
        %1343 = vmatpush.bf16.msra.mxu0 %v1211
        %1344 = vmatpush.bf16.msra.mxu0 %v1207
        %1345 = vmatpush.bf16.msra.mxu0 %v1203
        %1346 = vmatpush.bf16.msra.mxu0 %v1199
        %1347 = vmatpush.bf16.msra.mxu0 %v1195
        %1348 = vmatpush.bf16.msra.mxu0 %v1191
        %1349 = vmatpush.bf16.msra.mxu0 %v1187
        %1350 = vmatmul.bf16.gmra.mxu0 %v414
        %v1351 = vpop.f32.mrf.mxu0
        %v1352 = vadd.f32 %v934, %v1351
        %v1353 = vpop.f32.mrf.mxu0
        %v1354 = vadd.f32 %v936, %v1353
        %1355 = vdwg.mxu0
        %1356 = vmatpush.bf16.msra.mxu0 %v1247
        %1357 = vmatpush.bf16.msra.mxu0 %v1243
        %1358 = vmatpush.bf16.msra.mxu0 %v1239
        %1359 = vmatpush.bf16.msra.mxu0 %v1235
        %1360 = vmatpush.bf16.msra.mxu0 %v1231
        %1361 = vmatpush.bf16.msra.mxu0 %v1227
        %1362 = vmatpush.bf16.msra.mxu0 %v1223
        %1363 = vmatpush.bf16.msra.mxu0 %v1219
        %1364 = vmatmul.bf16.gmra.mxu0 %v415
        %v1365 = vpop.f32.mrf.mxu0
        %v1366 = vadd.f32 %v1352, %v1365
        %v1367 = vpop.f32.mrf.mxu0
        %v1368 = vadd.f32 %v1354, %v1367
        %1369 = vdwg.mxu0
        %1370 = vmatpush.bf16.msra.mxu0 %v1216
        %1371 = vmatpush.bf16.msra.mxu0 %v1212
        %1372 = vmatpush.bf16.msra.mxu0 %v1208
        %1373 = vmatpush.bf16.msra.mxu0 %v1204
        %1374 = vmatpush.bf16.msra.mxu0 %v1200
        %1375 = vmatpush.bf16.msra.mxu0 %v1196
        %1376 = vmatpush.bf16.msra.mxu0 %v1192
        %1377 = vmatpush.bf16.msra.mxu0 %v1188
        %1378 = vmatmul.bf16.gmra.mxu0 %v414
        %v1379 = vpop.f32.mrf.mxu0
        %v1380 = vadd.f32 %v962, %v1379
        %v1381 = vpop.f32.mrf.mxu0
        %v1382 = vadd.f32 %v964, %v1381
        %1383 = vdwg.mxu0
        %1384 = vmatpush.bf16.msra.mxu0 %v1248
        %1385 = vmatpush.bf16.msra.mxu0 %v1244
        %1386 = vmatpush.bf16.msra.mxu0 %v1240
        %1387 = vmatpush.bf16.msra.mxu0 %v1236
        %1388 = vmatpush.bf16.msra.mxu0 %v1232
        %1389 = vmatpush.bf16.msra.mxu0 %v1228
        %1390 = vmatpush.bf16.msra.mxu0 %v1224
        %1391 = vmatpush.bf16.msra.mxu0 %v1220
        %1392 = vmatmul.bf16.gmra.mxu0 %v415
        %v1393 = vpop.f32.mrf.mxu0
        %v1394 = vadd.f32 %v1380, %v1393
        %v1395 = vpop.f32.mrf.mxu0
        %v1396 = vadd.f32 %v1382, %v1395
        %1397 = vdwg.mxu0
        %1398 = vmatpush.bf16.msra.mxu0 %v1217
        %1399 = vmatpush.bf16.msra.mxu0 %v1213
        %1400 = vmatpush.bf16.msra.mxu0 %v1209
        %1401 = vmatpush.bf16.msra.mxu0 %v1205
        %1402 = vmatpush.bf16.msra.mxu0 %v1201
        %1403 = vmatpush.bf16.msra.mxu0 %v1197
        %1404 = vmatpush.bf16.msra.mxu0 %v1193
        %1405 = vmatpush.bf16.msra.mxu0 %v1189
        %1406 = vmatmul.bf16.gmra.mxu0 %v414
        %v1407 = vpop.f32.mrf.mxu0
        %v1408 = vadd.f32 %v990, %v1407
        %v1409 = vpop.f32.mrf.mxu0
        %v1410 = vadd.f32 %v992, %v1409
        %1411 = vdwg.mxu0
        %1412 = vmatpush.bf16.msra.mxu0 %v1249
        %1413 = vmatpush.bf16.msra.mxu0 %v1245
        %1414 = vmatpush.bf16.msra.mxu0 %v1241
        %1415 = vmatpush.bf16.msra.mxu0 %v1237
        %1416 = vmatpush.bf16.msra.mxu0 %v1233
        %1417 = vmatpush.bf16.msra.mxu0 %v1229
        %1418 = vmatpush.bf16.msra.mxu0 %v1225
        %1419 = vmatpush.bf16.msra.mxu0 %v1221
        %1420 = vmatmul.bf16.gmra.mxu0 %v415
        %v1421 = vpop.f32.mrf.mxu0
        %v1422 = vadd.f32 %v1408, %v1421
        %v1423 = vpop.f32.mrf.mxu0
        %v1424 = vadd.f32 %v1410, %v1423
        %1425 = vdwg.mxu0
        %s1426 = scalar_lea.vmem [#allocation2], 1024
        %v1427 = vld [vmem:[%s1426] sm:$0xff]
        %v1428 = vld [vmem:[%s1426 + $0x8] sm:$0xff]
        %v1429 = vld [vmem:[%s1426 + $0x10] sm:$0xff]
        %v1430 = vld [vmem:[%s1426 + $0x18] sm:$0xff]
        %v1431 = vld [vmem:[%s1426 + $0x20] sm:$0xff]
        %v1432 = vld [vmem:[%s1426 + $0x28] sm:$0xff]
        %v1433 = vld [vmem:[%s1426 + $0x30] sm:$0xff]
        %v1434 = vld [vmem:[%s1426 + $0x38] sm:$0xff]
        %v1435 = vld [vmem:[%s1426 + $0x40] sm:$0xff]
        %v1436 = vld [vmem:[%s1426 + $0x48] sm:$0xff]
        %v1437 = vld [vmem:[%s1426 + $0x50] sm:$0xff]
        %v1438 = vld [vmem:[%s1426 + $0x58] sm:$0xff]
        %v1439 = vld [vmem:[%s1426 + $0x60] sm:$0xff]
        %v1440 = vld [vmem:[%s1426 + $0x68] sm:$0xff]
        %v1441 = vld [vmem:[%s1426 + $0x70] sm:$0xff]
        %v1442 = vld [vmem:[%s1426 + $0x78] sm:$0xff]
        %v1443 = vld [vmem:[%s1426 + $0x80] sm:$0xff]
        %v1444 = vld [vmem:[%s1426 + $0x88] sm:$0xff]
        %v1445 = vld [vmem:[%s1426 + $0x90] sm:$0xff]
        %v1446 = vld [vmem:[%s1426 + $0x98] sm:$0xff]
        %v1447 = vld [vmem:[%s1426 + $0xa0] sm:$0xff]
        %v1448 = vld [vmem:[%s1426 + $0xa8] sm:$0xff]
        %v1449 = vld [vmem:[%s1426 + $0xb0] sm:$0xff]
        %v1450 = vld [vmem:[%s1426 + $0xb8] sm:$0xff]
        %v1451 = vld [vmem:[%s1426 + $0xc0] sm:$0xff]
        %v1452 = vld [vmem:[%s1426 + $0xc8] sm:$0xff]
        %v1453 = vld [vmem:[%s1426 + $0xd0] sm:$0xff]
        %v1454 = vld [vmem:[%s1426 + $0xd8] sm:$0xff]
        %v1455 = vld [vmem:[%s1426 + $0xe0] sm:$0xff]
        %v1456 = vld [vmem:[%s1426 + $0xe8] sm:$0xff]
        %v1457 = vld [vmem:[%s1426 + $0xf0] sm:$0xff]
        %v1458 = vld [vmem:[%s1426 + $0xf8] sm:$0xff]
        %v1459 = vld [vmem:[%s1426 + $0x100] sm:$0xff]
        %v1460 = vld [vmem:[%s1426 + $0x108] sm:$0xff]
        %v1461 = vld [vmem:[%s1426 + $0x110] sm:$0xff]
        %v1462 = vld [vmem:[%s1426 + $0x118] sm:$0xff]
        %v1463 = vld [vmem:[%s1426 + $0x120] sm:$0xff]
        %v1464 = vld [vmem:[%s1426 + $0x128] sm:$0xff]
        %v1465 = vld [vmem:[%s1426 + $0x130] sm:$0xff]
        %v1466 = vld [vmem:[%s1426 + $0x138] sm:$0xff]
        %v1467 = vld [vmem:[%s1426 + $0x140] sm:$0xff]
        %v1468 = vld [vmem:[%s1426 + $0x148] sm:$0xff]
        %v1469 = vld [vmem:[%s1426 + $0x150] sm:$0xff]
        %v1470 = vld [vmem:[%s1426 + $0x158] sm:$0xff]
        %v1471 = vld [vmem:[%s1426 + $0x160] sm:$0xff]
        %v1472 = vld [vmem:[%s1426 + $0x168] sm:$0xff]
        %v1473 = vld [vmem:[%s1426 + $0x170] sm:$0xff]
        %v1474 = vld [vmem:[%s1426 + $0x178] sm:$0xff]
        %v1475 = vld [vmem:[%s1426 + $0x180] sm:$0xff]
        %v1476 = vld [vmem:[%s1426 + $0x188] sm:$0xff]
        %v1477 = vld [vmem:[%s1426 + $0x190] sm:$0xff]
        %v1478 = vld [vmem:[%s1426 + $0x198] sm:$0xff]
        %v1479 = vld [vmem:[%s1426 + $0x1a0] sm:$0xff]
        %v1480 = vld [vmem:[%s1426 + $0x1a8] sm:$0xff]
        %v1481 = vld [vmem:[%s1426 + $0x1b0] sm:$0xff]
        %v1482 = vld [vmem:[%s1426 + $0x1b8] sm:$0xff]
        %v1483 = vld [vmem:[%s1426 + $0x1c0] sm:$0xff]
        %v1484 = vld [vmem:[%s1426 + $0x1c8] sm:$0xff]
        %v1485 = vld [vmem:[%s1426 + $0x1d0] sm:$0xff]
        %v1486 = vld [vmem:[%s1426 + $0x1d8] sm:$0xff]
        %v1487 = vld [vmem:[%s1426 + $0x1e0] sm:$0xff]
        %v1488 = vld [vmem:[%s1426 + $0x1e8] sm:$0xff]
        %v1489 = vld [vmem:[%s1426 + $0x1f0] sm:$0xff]
        %v1490 = vld [vmem:[%s1426 + $0x1f8] sm:$0xff]
        %v1555 = vunpack.c.l.b16 %v1427
        %v1556 = vunpack.c.h.b16 %v1427
        %v1557 = vunpack.c.l.b16 %v1428
        %v1558 = vunpack.c.h.b16 %v1428
        %v1559 = vunpack.c.l.b16 %v1429
        %v1560 = vunpack.c.h.b16 %v1429
        %v1561 = vunpack.c.l.b16 %v1430
        %v1562 = vunpack.c.h.b16 %v1430
        %v1563 = vunpack.c.l.b16 %v1431
        %v1564 = vunpack.c.h.b16 %v1431
        %v1565 = vunpack.c.l.b16 %v1432
        %v1566 = vunpack.c.h.b16 %v1432
        %v1567 = vunpack.c.l.b16 %v1433
        %v1568 = vunpack.c.h.b16 %v1433
        %v1569 = vunpack.c.l.b16 %v1434
        %v1570 = vunpack.c.h.b16 %v1434
        %v1571 = vunpack.c.l.b16 %v1435
        %v1572 = vunpack.c.h.b16 %v1435
        %v1573 = vunpack.c.l.b16 %v1436
        %v1574 = vunpack.c.h.b16 %v1436
        %v1575 = vunpack.c.l.b16 %v1437
        %v1576 = vunpack.c.h.b16 %v1437
        %v1577 = vunpack.c.l.b16 %v1438
        %v1578 = vunpack.c.h.b16 %v1438
        %v1579 = vunpack.c.l.b16 %v1439
        %v1580 = vunpack.c.h.b16 %v1439
        %v1581 = vunpack.c.l.b16 %v1440
        %v1582 = vunpack.c.h.b16 %v1440
        %v1583 = vunpack.c.l.b16 %v1441
        %v1584 = vunpack.c.h.b16 %v1441
        %v1585 = vunpack.c.l.b16 %v1442
        %v1586 = vunpack.c.h.b16 %v1442
        %v1587 = vunpack.c.l.b16 %v1443
        %v1588 = vunpack.c.h.b16 %v1443
        %v1589 = vunpack.c.l.b16 %v1444
        %v1590 = vunpack.c.h.b16 %v1444
        %v1591 = vunpack.c.l.b16 %v1445
        %v1592 = vunpack.c.h.b16 %v1445
        %v1593 = vunpack.c.l.b16 %v1446
        %v1594 = vunpack.c.h.b16 %v1446
        %v1595 = vunpack.c.l.b16 %v1447
        %v1596 = vunpack.c.h.b16 %v1447
        %v1597 = vunpack.c.l.b16 %v1448
        %v1598 = vunpack.c.h.b16 %v1448
        %v1599 = vunpack.c.l.b16 %v1449
        %v1600 = vunpack.c.h.b16 %v1449
        %v1601 = vunpack.c.l.b16 %v1450
        %v1602 = vunpack.c.h.b16 %v1450
        %v1603 = vunpack.c.l.b16 %v1451
        %v1604 = vunpack.c.h.b16 %v1451
        %v1605 = vunpack.c.l.b16 %v1452
        %v1606 = vunpack.c.h.b16 %v1452
        %v1607 = vunpack.c.l.b16 %v1453
        %v1608 = vunpack.c.h.b16 %v1453
        %v1609 = vunpack.c.l.b16 %v1454
        %v1610 = vunpack.c.h.b16 %v1454
        %v1611 = vunpack.c.l.b16 %v1455
        %v1612 = vunpack.c.h.b16 %v1455
        %v1613 = vunpack.c.l.b16 %v1456
        %v1614 = vunpack.c.h.b16 %v1456
        %v1615 = vunpack.c.l.b16 %v1457
        %v1616 = vunpack.c.h.b16 %v1457
        %v1617 = vunpack.c.l.b16 %v1458
        %v1618 = vunpack.c.h.b16 %v1458
        %v1619 = vunpack.c.l.b16 %v1459
        %v1620 = vunpack.c.h.b16 %v1459
        %v1621 = vunpack.c.l.b16 %v1460
        %v1622 = vunpack.c.h.b16 %v1460
        %v1623 = vunpack.c.l.b16 %v1461
        %v1624 = vunpack.c.h.b16 %v1461
        %v1625 = vunpack.c.l.b16 %v1462
        %v1626 = vunpack.c.h.b16 %v1462
        %v1627 = vunpack.c.l.b16 %v1463
        %v1628 = vunpack.c.h.b16 %v1463
        %v1629 = vunpack.c.l.b16 %v1464
        %v1630 = vunpack.c.h.b16 %v1464
        %v1631 = vunpack.c.l.b16 %v1465
        %v1632 = vunpack.c.h.b16 %v1465
        %v1633 = vunpack.c.l.b16 %v1466
        %v1634 = vunpack.c.h.b16 %v1466
        %v1635 = vunpack.c.l.b16 %v1467
        %v1636 = vunpack.c.h.b16 %v1467
        %v1637 = vunpack.c.l.b16 %v1468
        %v1638 = vunpack.c.h.b16 %v1468
        %v1639 = vunpack.c.l.b16 %v1469
        %v1640 = vunpack.c.h.b16 %v1469
        %v1641 = vunpack.c.l.b16 %v1470
        %v1642 = vunpack.c.h.b16 %v1470
        %v1643 = vunpack.c.l.b16 %v1471
        %v1644 = vunpack.c.h.b16 %v1471
        %v1645 = vunpack.c.l.b16 %v1472
        %v1646 = vunpack.c.h.b16 %v1472
        %v1647 = vunpack.c.l.b16 %v1473
        %v1648 = vunpack.c.h.b16 %v1473
        %v1649 = vunpack.c.l.b16 %v1474
        %v1650 = vunpack.c.h.b16 %v1474
        %v1651 = vunpack.c.l.b16 %v1475
        %v1652 = vunpack.c.h.b16 %v1475
        %v1653 = vunpack.c.l.b16 %v1476
        %v1654 = vunpack.c.h.b16 %v1476
        %v1655 = vunpack.c.l.b16 %v1477
        %v1656 = vunpack.c.h.b16 %v1477
        %v1657 = vunpack.c.l.b16 %v1478
        %v1658 = vunpack.c.h.b16 %v1478
        %v1659 = vunpack.c.l.b16 %v1479
        %v1660 = vunpack.c.h.b16 %v1479
        %v1661 = vunpack.c.l.b16 %v1480
        %v1662 = vunpack.c.h.b16 %v1480
        %v1663 = vunpack.c.l.b16 %v1481
        %v1664 = vunpack.c.h.b16 %v1481
        %v1665 = vunpack.c.l.b16 %v1482
        %v1666 = vunpack.c.h.b16 %v1482
        %v1667 = vunpack.c.l.b16 %v1483
        %v1668 = vunpack.c.h.b16 %v1483
        %v1669 = vunpack.c.l.b16 %v1484
        %v1670 = vunpack.c.h.b16 %v1484
        %v1671 = vunpack.c.l.b16 %v1485
        %v1672 = vunpack.c.h.b16 %v1485
        %v1673 = vunpack.c.l.b16 %v1486
        %v1674 = vunpack.c.h.b16 %v1486
        %v1675 = vunpack.c.l.b16 %v1487
        %v1676 = vunpack.c.h.b16 %v1487
        %v1677 = vunpack.c.l.b16 %v1488
        %v1678 = vunpack.c.h.b16 %v1488
        %v1679 = vunpack.c.l.b16 %v1489
        %v1680 = vunpack.c.h.b16 %v1489
        %v1681 = vunpack.c.l.b16 %v1490
        %v1682 = vunpack.c.h.b16 %v1490
        %v1683 = vpack.c.b16 %v1559, %v1555
        %v1684 = vpack.c.b16 %v1560, %v1556
        %v1685 = vpack.c.b16 %v1561, %v1557
        %v1686 = vpack.c.b16 %v1562, %v1558
        %v1687 = vpack.c.b16 %v1567, %v1563
        %v1688 = vpack.c.b16 %v1568, %v1564
        %v1689 = vpack.c.b16 %v1569, %v1565
        %v1690 = vpack.c.b16 %v1570, %v1566
        %v1691 = vpack.c.b16 %v1575, %v1571
        %v1692 = vpack.c.b16 %v1576, %v1572
        %v1693 = vpack.c.b16 %v1577, %v1573
        %v1694 = vpack.c.b16 %v1578, %v1574
        %v1695 = vpack.c.b16 %v1583, %v1579
        %v1696 = vpack.c.b16 %v1584, %v1580
        %v1697 = vpack.c.b16 %v1585, %v1581
        %v1698 = vpack.c.b16 %v1586, %v1582
        %v1699 = vpack.c.b16 %v1591, %v1587
        %v1700 = vpack.c.b16 %v1592, %v1588
        %v1701 = vpack.c.b16 %v1593, %v1589
        %v1702 = vpack.c.b16 %v1594, %v1590
        %v1703 = vpack.c.b16 %v1599, %v1595
        %v1704 = vpack.c.b16 %v1600, %v1596
        %v1705 = vpack.c.b16 %v1601, %v1597
        %v1706 = vpack.c.b16 %v1602, %v1598
        %v1707 = vpack.c.b16 %v1607, %v1603
        %v1708 = vpack.c.b16 %v1608, %v1604
        %v1709 = vpack.c.b16 %v1609, %v1605
        %v1710 = vpack.c.b16 %v1610, %v1606
        %v1711 = vpack.c.b16 %v1615, %v1611
        %v1712 = vpack.c.b16 %v1616, %v1612
        %v1713 = vpack.c.b16 %v1617, %v1613
        %v1714 = vpack.c.b16 %v1618, %v1614
        %v1715 = vpack.c.b16 %v1623, %v1619
        %v1716 = vpack.c.b16 %v1624, %v1620
        %v1717 = vpack.c.b16 %v1625, %v1621
        %v1718 = vpack.c.b16 %v1626, %v1622
        %v1719 = vpack.c.b16 %v1631, %v1627
        %v1720 = vpack.c.b16 %v1632, %v1628
        %v1721 = vpack.c.b16 %v1633, %v1629
        %v1722 = vpack.c.b16 %v1634, %v1630
        %v1723 = vpack.c.b16 %v1639, %v1635
        %v1724 = vpack.c.b16 %v1640, %v1636
        %v1725 = vpack.c.b16 %v1641, %v1637
        %v1726 = vpack.c.b16 %v1642, %v1638
        %v1727 = vpack.c.b16 %v1647, %v1643
        %v1728 = vpack.c.b16 %v1648, %v1644
        %v1729 = vpack.c.b16 %v1649, %v1645
        %v1730 = vpack.c.b16 %v1650, %v1646
        %v1731 = vpack.c.b16 %v1655, %v1651
        %v1732 = vpack.c.b16 %v1656, %v1652
        %v1733 = vpack.c.b16 %v1657, %v1653
        %v1734 = vpack.c.b16 %v1658, %v1654
        %v1735 = vpack.c.b16 %v1663, %v1659
        %v1736 = vpack.c.b16 %v1664, %v1660
        %v1737 = vpack.c.b16 %v1665, %v1661
        %v1738 = vpack.c.b16 %v1666, %v1662
        %v1739 = vpack.c.b16 %v1671, %v1667
        %v1740 = vpack.c.b16 %v1672, %v1668
        %v1741 = vpack.c.b16 %v1673, %v1669
        %v1742 = vpack.c.b16 %v1674, %v1670
        %v1743 = vpack.c.b16 %v1679, %v1675
        %v1744 = vpack.c.b16 %v1680, %v1676
        %v1745 = vpack.c.b16 %v1681, %v1677
        %v1746 = vpack.c.b16 %v1682, %v1678
        %1811 = vmatpush.bf16.msra.mxu0 %v1711
        %1812 = vmatpush.bf16.msra.mxu0 %v1707
        %1813 = vmatpush.bf16.msra.mxu0 %v1703
        %1814 = vmatpush.bf16.msra.mxu0 %v1699
        %1815 = vmatpush.bf16.msra.mxu0 %v1695
        %1816 = vmatpush.bf16.msra.mxu0 %v1691
        %1817 = vmatpush.bf16.msra.mxu0 %v1687
        %1818 = vmatpush.bf16.msra.mxu0 %v1683
        %1819 = vmatmul.bf16.gmra.mxu0 %v403
        %v1820 = vpop.f32.mrf.mxu0
        %v1821 = vadd.f32 0.0, %v1820
        %v1822 = vpop.f32.mrf.mxu0
        %v1823 = vadd.f32 0.0, %v1822
        %1824 = vdwg.mxu0
        %1825 = vmatpush.bf16.msra.mxu0 %v1743
        %1826 = vmatpush.bf16.msra.mxu0 %v1739
        %1827 = vmatpush.bf16.msra.mxu0 %v1735
        %1828 = vmatpush.bf16.msra.mxu0 %v1731
        %1829 = vmatpush.bf16.msra.mxu0 %v1727
        %1830 = vmatpush.bf16.msra.mxu0 %v1723
        %1831 = vmatpush.bf16.msra.mxu0 %v1719
        %1832 = vmatpush.bf16.msra.mxu0 %v1715
        %1833 = vmatmul.bf16.gmra.mxu0 %v404
        %v1834 = vpop.f32.mrf.mxu0
        %v1835 = vadd.f32 %v1821, %v1834
        %v1836 = vpop.f32.mrf.mxu0
        %v1837 = vadd.f32 %v1823, %v1836
        %1838 = vdwg.mxu0
        %1839 = vmatpush.bf16.msra.mxu0 %v1712
        %1840 = vmatpush.bf16.msra.mxu0 %v1708
        %1841 = vmatpush.bf16.msra.mxu0 %v1704
        %1842 = vmatpush.bf16.msra.mxu0 %v1700
        %1843 = vmatpush.bf16.msra.mxu0 %v1696
        %1844 = vmatpush.bf16.msra.mxu0 %v1692
        %1845 = vmatpush.bf16.msra.mxu0 %v1688
        %1846 = vmatpush.bf16.msra.mxu0 %v1684
        %1847 = vmatmul.bf16.gmra.mxu0 %v403
        %v1848 = vpop.f32.mrf.mxu0
        %v1849 = vadd.f32 0.0, %v1848
        %v1850 = vpop.f32.mrf.mxu0
        %v1851 = vadd.f32 0.0, %v1850
        %1852 = vdwg.mxu0
        %1853 = vmatpush.bf16.msra.mxu0 %v1744
        %1854 = vmatpush.bf16.msra.mxu0 %v1740
        %1855 = vmatpush.bf16.msra.mxu0 %v1736
        %1856 = vmatpush.bf16.msra.mxu0 %v1732
        %1857 = vmatpush.bf16.msra.mxu0 %v1728
        %1858 = vmatpush.bf16.msra.mxu0 %v1724
        %1859 = vmatpush.bf16.msra.mxu0 %v1720
        %1860 = vmatpush.bf16.msra.mxu0 %v1716
        %1861 = vmatmul.bf16.gmra.mxu0 %v404
        %v1862 = vpop.f32.mrf.mxu0
        %v1863 = vadd.f32 %v1849, %v1862
        %v1864 = vpop.f32.mrf.mxu0
        %v1865 = vadd.f32 %v1851, %v1864
        %1866 = vdwg.mxu0
        %1867 = vmatpush.bf16.msra.mxu0 %v1713
        %1868 = vmatpush.bf16.msra.mxu0 %v1709
        %1869 = vmatpush.bf16.msra.mxu0 %v1705
        %1870 = vmatpush.bf16.msra.mxu0 %v1701
        %1871 = vmatpush.bf16.msra.mxu0 %v1697
        %1872 = vmatpush.bf16.msra.mxu0 %v1693
        %1873 = vmatpush.bf16.msra.mxu0 %v1689
        %1874 = vmatpush.bf16.msra.mxu0 %v1685
        %1875 = vmatmul.bf16.gmra.mxu0 %v403
        %v1876 = vpop.f32.mrf.mxu0
        %v1877 = vadd.f32 0.0, %v1876
        %v1878 = vpop.f32.mrf.mxu0
        %v1879 = vadd.f32 0.0, %v1878
        %1880 = vdwg.mxu0
        %1881 = vmatpush.bf16.msra.mxu0 %v1745
        %1882 = vmatpush.bf16.msra.mxu0 %v1741
        %1883 = vmatpush.bf16.msra.mxu0 %v1737
        %1884 = vmatpush.bf16.msra.mxu0 %v1733
        %1885 = vmatpush.bf16.msra.mxu0 %v1729
        %1886 = vmatpush.bf16.msra.mxu0 %v1725
        %1887 = vmatpush.bf16.msra.mxu0 %v1721
        %1888 = vmatpush.bf16.msra.mxu0 %v1717
        %1889 = vmatmul.bf16.gmra.mxu0 %v404
        %v1890 = vpop.f32.mrf.mxu0
        %v1891 = vadd.f32 %v1877, %v1890
        %v1892 = vpop.f32.mrf.mxu0
        %v1893 = vadd.f32 %v1879, %v1892
        %1894 = vdwg.mxu0
        %1895 = vmatpush.bf16.msra.mxu0 %v1714
        %1896 = vmatpush.bf16.msra.mxu0 %v1710
        %1897 = vmatpush.bf16.msra.mxu0 %v1706
        %1898 = vmatpush.bf16.msra.mxu0 %v1702
        %1899 = vmatpush.bf16.msra.mxu0 %v1698
        %1900 = vmatpush.bf16.msra.mxu0 %v1694
        %1901 = vmatpush.bf16.msra.mxu0 %v1690
        %1902 = vmatpush.bf16.msra.mxu0 %v1686
        %1903 = vmatmul.bf16.gmra.mxu0 %v403
        %v1904 = vpop.f32.mrf.mxu0
        %v1905 = vadd.f32 0.0, %v1904
        %v1906 = vpop.f32.mrf.mxu0
        %v1907 = vadd.f32 0.0, %v1906
        %1908 = vdwg.mxu0
        %1909 = vmatpush.bf16.msra.mxu0 %v1746
        %1910 = vmatpush.bf16.msra.mxu0 %v1742
        %1911 = vmatpush.bf16.msra.mxu0 %v1738
        %1912 = vmatpush.bf16.msra.mxu0 %v1734
        %1913 = vmatpush.bf16.msra.mxu0 %v1730
        %1914 = vmatpush.bf16.msra.mxu0 %v1726
        %1915 = vmatpush.bf16.msra.mxu0 %v1722
        %1916 = vmatpush.bf16.msra.mxu0 %v1718
        %1917 = vmatmul.bf16.gmra.mxu0 %v404
        %v1918 = vpop.f32.mrf.mxu0
        %v1919 = vadd.f32 %v1905, %v1918
        %v1920 = vpop.f32.mrf.mxu0
        %v1921 = vadd.f32 %v1907, %v1920
        %1922 = vdwg.mxu0
        %v1923 = vadd.f32 %v1338, %v1835
        %v1924 = vadd.f32 %v1366, %v1863
        %v1925 = vadd.f32 %v1394, %v1891
        %v1926 = vadd.f32 %v1422, %v1919
        %v1927 = vadd.f32 %v1340, %v1837
        %v1928 = vadd.f32 %v1368, %v1865
        %v1929 = vadd.f32 %v1396, %v1893
        %v1930 = vadd.f32 %v1424, %v1921
        %vm1931 = vcmask 1041408
        %v1932 = vrot.slane %v399, 6
        %v1933 = vrot.slane %v401, 6
        %v1934 = vsel %vm1931, %v1932, %v1933
        %v1935 = vrot.slane %v400, 6
        %v1936 = vrot.slane %v402, 6
        %v1937 = vsel %vm1931, %v1935, %v1936
        %v1942 = vsel %vm1931, %v1933, 0.0
        %v1943 = vsel %vm1931, %v1936, 0.0
        %v1944 = vpack.c.bf16 %v1942, %v1934
        %v1945 = vpack.c.bf16 %v1943, %v1937
        %s1946 = scalar_lea.vmem [#allocation2], 1536
        %v1947 = vld [vmem:[%s1946] sm:$0xff]
        %v1948 = vld [vmem:[%s1946 + $0x8] sm:$0xff]
        %v1949 = vld [vmem:[%s1946 + $0x10] sm:$0xff]
        %v1950 = vld [vmem:[%s1946 + $0x18] sm:$0xff]
        %v1951 = vld [vmem:[%s1946 + $0x20] sm:$0xff]
        %v1952 = vld [vmem:[%s1946 + $0x28] sm:$0xff]
        %v1953 = vld [vmem:[%s1946 + $0x30] sm:$0xff]
        %v1954 = vld [vmem:[%s1946 + $0x38] sm:$0xff]
        %v1955 = vld [vmem:[%s1946 + $0x40] sm:$0xff]
        %v1956 = vld [vmem:[%s1946 + $0x48] sm:$0xff]
        %v1957 = vld [vmem:[%s1946 + $0x50] sm:$0xff]
        %v1958 = vld [vmem:[%s1946 + $0x58] sm:$0xff]
        %v1959 = vld [vmem:[%s1946 + $0x60] sm:$0xff]
        %v1960 = vld [vmem:[%s1946 + $0x68] sm:$0xff]
        %v1961 = vld [vmem:[%s1946 + $0x70] sm:$0xff]
        %v1962 = vld [vmem:[%s1946 + $0x78] sm:$0xff]
        %v1963 = vld [vmem:[%s1946 + $0x80] sm:$0xff]
        %v1964 = vld [vmem:[%s1946 + $0x88] sm:$0xff]
        %v1965 = vld [vmem:[%s1946 + $0x90] sm:$0xff]
        %v1966 = vld [vmem:[%s1946 + $0x98] sm:$0xff]
        %v1967 = vld [vmem:[%s1946 + $0xa0] sm:$0xff]
        %v1968 = vld [vmem:[%s1946 + $0xa8] sm:$0xff]
        %v1969 = vld [vmem:[%s1946 + $0xb0] sm:$0xff]
        %v1970 = vld [vmem:[%s1946 + $0xb8] sm:$0xff]
        %v1971 = vld [vmem:[%s1946 + $0xc0] sm:$0xff]
        %v1972 = vld [vmem:[%s1946 + $0xc8] sm:$0xff]
        %v1973 = vld [vmem:[%s1946 + $0xd0] sm:$0xff]
        %v1974 = vld [vmem:[%s1946 + $0xd8] sm:$0xff]
        %v1975 = vld [vmem:[%s1946 + $0xe0] sm:$0xff]
        %v1976 = vld [vmem:[%s1946 + $0xe8] sm:$0xff]
        %v1977 = vld [vmem:[%s1946 + $0xf0] sm:$0xff]
        %v1978 = vld [vmem:[%s1946 + $0xf8] sm:$0xff]
        %v1979 = vld [vmem:[%s1946 + $0x100] sm:$0xff]
        %v1980 = vld [vmem:[%s1946 + $0x108] sm:$0xff]
        %v1981 = vld [vmem:[%s1946 + $0x110] sm:$0xff]
        %v1982 = vld [vmem:[%s1946 + $0x118] sm:$0xff]
        %v1983 = vld [vmem:[%s1946 + $0x120] sm:$0xff]
        %v1984 = vld [vmem:[%s1946 + $0x128] sm:$0xff]
        %v1985 = vld [vmem:[%s1946 + $0x130] sm:$0xff]
        %v1986 = vld [vmem:[%s1946 + $0x138] sm:$0xff]
        %v1987 = vld [vmem:[%s1946 + $0x140] sm:$0xff]
        %v1988 = vld [vmem:[%s1946 + $0x148] sm:$0xff]
        %v1989 = vld [vmem:[%s1946 + $0x150] sm:$0xff]
        %v1990 = vld [vmem:[%s1946 + $0x158] sm:$0xff]
        %v1991 = vld [vmem:[%s1946 + $0x160] sm:$0xff]
        %v1992 = vld [vmem:[%s1946 + $0x168] sm:$0xff]
        %v1993 = vld [vmem:[%s1946 + $0x170] sm:$0xff]
        %v1994 = vld [vmem:[%s1946 + $0x178] sm:$0xff]
        %v1995 = vld [vmem:[%s1946 + $0x180] sm:$0xff]
        %v1996 = vld [vmem:[%s1946 + $0x188] sm:$0xff]
        %v1997 = vld [vmem:[%s1946 + $0x190] sm:$0xff]
        %v1998 = vld [vmem:[%s1946 + $0x198] sm:$0xff]
        %v1999 = vld [vmem:[%s1946 + $0x1a0] sm:$0xff]
        %v2000 = vld [vmem:[%s1946 + $0x1a8] sm:$0xff]
        %v2001 = vld [vmem:[%s1946 + $0x1b0] sm:$0xff]
        %v2002 = vld [vmem:[%s1946 + $0x1b8] sm:$0xff]
        %v2003 = vld [vmem:[%s1946 + $0x1c0] sm:$0xff]
        %v2004 = vld [vmem:[%s1946 + $0x1c8] sm:$0xff]
        %v2005 = vld [vmem:[%s1946 + $0x1d0] sm:$0xff]
        %v2006 = vld [vmem:[%s1946 + $0x1d8] sm:$0xff]
        %v2007 = vld [vmem:[%s1946 + $0x1e0] sm:$0xff]
        %v2008 = vld [vmem:[%s1946 + $0x1e8] sm:$0xff]
        %v2009 = vld [vmem:[%s1946 + $0x1f0] sm:$0xff]
        %v2010 = vld [vmem:[%s1946 + $0x1f8] sm:$0xff]
        %v2075 = vunpack.c.l.b16 %v1947
        %v2076 = vunpack.c.h.b16 %v1947
        %v2077 = vunpack.c.l.b16 %v1948
        %v2078 = vunpack.c.h.b16 %v1948
        %v2079 = vunpack.c.l.b16 %v1949
        %v2080 = vunpack.c.h.b16 %v1949
        %v2081 = vunpack.c.l.b16 %v1950
        %v2082 = vunpack.c.h.b16 %v1950
        %v2083 = vunpack.c.l.b16 %v1951
        %v2084 = vunpack.c.h.b16 %v1951
        %v2085 = vunpack.c.l.b16 %v1952
        %v2086 = vunpack.c.h.b16 %v1952
        %v2087 = vunpack.c.l.b16 %v1953
        %v2088 = vunpack.c.h.b16 %v1953
        %v2089 = vunpack.c.l.b16 %v1954
        %v2090 = vunpack.c.h.b16 %v1954
        %v2091 = vunpack.c.l.b16 %v1955
        %v2092 = vunpack.c.h.b16 %v1955
        %v2093 = vunpack.c.l.b16 %v1956
        %v2094 = vunpack.c.h.b16 %v1956
        %v2095 = vunpack.c.l.b16 %v1957
        %v2096 = vunpack.c.h.b16 %v1957
        %v2097 = vunpack.c.l.b16 %v1958
        %v2098 = vunpack.c.h.b16 %v1958
        %v2099 = vunpack.c.l.b16 %v1959
        %v2100 = vunpack.c.h.b16 %v1959
        %v2101 = vunpack.c.l.b16 %v1960
        %v2102 = vunpack.c.h.b16 %v1960
        %v2103 = vunpack.c.l.b16 %v1961
        %v2104 = vunpack.c.h.b16 %v1961
        %v2105 = vunpack.c.l.b16 %v1962
        %v2106 = vunpack.c.h.b16 %v1962
        %v2107 = vunpack.c.l.b16 %v1963
        %v2108 = vunpack.c.h.b16 %v1963
        %v2109 = vunpack.c.l.b16 %v1964
        %v2110 = vunpack.c.h.b16 %v1964
        %v2111 = vunpack.c.l.b16 %v1965
        %v2112 = vunpack.c.h.b16 %v1965
        %v2113 = vunpack.c.l.b16 %v1966
        %v2114 = vunpack.c.h.b16 %v1966
        %v2115 = vunpack.c.l.b16 %v1967
        %v2116 = vunpack.c.h.b16 %v1967
        %v2117 = vunpack.c.l.b16 %v1968
        %v2118 = vunpack.c.h.b16 %v1968
        %v2119 = vunpack.c.l.b16 %v1969
        %v2120 = vunpack.c.h.b16 %v1969
        %v2121 = vunpack.c.l.b16 %v1970
        %v2122 = vunpack.c.h.b16 %v1970
        %v2123 = vunpack.c.l.b16 %v1971
        %v2124 = vunpack.c.h.b16 %v1971
        %v2125 = vunpack.c.l.b16 %v1972
        %v2126 = vunpack.c.h.b16 %v1972
        %v2127 = vunpack.c.l.b16 %v1973
        %v2128 = vunpack.c.h.b16 %v1973
        %v2129 = vunpack.c.l.b16 %v1974
        %v2130 = vunpack.c.h.b16 %v1974
        %v2131 = vunpack.c.l.b16 %v1975
        %v2132 = vunpack.c.h.b16 %v1975
        %v2133 = vunpack.c.l.b16 %v1976
        %v2134 = vunpack.c.h.b16 %v1976
        %v2135 = vunpack.c.l.b16 %v1977
        %v2136 = vunpack.c.h.b16 %v1977
        %v2137 = vunpack.c.l.b16 %v1978
        %v2138 = vunpack.c.h.b16 %v1978
        %v2139 = vunpack.c.l.b16 %v1979
        %v2140 = vunpack.c.h.b16 %v1979
        %v2141 = vunpack.c.l.b16 %v1980
        %v2142 = vunpack.c.h.b16 %v1980
        %v2143 = vunpack.c.l.b16 %v1981
        %v2144 = vunpack.c.h.b16 %v1981
        %v2145 = vunpack.c.l.b16 %v1982
        %v2146 = vunpack.c.h.b16 %v1982
        %v2147 = vunpack.c.l.b16 %v1983
        %v2148 = vunpack.c.h.b16 %v1983
        %v2149 = vunpack.c.l.b16 %v1984
        %v2150 = vunpack.c.h.b16 %v1984
        %v2151 = vunpack.c.l.b16 %v1985
        %v2152 = vunpack.c.h.b16 %v1985
        %v2153 = vunpack.c.l.b16 %v1986
        %v2154 = vunpack.c.h.b16 %v1986
        %v2155 = vunpack.c.l.b16 %v1987
        %v2156 = vunpack.c.h.b16 %v1987
        %v2157 = vunpack.c.l.b16 %v1988
        %v2158 = vunpack.c.h.b16 %v1988
        %v2159 = vunpack.c.l.b16 %v1989
        %v2160 = vunpack.c.h.b16 %v1989
        %v2161 = vunpack.c.l.b16 %v1990
        %v2162 = vunpack.c.h.b16 %v1990
        %v2163 = vunpack.c.l.b16 %v1991
        %v2164 = vunpack.c.h.b16 %v1991
        %v2165 = vunpack.c.l.b16 %v1992
        %v2166 = vunpack.c.h.b16 %v1992
        %v2167 = vunpack.c.l.b16 %v1993
        %v2168 = vunpack.c.h.b16 %v1993
        %v2169 = vunpack.c.l.b16 %v1994
        %v2170 = vunpack.c.h.b16 %v1994
        %v2171 = vunpack.c.l.b16 %v1995
        %v2172 = vunpack.c.h.b16 %v1995
        %v2173 = vunpack.c.l.b16 %v1996
        %v2174 = vunpack.c.h.b16 %v1996
        %v2175 = vunpack.c.l.b16 %v1997
        %v2176 = vunpack.c.h.b16 %v1997
        %v2177 = vunpack.c.l.b16 %v1998
        %v2178 = vunpack.c.h.b16 %v1998
        %v2179 = vunpack.c.l.b16 %v1999
        %v2180 = vunpack.c.h.b16 %v1999
        %v2181 = vunpack.c.l.b16 %v2000
        %v2182 = vunpack.c.h.b16 %v2000
        %v2183 = vunpack.c.l.b16 %v2001
        %v2184 = vunpack.c.h.b16 %v2001
        %v2185 = vunpack.c.l.b16 %v2002
        %v2186 = vunpack.c.h.b16 %v2002
        %v2187 = vunpack.c.l.b16 %v2003
        %v2188 = vunpack.c.h.b16 %v2003
        %v2189 = vunpack.c.l.b16 %v2004
        %v2190 = vunpack.c.h.b16 %v2004
        %v2191 = vunpack.c.l.b16 %v2005
        %v2192 = vunpack.c.h.b16 %v2005
        %v2193 = vunpack.c.l.b16 %v2006
        %v2194 = vunpack.c.h.b16 %v2006
        %v2195 = vunpack.c.l.b16 %v2007
        %v2196 = vunpack.c.h.b16 %v2007
        %v2197 = vunpack.c.l.b16 %v2008
        %v2198 = vunpack.c.h.b16 %v2008
        %v2199 = vunpack.c.l.b16 %v2009
        %v2200 = vunpack.c.h.b16 %v2009
        %v2201 = vunpack.c.l.b16 %v2010
        %v2202 = vunpack.c.h.b16 %v2010
        %v2203 = vpack.c.b16 %v2079, %v2075
        %v2204 = vpack.c.b16 %v2080, %v2076
        %v2205 = vpack.c.b16 %v2081, %v2077
        %v2206 = vpack.c.b16 %v2082, %v2078
        %v2207 = vpack.c.b16 %v2087, %v2083
        %v2208 = vpack.c.b16 %v2088, %v2084
        %v2209 = vpack.c.b16 %v2089, %v2085
        %v2210 = vpack.c.b16 %v2090, %v2086
        %v2211 = vpack.c.b16 %v2095, %v2091
        %v2212 = vpack.c.b16 %v2096, %v2092
        %v2213 = vpack.c.b16 %v2097, %v2093
        %v2214 = vpack.c.b16 %v2098, %v2094
        %v2215 = vpack.c.b16 %v2103, %v2099
        %v2216 = vpack.c.b16 %v2104, %v2100
        %v2217 = vpack.c.b16 %v2105, %v2101
        %v2218 = vpack.c.b16 %v2106, %v2102
        %v2219 = vpack.c.b16 %v2111, %v2107
        %v2220 = vpack.c.b16 %v2112, %v2108
        %v2221 = vpack.c.b16 %v2113, %v2109
        %v2222 = vpack.c.b16 %v2114, %v2110
        %v2223 = vpack.c.b16 %v2119, %v2115
        %v2224 = vpack.c.b16 %v2120, %v2116
        %v2225 = vpack.c.b16 %v2121, %v2117
        %v2226 = vpack.c.b16 %v2122, %v2118
        %v2227 = vpack.c.b16 %v2127, %v2123
        %v2228 = vpack.c.b16 %v2128, %v2124
        %v2229 = vpack.c.b16 %v2129, %v2125
        %v2230 = vpack.c.b16 %v2130, %v2126
        %v2231 = vpack.c.b16 %v2135, %v2131
        %v2232 = vpack.c.b16 %v2136, %v2132
        %v2233 = vpack.c.b16 %v2137, %v2133
        %v2234 = vpack.c.b16 %v2138, %v2134
        %v2235 = vpack.c.b16 %v2143, %v2139
        %v2236 = vpack.c.b16 %v2144, %v2140
        %v2237 = vpack.c.b16 %v2145, %v2141
        %v2238 = vpack.c.b16 %v2146, %v2142
        %v2239 = vpack.c.b16 %v2151, %v2147
        %v2240 = vpack.c.b16 %v2152, %v2148
        %v2241 = vpack.c.b16 %v2153, %v2149
        %v2242 = vpack.c.b16 %v2154, %v2150
        %v2243 = vpack.c.b16 %v2159, %v2155
        %v2244 = vpack.c.b16 %v2160, %v2156
        %v2245 = vpack.c.b16 %v2161, %v2157
        %v2246 = vpack.c.b16 %v2162, %v2158
        %v2247 = vpack.c.b16 %v2167, %v2163
        %v2248 = vpack.c.b16 %v2168, %v2164
        %v2249 = vpack.c.b16 %v2169, %v2165
        %v2250 = vpack.c.b16 %v2170, %v2166
        %v2251 = vpack.c.b16 %v2175, %v2171
        %v2252 = vpack.c.b16 %v2176, %v2172
        %v2253 = vpack.c.b16 %v2177, %v2173
        %v2254 = vpack.c.b16 %v2178, %v2174
        %v2255 = vpack.c.b16 %v2183, %v2179
        %v2256 = vpack.c.b16 %v2184, %v2180
        %v2257 = vpack.c.b16 %v2185, %v2181
        %v2258 = vpack.c.b16 %v2186, %v2182
        %v2259 = vpack.c.b16 %v2191, %v2187
        %v2260 = vpack.c.b16 %v2192, %v2188
        %v2261 = vpack.c.b16 %v2193, %v2189
        %v2262 = vpack.c.b16 %v2194, %v2190
        %v2263 = vpack.c.b16 %v2199, %v2195
        %v2264 = vpack.c.b16 %v2200, %v2196
        %v2265 = vpack.c.b16 %v2201, %v2197
        %v2266 = vpack.c.b16 %v2202, %v2198
        %2331 = vmatpush.bf16.msra.mxu0 %v2231
        %2332 = vmatpush.bf16.msra.mxu0 %v2227
        %2333 = vmatpush.bf16.msra.mxu0 %v2223
        %2334 = vmatpush.bf16.msra.mxu0 %v2219
        %2335 = vmatpush.bf16.msra.mxu0 %v2215
        %2336 = vmatpush.bf16.msra.mxu0 %v2211
        %2337 = vmatpush.bf16.msra.mxu0 %v2207
        %2338 = vmatpush.bf16.msra.mxu0 %v2203
        %2339 = vmatmul.bf16.gmra.mxu0 %v1944
        %v2340 = vpop.f32.mrf.mxu0
        %v2341 = vadd.f32 0.0, %v2340
        %v2342 = vpop.f32.mrf.mxu0
        %v2343 = vadd.f32 0.0, %v2342
        %2344 = vdwg.mxu0
        %2345 = vmatpush.bf16.msra.mxu0 %v2263
        %2346 = vmatpush.bf16.msra.mxu0 %v2259
        %2347 = vmatpush.bf16.msra.mxu0 %v2255
        %2348 = vmatpush.bf16.msra.mxu0 %v2251
        %2349 = vmatpush.bf16.msra.mxu0 %v2247
        %2350 = vmatpush.bf16.msra.mxu0 %v2243
        %2351 = vmatpush.bf16.msra.mxu0 %v2239
        %2352 = vmatpush.bf16.msra.mxu0 %v2235
        %2353 = vmatmul.bf16.gmra.mxu0 %v1945
        %v2354 = vpop.f32.mrf.mxu0
        %v2355 = vadd.f32 %v2341, %v2354
        %v2356 = vpop.f32.mrf.mxu0
        %v2357 = vadd.f32 %v2343, %v2356
        %2358 = vdwg.mxu0
        %2359 = vmatpush.bf16.msra.mxu0 %v2232
        %2360 = vmatpush.bf16.msra.mxu0 %v2228
        %2361 = vmatpush.bf16.msra.mxu0 %v2224
        %2362 = vmatpush.bf16.msra.mxu0 %v2220
        %2363 = vmatpush.bf16.msra.mxu0 %v2216
        %2364 = vmatpush.bf16.msra.mxu0 %v2212
        %2365 = vmatpush.bf16.msra.mxu0 %v2208
        %2366 = vmatpush.bf16.msra.mxu0 %v2204
        %2367 = vmatmul.bf16.gmra.mxu0 %v1944
        %v2368 = vpop.f32.mrf.mxu0
        %v2369 = vadd.f32 0.0, %v2368
        %v2370 = vpop.f32.mrf.mxu0
        %v2371 = vadd.f32 0.0, %v2370
        %2372 = vdwg.mxu0
        %2373 = vmatpush.bf16.msra.mxu0 %v2264
        %2374 = vmatpush.bf16.msra.mxu0 %v2260
        %2375 = vmatpush.bf16.msra.mxu0 %v2256
        %2376 = vmatpush.bf16.msra.mxu0 %v2252
        %2377 = vmatpush.bf16.msra.mxu0 %v2248
        %2378 = vmatpush.bf16.msra.mxu0 %v2244
        %2379 = vmatpush.bf16.msra.mxu0 %v2240
        %2380 = vmatpush.bf16.msra.mxu0 %v2236
        %2381 = vmatmul.bf16.gmra.mxu0 %v1945
        %v2382 = vpop.f32.mrf.mxu0
        %v2383 = vadd.f32 %v2369, %v2382
        %v2384 = vpop.f32.mrf.mxu0
        %v2385 = vadd.f32 %v2371, %v2384
        %2386 = vdwg.mxu0
        %2387 = vmatpush.bf16.msra.mxu0 %v2233
        %2388 = vmatpush.bf16.msra.mxu0 %v2229
        %2389 = vmatpush.bf16.msra.mxu0 %v2225
        %2390 = vmatpush.bf16.msra.mxu0 %v2221
        %2391 = vmatpush.bf16.msra.mxu0 %v2217
        %2392 = vmatpush.bf16.msra.mxu0 %v2213
        %2393 = vmatpush.bf16.msra.mxu0 %v2209
        %2394 = vmatpush.bf16.msra.mxu0 %v2205
        %2395 = vmatmul.bf16.gmra.mxu0 %v1944
        %v2396 = vpop.f32.mrf.mxu0
        %v2397 = vadd.f32 0.0, %v2396
        %v2398 = vpop.f32.mrf.mxu0
        %v2399 = vadd.f32 0.0, %v2398
        %2400 = vdwg.mxu0
        %2401 = vmatpush.bf16.msra.mxu0 %v2265
        %2402 = vmatpush.bf16.msra.mxu0 %v2261
        %2403 = vmatpush.bf16.msra.mxu0 %v2257
        %2404 = vmatpush.bf16.msra.mxu0 %v2253
        %2405 = vmatpush.bf16.msra.mxu0 %v2249
        %2406 = vmatpush.bf16.msra.mxu0 %v2245
        %2407 = vmatpush.bf16.msra.mxu0 %v2241
        %2408 = vmatpush.bf16.msra.mxu0 %v2237
        %2409 = vmatmul.bf16.gmra.mxu0 %v1945
        %v2410 = vpop.f32.mrf.mxu0
        %v2411 = vadd.f32 %v2397, %v2410
        %v2412 = vpop.f32.mrf.mxu0
        %v2413 = vadd.f32 %v2399, %v2412
        %2414 = vdwg.mxu0
        %2415 = vmatpush.bf16.msra.mxu0 %v2234
        %2416 = vmatpush.bf16.msra.mxu0 %v2230
        %2417 = vmatpush.bf16.msra.mxu0 %v2226
        %2418 = vmatpush.bf16.msra.mxu0 %v2222
        %2419 = vmatpush.bf16.msra.mxu0 %v2218
        %2420 = vmatpush.bf16.msra.mxu0 %v2214
        %2421 = vmatpush.bf16.msra.mxu0 %v2210
        %2422 = vmatpush.bf16.msra.mxu0 %v2206
        %2423 = vmatmul.bf16.gmra.mxu0 %v1944
        %v2424 = vpop.f32.mrf.mxu0
        %v2425 = vadd.f32 0.0, %v2424
        %v2426 = vpop.f32.mrf.mxu0
        %v2427 = vadd.f32 0.0, %v2426
        %2428 = vdwg.mxu0
        %2429 = vmatpush.bf16.msra.mxu0 %v2266
        %2430 = vmatpush.bf16.msra.mxu0 %v2262
        %2431 = vmatpush.bf16.msra.mxu0 %v2258
        %2432 = vmatpush.bf16.msra.mxu0 %v2254
        %2433 = vmatpush.bf16.msra.mxu0 %v2250
        %2434 = vmatpush.bf16.msra.mxu0 %v2246
        %2435 = vmatpush.bf16.msra.mxu0 %v2242
        %2436 = vmatpush.bf16.msra.mxu0 %v2238
        %2437 = vmatmul.bf16.gmra.mxu0 %v1945
        %v2438 = vpop.f32.mrf.mxu0
        %v2439 = vadd.f32 %v2425, %v2438
        %v2440 = vpop.f32.mrf.mxu0
        %v2441 = vadd.f32 %v2427, %v2440
        %2442 = vdwg.mxu0
        %v2443 = vadd.f32 %v1923, %v2355
        %v2444 = vadd.f32 %v1924, %v2383
        %v2445 = vadd.f32 %v1925, %v2411
        %v2446 = vadd.f32 %v1926, %v2439
        %v2447 = vadd.f32 %v1927, %v2357
        %v2448 = vadd.f32 %v1928, %v2385
        %v2449 = vadd.f32 %v1929, %v2413
        %v2450 = vadd.f32 %v1930, %v2441
        %v2451 = vrot.slane %v401, 4
        %v2452 = vrot.slane %v402, 4
        %v2455 = vsel %vm411, %v2451, 0.0
        %v2456 = vsel %vm411, %v2452, 0.0
        %v2457 = vpack.c.bf16 0.0, %v2455
        %v2458 = vpack.c.bf16 0.0, %v2456
        %s2459 = scalar_lea.vmem [#allocation2], 2048
        %v2460 = vld [vmem:[%s2459] sm:$0xff]
        %v2461 = vld [vmem:[%s2459 + $0x8] sm:$0xff]
        %v2462 = vld [vmem:[%s2459 + $0x10] sm:$0xff]
        %v2463 = vld [vmem:[%s2459 + $0x18] sm:$0xff]
        %v2464 = vld [vmem:[%s2459 + $0x20] sm:$0xff]
        %v2465 = vld [vmem:[%s2459 + $0x28] sm:$0xff]
        %v2466 = vld [vmem:[%s2459 + $0x30] sm:$0xff]
        %v2467 = vld [vmem:[%s2459 + $0x38] sm:$0xff]
        %v2468 = vld [vmem:[%s2459 + $0x40] sm:$0xff]
        %v2469 = vld [vmem:[%s2459 + $0x48] sm:$0xff]
        %v2470 = vld [vmem:[%s2459 + $0x50] sm:$0xff]
        %v2471 = vld [vmem:[%s2459 + $0x58] sm:$0xff]
        %v2472 = vld [vmem:[%s2459 + $0x60] sm:$0xff]
        %v2473 = vld [vmem:[%s2459 + $0x68] sm:$0xff]
        %v2474 = vld [vmem:[%s2459 + $0x70] sm:$0xff]
        %v2475 = vld [vmem:[%s2459 + $0x78] sm:$0xff]
        %v2476 = vld [vmem:[%s2459 + $0x80] sm:$0xff]
        %v2477 = vld [vmem:[%s2459 + $0x88] sm:$0xff]
        %v2478 = vld [vmem:[%s2459 + $0x90] sm:$0xff]
        %v2479 = vld [vmem:[%s2459 + $0x98] sm:$0xff]
        %v2480 = vld [vmem:[%s2459 + $0xa0] sm:$0xff]
        %v2481 = vld [vmem:[%s2459 + $0xa8] sm:$0xff]
        %v2482 = vld [vmem:[%s2459 + $0xb0] sm:$0xff]
        %v2483 = vld [vmem:[%s2459 + $0xb8] sm:$0xff]
        %v2484 = vld [vmem:[%s2459 + $0xc0] sm:$0xff]
        %v2485 = vld [vmem:[%s2459 + $0xc8] sm:$0xff]
        %v2486 = vld [vmem:[%s2459 + $0xd0] sm:$0xff]
        %v2487 = vld [vmem:[%s2459 + $0xd8] sm:$0xff]
        %v2488 = vld [vmem:[%s2459 + $0xe0] sm:$0xff]
        %v2489 = vld [vmem:[%s2459 + $0xe8] sm:$0xff]
        %v2490 = vld [vmem:[%s2459 + $0xf0] sm:$0xff]
        %v2491 = vld [vmem:[%s2459 + $0xf8] sm:$0xff]
        %v2492 = vld [vmem:[%s2459 + $0x100] sm:$0xff]
        %v2493 = vld [vmem:[%s2459 + $0x108] sm:$0xff]
        %v2494 = vld [vmem:[%s2459 + $0x110] sm:$0xff]
        %v2495 = vld [vmem:[%s2459 + $0x118] sm:$0xff]
        %v2496 = vld [vmem:[%s2459 + $0x120] sm:$0xff]
        %v2497 = vld [vmem:[%s2459 + $0x128] sm:$0xff]
        %v2498 = vld [vmem:[%s2459 + $0x130] sm:$0xff]
        %v2499 = vld [vmem:[%s2459 + $0x138] sm:$0xff]
        %v2500 = vld [vmem:[%s2459 + $0x140] sm:$0xff]
        %v2501 = vld [vmem:[%s2459 + $0x148] sm:$0xff]
        %v2502 = vld [vmem:[%s2459 + $0x150] sm:$0xff]
        %v2503 = vld [vmem:[%s2459 + $0x158] sm:$0xff]
        %v2504 = vld [vmem:[%s2459 + $0x160] sm:$0xff]
        %v2505 = vld [vmem:[%s2459 + $0x168] sm:$0xff]
        %v2506 = vld [vmem:[%s2459 + $0x170] sm:$0xff]
        %v2507 = vld [vmem:[%s2459 + $0x178] sm:$0xff]
        %v2508 = vld [vmem:[%s2459 + $0x180] sm:$0xff]
        %v2509 = vld [vmem:[%s2459 + $0x188] sm:$0xff]
        %v2510 = vld [vmem:[%s2459 + $0x190] sm:$0xff]
        %v2511 = vld [vmem:[%s2459 + $0x198] sm:$0xff]
        %v2512 = vld [vmem:[%s2459 + $0x1a0] sm:$0xff]
        %v2513 = vld [vmem:[%s2459 + $0x1a8] sm:$0xff]
        %v2514 = vld [vmem:[%s2459 + $0x1b0] sm:$0xff]
        %v2515 = vld [vmem:[%s2459 + $0x1b8] sm:$0xff]
        %v2516 = vld [vmem:[%s2459 + $0x1c0] sm:$0xff]
        %v2517 = vld [vmem:[%s2459 + $0x1c8] sm:$0xff]
        %v2518 = vld [vmem:[%s2459 + $0x1d0] sm:$0xff]
        %v2519 = vld [vmem:[%s2459 + $0x1d8] sm:$0xff]
        %v2520 = vld [vmem:[%s2459 + $0x1e0] sm:$0xff]
        %v2521 = vld [vmem:[%s2459 + $0x1e8] sm:$0xff]
        %v2522 = vld [vmem:[%s2459 + $0x1f0] sm:$0xff]
        %v2523 = vld [vmem:[%s2459 + $0x1f8] sm:$0xff]
        %v2588 = vunpack.c.l.b16 %v2460
        %v2589 = vunpack.c.h.b16 %v2460
        %v2590 = vunpack.c.l.b16 %v2461
        %v2591 = vunpack.c.h.b16 %v2461
        %v2592 = vunpack.c.l.b16 %v2462
        %v2593 = vunpack.c.h.b16 %v2462
        %v2594 = vunpack.c.l.b16 %v2463
        %v2595 = vunpack.c.h.b16 %v2463
        %v2596 = vunpack.c.l.b16 %v2464
        %v2597 = vunpack.c.h.b16 %v2464
        %v2598 = vunpack.c.l.b16 %v2465
        %v2599 = vunpack.c.h.b16 %v2465
        %v2600 = vunpack.c.l.b16 %v2466
        %v2601 = vunpack.c.h.b16 %v2466
        %v2602 = vunpack.c.l.b16 %v2467
        %v2603 = vunpack.c.h.b16 %v2467
        %v2604 = vunpack.c.l.b16 %v2468
        %v2605 = vunpack.c.h.b16 %v2468
        %v2606 = vunpack.c.l.b16 %v2469
        %v2607 = vunpack.c.h.b16 %v2469
        %v2608 = vunpack.c.l.b16 %v2470
        %v2609 = vunpack.c.h.b16 %v2470
        %v2610 = vunpack.c.l.b16 %v2471
        %v2611 = vunpack.c.h.b16 %v2471
        %v2612 = vunpack.c.l.b16 %v2472
        %v2613 = vunpack.c.h.b16 %v2472
        %v2614 = vunpack.c.l.b16 %v2473
        %v2615 = vunpack.c.h.b16 %v2473
        %v2616 = vunpack.c.l.b16 %v2474
        %v2617 = vunpack.c.h.b16 %v2474
        %v2618 = vunpack.c.l.b16 %v2475
        %v2619 = vunpack.c.h.b16 %v2475
        %v2620 = vunpack.c.l.b16 %v2476
        %v2621 = vunpack.c.h.b16 %v2476
        %v2622 = vunpack.c.l.b16 %v2477
        %v2623 = vunpack.c.h.b16 %v2477
        %v2624 = vunpack.c.l.b16 %v2478
        %v2625 = vunpack.c.h.b16 %v2478
        %v2626 = vunpack.c.l.b16 %v2479
        %v2627 = vunpack.c.h.b16 %v2479
        %v2628 = vunpack.c.l.b16 %v2480
        %v2629 = vunpack.c.h.b16 %v2480
        %v2630 = vunpack.c.l.b16 %v2481
        %v2631 = vunpack.c.h.b16 %v2481
        %v2632 = vunpack.c.l.b16 %v2482
        %v2633 = vunpack.c.h.b16 %v2482
        %v2634 = vunpack.c.l.b16 %v2483
        %v2635 = vunpack.c.h.b16 %v2483
        %v2636 = vunpack.c.l.b16 %v2484
        %v2637 = vunpack.c.h.b16 %v2484
        %v2638 = vunpack.c.l.b16 %v2485
        %v2639 = vunpack.c.h.b16 %v2485
        %v2640 = vunpack.c.l.b16 %v2486
        %v2641 = vunpack.c.h.b16 %v2486
        %v2642 = vunpack.c.l.b16 %v2487
        %v2643 = vunpack.c.h.b16 %v2487
        %v2644 = vunpack.c.l.b16 %v2488
        %v2645 = vunpack.c.h.b16 %v2488
        %v2646 = vunpack.c.l.b16 %v2489
        %v2647 = vunpack.c.h.b16 %v2489
        %v2648 = vunpack.c.l.b16 %v2490
        %v2649 = vunpack.c.h.b16 %v2490
        %v2650 = vunpack.c.l.b16 %v2491
        %v2651 = vunpack.c.h.b16 %v2491
        %v2652 = vunpack.c.l.b16 %v2492
        %v2653 = vunpack.c.h.b16 %v2492
        %v2654 = vunpack.c.l.b16 %v2493
        %v2655 = vunpack.c.h.b16 %v2493
        %v2656 = vunpack.c.l.b16 %v2494
        %v2657 = vunpack.c.h.b16 %v2494
        %v2658 = vunpack.c.l.b16 %v2495
        %v2659 = vunpack.c.h.b16 %v2495
        %v2660 = vunpack.c.l.b16 %v2496
        %v2661 = vunpack.c.h.b16 %v2496
        %v2662 = vunpack.c.l.b16 %v2497
        %v2663 = vunpack.c.h.b16 %v2497
        %v2664 = vunpack.c.l.b16 %v2498
        %v2665 = vunpack.c.h.b16 %v2498
        %v2666 = vunpack.c.l.b16 %v2499
        %v2667 = vunpack.c.h.b16 %v2499
        %v2668 = vunpack.c.l.b16 %v2500
        %v2669 = vunpack.c.h.b16 %v2500
        %v2670 = vunpack.c.l.b16 %v2501
        %v2671 = vunpack.c.h.b16 %v2501
        %v2672 = vunpack.c.l.b16 %v2502
        %v2673 = vunpack.c.h.b16 %v2502
        %v2674 = vunpack.c.l.b16 %v2503
        %v2675 = vunpack.c.h.b16 %v2503
        %v2676 = vunpack.c.l.b16 %v2504
        %v2677 = vunpack.c.h.b16 %v2504
        %v2678 = vunpack.c.l.b16 %v2505
        %v2679 = vunpack.c.h.b16 %v2505
        %v2680 = vunpack.c.l.b16 %v2506
        %v2681 = vunpack.c.h.b16 %v2506
        %v2682 = vunpack.c.l.b16 %v2507
        %v2683 = vunpack.c.h.b16 %v2507
        %v2684 = vunpack.c.l.b16 %v2508
        %v2685 = vunpack.c.h.b16 %v2508
        %v2686 = vunpack.c.l.b16 %v2509
        %v2687 = vunpack.c.h.b16 %v2509
        %v2688 = vunpack.c.l.b16 %v2510
        %v2689 = vunpack.c.h.b16 %v2510
        %v2690 = vunpack.c.l.b16 %v2511
        %v2691 = vunpack.c.h.b16 %v2511
        %v2692 = vunpack.c.l.b16 %v2512
        %v2693 = vunpack.c.h.b16 %v2512
        %v2694 = vunpack.c.l.b16 %v2513
        %v2695 = vunpack.c.h.b16 %v2513
        %v2696 = vunpack.c.l.b16 %v2514
        %v2697 = vunpack.c.h.b16 %v2514
        %v2698 = vunpack.c.l.b16 %v2515
        %v2699 = vunpack.c.h.b16 %v2515
        %v2700 = vunpack.c.l.b16 %v2516
        %v2701 = vunpack.c.h.b16 %v2516
        %v2702 = vunpack.c.l.b16 %v2517
        %v2703 = vunpack.c.h.b16 %v2517
        %v2704 = vunpack.c.l.b16 %v2518
        %v2705 = vunpack.c.h.b16 %v2518
        %v2706 = vunpack.c.l.b16 %v2519
        %v2707 = vunpack.c.h.b16 %v2519
        %v2708 = vunpack.c.l.b16 %v2520
        %v2709 = vunpack.c.h.b16 %v2520
        %v2710 = vunpack.c.l.b16 %v2521
        %v2711 = vunpack.c.h.b16 %v2521
        %v2712 = vunpack.c.l.b16 %v2522
        %v2713 = vunpack.c.h.b16 %v2522
        %v2714 = vunpack.c.l.b16 %v2523
        %v2715 = vunpack.c.h.b16 %v2523
        %v2716 = vpack.c.b16 %v2592, %v2588
        %v2717 = vpack.c.b16 %v2593, %v2589
        %v2718 = vpack.c.b16 %v2594, %v2590
        %v2719 = vpack.c.b16 %v2595, %v2591
        %v2720 = vpack.c.b16 %v2600, %v2596
        %v2721 = vpack.c.b16 %v2601, %v2597
        %v2722 = vpack.c.b16 %v2602, %v2598
        %v2723 = vpack.c.b16 %v2603, %v2599
        %v2724 = vpack.c.b16 %v2608, %v2604
        %v2725 = vpack.c.b16 %v2609, %v2605
        %v2726 = vpack.c.b16 %v2610, %v2606
        %v2727 = vpack.c.b16 %v2611, %v2607
        %v2728 = vpack.c.b16 %v2616, %v2612
        %v2729 = vpack.c.b16 %v2617, %v2613
        %v2730 = vpack.c.b16 %v2618, %v2614
        %v2731 = vpack.c.b16 %v2619, %v2615
        %v2732 = vpack.c.b16 %v2624, %v2620
        %v2733 = vpack.c.b16 %v2625, %v2621
        %v2734 = vpack.c.b16 %v2626, %v2622
        %v2735 = vpack.c.b16 %v2627, %v2623
        %v2736 = vpack.c.b16 %v2632, %v2628
        %v2737 = vpack.c.b16 %v2633, %v2629
        %v2738 = vpack.c.b16 %v2634, %v2630
        %v2739 = vpack.c.b16 %v2635, %v2631
        %v2740 = vpack.c.b16 %v2640, %v2636
        %v2741 = vpack.c.b16 %v2641, %v2637
        %v2742 = vpack.c.b16 %v2642, %v2638
        %v2743 = vpack.c.b16 %v2643, %v2639
        %v2744 = vpack.c.b16 %v2648, %v2644
        %v2745 = vpack.c.b16 %v2649, %v2645
        %v2746 = vpack.c.b16 %v2650, %v2646
        %v2747 = vpack.c.b16 %v2651, %v2647
        %v2748 = vpack.c.b16 %v2656, %v2652
        %v2749 = vpack.c.b16 %v2657, %v2653
        %v2750 = vpack.c.b16 %v2658, %v2654
        %v2751 = vpack.c.b16 %v2659, %v2655
        %v2752 = vpack.c.b16 %v2664, %v2660
        %v2753 = vpack.c.b16 %v2665, %v2661
        %v2754 = vpack.c.b16 %v2666, %v2662
        %v2755 = vpack.c.b16 %v2667, %v2663
        %v2756 = vpack.c.b16 %v2672, %v2668
        %v2757 = vpack.c.b16 %v2673, %v2669
        %v2758 = vpack.c.b16 %v2674, %v2670
        %v2759 = vpack.c.b16 %v2675, %v2671
        %v2760 = vpack.c.b16 %v2680, %v2676
        %v2761 = vpack.c.b16 %v2681, %v2677
        %v2762 = vpack.c.b16 %v2682, %v2678
        %v2763 = vpack.c.b16 %v2683, %v2679
        %v2764 = vpack.c.b16 %v2688, %v2684
        %v2765 = vpack.c.b16 %v2689, %v2685
        %v2766 = vpack.c.b16 %v2690, %v2686
        %v2767 = vpack.c.b16 %v2691, %v2687
        %v2768 = vpack.c.b16 %v2696, %v2692
        %v2769 = vpack.c.b16 %v2697, %v2693
        %v2770 = vpack.c.b16 %v2698, %v2694
        %v2771 = vpack.c.b16 %v2699, %v2695
        %v2772 = vpack.c.b16 %v2704, %v2700
        %v2773 = vpack.c.b16 %v2705, %v2701
        %v2774 = vpack.c.b16 %v2706, %v2702
        %v2775 = vpack.c.b16 %v2707, %v2703
        %v2776 = vpack.c.b16 %v2712, %v2708
        %v2777 = vpack.c.b16 %v2713, %v2709
        %v2778 = vpack.c.b16 %v2714, %v2710
        %v2779 = vpack.c.b16 %v2715, %v2711
        %2844 = vmatpush.bf16.msra.mxu0 %v2744
        %2845 = vmatpush.bf16.msra.mxu0 %v2740
        %2846 = vmatpush.bf16.msra.mxu0 %v2736
        %2847 = vmatpush.bf16.msra.mxu0 %v2732
        %2848 = vmatpush.bf16.msra.mxu0 %v2728
        %2849 = vmatpush.bf16.msra.mxu0 %v2724
        %2850 = vmatpush.bf16.msra.mxu0 %v2720
        %2851 = vmatpush.bf16.msra.mxu0 %v2716
        %2852 = vmatmul.bf16.gmra.mxu0 %v2457
        %v2853 = vpop.f32.mrf.mxu0
        %v2854 = vadd.f32 0.0, %v2853
        %v2855 = vpop.f32.mrf.mxu0
        %v2856 = vadd.f32 0.0, %v2855
        %2857 = vdwg.mxu0
        %2858 = vmatpush.bf16.msra.mxu0 %v2776
        %2859 = vmatpush.bf16.msra.mxu0 %v2772
        %2860 = vmatpush.bf16.msra.mxu0 %v2768
        %2861 = vmatpush.bf16.msra.mxu0 %v2764
        %2862 = vmatpush.bf16.msra.mxu0 %v2760
        %2863 = vmatpush.bf16.msra.mxu0 %v2756
        %2864 = vmatpush.bf16.msra.mxu0 %v2752
        %2865 = vmatpush.bf16.msra.mxu0 %v2748
        %2866 = vmatmul.bf16.gmra.mxu0 %v2458
        %v2867 = vpop.f32.mrf.mxu0
        %v2868 = vadd.f32 %v2854, %v2867
        %v2869 = vpop.f32.mrf.mxu0
        %v2870 = vadd.f32 %v2856, %v2869
        %2871 = vdwg.mxu0
        %2872 = vmatpush.bf16.msra.mxu0 %v2745
        %2873 = vmatpush.bf16.msra.mxu0 %v2741
        %2874 = vmatpush.bf16.msra.mxu0 %v2737
        %2875 = vmatpush.bf16.msra.mxu0 %v2733
        %2876 = vmatpush.bf16.msra.mxu0 %v2729
        %2877 = vmatpush.bf16.msra.mxu0 %v2725
        %2878 = vmatpush.bf16.msra.mxu0 %v2721
        %2879 = vmatpush.bf16.msra.mxu0 %v2717
        %2880 = vmatmul.bf16.gmra.mxu0 %v2457
        %v2881 = vpop.f32.mrf.mxu0
        %v2882 = vadd.f32 0.0, %v2881
        %v2883 = vpop.f32.mrf.mxu0
        %v2884 = vadd.f32 0.0, %v2883
        %2885 = vdwg.mxu0
        %2886 = vmatpush.bf16.msra.mxu0 %v2777
        %2887 = vmatpush.bf16.msra.mxu0 %v2773
        %2888 = vmatpush.bf16.msra.mxu0 %v2769
        %2889 = vmatpush.bf16.msra.mxu0 %v2765
        %2890 = vmatpush.bf16.msra.mxu0 %v2761
        %2891 = vmatpush.bf16.msra.mxu0 %v2757
        %2892 = vmatpush.bf16.msra.mxu0 %v2753
        %2893 = vmatpush.bf16.msra.mxu0 %v2749
        %2894 = vmatmul.bf16.gmra.mxu0 %v2458
        %v2895 = vpop.f32.mrf.mxu0
        %v2896 = vadd.f32 %v2882, %v2895
        %v2897 = vpop.f32.mrf.mxu0
        %v2898 = vadd.f32 %v2884, %v2897
        %2899 = vdwg.mxu0
        %2900 = vmatpush.bf16.msra.mxu0 %v2746
        %2901 = vmatpush.bf16.msra.mxu0 %v2742
        %2902 = vmatpush.bf16.msra.mxu0 %v2738
        %2903 = vmatpush.bf16.msra.mxu0 %v2734
        %2904 = vmatpush.bf16.msra.mxu0 %v2730
        %2905 = vmatpush.bf16.msra.mxu0 %v2726
        %2906 = vmatpush.bf16.msra.mxu0 %v2722
        %2907 = vmatpush.bf16.msra.mxu0 %v2718
        %2908 = vmatmul.bf16.gmra.mxu0 %v2457
        %v2909 = vpop.f32.mrf.mxu0
        %v2910 = vadd.f32 0.0, %v2909
        %v2911 = vpop.f32.mrf.mxu0
        %v2912 = vadd.f32 0.0, %v2911
        %2913 = vdwg.mxu0
        %2914 = vmatpush.bf16.msra.mxu0 %v2778
        %2915 = vmatpush.bf16.msra.mxu0 %v2774
        %2916 = vmatpush.bf16.msra.mxu0 %v2770
        %2917 = vmatpush.bf16.msra.mxu0 %v2766
        %2918 = vmatpush.bf16.msra.mxu0 %v2762
        %2919 = vmatpush.bf16.msra.mxu0 %v2758
        %2920 = vmatpush.bf16.msra.mxu0 %v2754
        %2921 = vmatpush.bf16.msra.mxu0 %v2750
        %2922 = vmatmul.bf16.gmra.mxu0 %v2458
        %v2923 = vpop.f32.mrf.mxu0
        %v2924 = vadd.f32 %v2910, %v2923
        %v2925 = vpop.f32.mrf.mxu0
        %v2926 = vadd.f32 %v2912, %v2925
        %2927 = vdwg.mxu0
        %2928 = vmatpush.bf16.msra.mxu0 %v2747
        %2929 = vmatpush.bf16.msra.mxu0 %v2743
        %2930 = vmatpush.bf16.msra.mxu0 %v2739
        %2931 = vmatpush.bf16.msra.mxu0 %v2735
        %2932 = vmatpush.bf16.msra.mxu0 %v2731
        %2933 = vmatpush.bf16.msra.mxu0 %v2727
        %2934 = vmatpush.bf16.msra.mxu0 %v2723
        %2935 = vmatpush.bf16.msra.mxu0 %v2719
        %2936 = vmatmul.bf16.gmra.mxu0 %v2457
        %v2937 = vpop.f32.mrf.mxu0
        %v2938 = vadd.f32 0.0, %v2937
        %v2939 = vpop.f32.mrf.mxu0
        %v2940 = vadd.f32 0.0, %v2939
        %2941 = vdwg.mxu0
        %2942 = vmatpush.bf16.msra.mxu0 %v2779
        %2943 = vmatpush.bf16.msra.mxu0 %v2775
        %2944 = vmatpush.bf16.msra.mxu0 %v2771
        %2945 = vmatpush.bf16.msra.mxu0 %v2767
        %2946 = vmatpush.bf16.msra.mxu0 %v2763
        %2947 = vmatpush.bf16.msra.mxu0 %v2759
        %2948 = vmatpush.bf16.msra.mxu0 %v2755
        %2949 = vmatpush.bf16.msra.mxu0 %v2751
        %2950 = vmatmul.bf16.gmra.mxu0 %v2458
        %v2951 = vpop.f32.mrf.mxu0
        %v2952 = vadd.f32 %v2938, %v2951
        %v2953 = vpop.f32.mrf.mxu0
        %v2954 = vadd.f32 %v2940, %v2953
        %2955 = vdwg.mxu0
        %v2956 = vadd.f32 %v2443, %v2868
        %v2957 = vadd.f32 %v2444, %v2896
        %v2958 = vadd.f32 %v2445, %v2924
        %v2959 = vadd.f32 %v2446, %v2952
        %v2960 = vadd.f32 %v2447, %v2870
        %v2961 = vadd.f32 %v2448, %v2898
        %v2962 = vadd.f32 %v2449, %v2926
        %v2963 = vadd.f32 %v2450, %v2954
        %v2964 = vld [vmem:[#allocation6] ss:$2 sm:$0xf]
        %v2966 = vperm.slane %v2964, 0
        %v2967 = vperm.slane %v2964, 1
        %v2968 = vperm.slane %v2964, 2
        %v2969 = vperm.slane %v2964, 3
        %v2974 = vmul.f32 %v2956, %v2966
        %v2975 = vmul.f32 %v2957, %v2967
        %v2976 = vmul.f32 %v2958, %v2968
        %v2977 = vmul.f32 %v2959, %v2969
        %v2978 = vmul.f32 %v2960, %v2966
        %v2979 = vmul.f32 %v2961, %v2967
        %v2980 = vmul.f32 %v2962, %v2968
        %v2981 = vmul.f32 %v2963, %v2969
        %s2982 = scalar_lea.vmem [#allocation6], 1
        %v2983 = vld [vmem:[%s2982] ss:$2 sm:$0xf]
        %v2985 = vperm.slane %v2983, 0
        %v2986 = vperm.slane %v2983, 1
        %v2987 = vperm.slane %v2983, 2
        %v2988 = vperm.slane %v2983, 3
        %v2993 = vadd.f32 %v2974, %v2985
        %v2994 = vadd.f32 %v2975, %v2986
        %v2995 = vadd.f32 %v2976, %v2987
        %v2996 = vadd.f32 %v2977, %v2988
        %v2997 = vadd.f32 %v2978, %v2985
        %v2998 = vadd.f32 %v2979, %v2986
        %v2999 = vadd.f32 %v2980, %v2987
        %v3000 = vadd.f32 %v2981, %v2988
        %v3001 = vmax.f32 %v2993, 0.0
        %v3002 = vmax.f32 %v2994, 0.0
        %v3003 = vmax.f32 %v2995, 0.0
        %v3004 = vmax.f32 %v2996, 0.0
        %v3005 = vmax.f32 %v2997, 0.0
        %v3006 = vmax.f32 %v2998, 0.0
        %v3007 = vmax.f32 %v2999, 0.0
        %v3008 = vmax.f32 %v3000, 0.0
        %v3009 = vld [vmem:[%s4] sm:$0xf]
        %v3010 = vld [vmem:[%s4 + $0x4] sm:$0xf]
        %v3011 = vld [vmem:[%s4 + $0x8] sm:$0xf]
        %v3012 = vld [vmem:[%s4 + $0xc] sm:$0xf]
        %v3013 = vld [vmem:[%s4 + $0x10] sm:$0xf]
        %v3014 = vld [vmem:[%s4 + $0x14] sm:$0xf]
        %v3015 = vld [vmem:[%s4 + $0x18] sm:$0xf]
        %v3016 = vld [vmem:[%s4 + $0x1c] sm:$0xf]
        %v3017 = vld [vmem:[%s4 + $0x20] sm:$0xf]
        %v3018 = vld [vmem:[%s4 + $0x24] sm:$0xf]
        %v3019 = vld [vmem:[%s4 + $0x28] sm:$0xf]
        %v3020 = vld [vmem:[%s4 + $0x2c] sm:$0xf]
        %v3021 = vld [vmem:[%s4 + $0x30] sm:$0xf]
        %v3022 = vld [vmem:[%s4 + $0x34] sm:$0xf]
        %v3023 = vld [vmem:[%s4 + $0x38] sm:$0xf]
        %v3024 = vld [vmem:[%s4 + $0x3c] sm:$0xf]
        %v3025 = vld [vmem:[%s4 + $0x40] sm:$0xf]
        %v3026 = vld [vmem:[%s4 + $0x44] sm:$0xf]
        %v3027 = vld [vmem:[%s4 + $0x48] sm:$0xf]
        %v3028 = vld [vmem:[%s4 + $0x4c] sm:$0xf]
        %v3029 = vld [vmem:[%s4 + $0x50] sm:$0xf]
        %v3030 = vld [vmem:[%s4 + $0x54] sm:$0xf]
        %v3031 = vld [vmem:[%s4 + $0x58] sm:$0xf]
        %v3032 = vld [vmem:[%s4 + $0x5c] sm:$0xf]
        %v3033 = vld [vmem:[%s4 + $0x60] sm:$0xf]
        %v3034 = vld [vmem:[%s4 + $0x64] sm:$0xf]
        %v3035 = vld [vmem:[%s4 + $0x68] sm:$0xf]
        %v3036 = vld [vmem:[%s4 + $0x6c] sm:$0xf]
        %v3037 = vld [vmem:[%s4 + $0x70] sm:$0xf]
        %v3038 = vld [vmem:[%s4 + $0x74] sm:$0xf]
        %v3039 = vld [vmem:[%s4 + $0x78] sm:$0xf]
        %v3040 = vld [vmem:[%s4 + $0x7c] sm:$0xf]
        %v3073 = vunpack.c.l.b16 %v3009
        %v3074 = vunpack.c.l.b16 %v3010
        %v3075 = vunpack.c.l.b16 %v3011
        %v3076 = vunpack.c.l.b16 %v3012
        %v3077 = vunpack.c.l.b16 %v3013
        %v3078 = vunpack.c.l.b16 %v3014
        %v3079 = vunpack.c.l.b16 %v3015
        %v3080 = vunpack.c.l.b16 %v3016
        %v3081 = vunpack.c.l.b16 %v3017
        %v3082 = vunpack.c.l.b16 %v3018
        %v3083 = vunpack.c.l.b16 %v3019
        %v3084 = vunpack.c.l.b16 %v3020
        %v3085 = vunpack.c.l.b16 %v3021
        %v3086 = vunpack.c.l.b16 %v3022
        %v3087 = vunpack.c.l.b16 %v3023
        %v3088 = vunpack.c.l.b16 %v3024
        %v3089 = vunpack.c.l.b16 %v3025
        %v3090 = vunpack.c.l.b16 %v3026
        %v3091 = vunpack.c.l.b16 %v3027
        %v3092 = vunpack.c.l.b16 %v3028
        %v3093 = vunpack.c.l.b16 %v3029
        %v3094 = vunpack.c.l.b16 %v3030
        %v3095 = vunpack.c.l.b16 %v3031
        %v3096 = vunpack.c.l.b16 %v3032
        %v3097 = vunpack.c.l.b16 %v3033
        %v3098 = vunpack.c.l.b16 %v3034
        %v3099 = vunpack.c.l.b16 %v3035
        %v3100 = vunpack.c.l.b16 %v3036
        %v3101 = vunpack.c.l.b16 %v3037
        %v3102 = vunpack.c.l.b16 %v3038
        %v3103 = vunpack.c.l.b16 %v3039
        %v3104 = vunpack.c.l.b16 %v3040
        %v3105 = vpack.c.b16 %v3074, %v3073
        %v3106 = vpack.c.b16 %v3076, %v3075
        %v3107 = vpack.c.b16 %v3078, %v3077
        %v3108 = vpack.c.b16 %v3080, %v3079
        %v3109 = vpack.c.b16 %v3082, %v3081
        %v3110 = vpack.c.b16 %v3084, %v3083
        %v3111 = vpack.c.b16 %v3086, %v3085
        %v3112 = vpack.c.b16 %v3088, %v3087
        %v3113 = vpack.c.b16 %v3090, %v3089
        %v3114 = vpack.c.b16 %v3092, %v3091
        %v3115 = vpack.c.b16 %v3094, %v3093
        %v3116 = vpack.c.b16 %v3096, %v3095
        %v3117 = vpack.c.b16 %v3098, %v3097
        %v3118 = vpack.c.b16 %v3100, %v3099
        %v3119 = vpack.c.b16 %v3102, %v3101
        %v3120 = vpack.c.b16 %v3104, %v3103
        %3137 = vmatpush.bf16.msra.mxu0 %v3112
        %3138 = vmatpush.bf16.msra.mxu0 %v3111
        %3139 = vmatpush.bf16.msra.mxu0 %v3110
        %3140 = vmatpush.bf16.msra.mxu0 %v3109
        %3141 = vmatpush.bf16.msra.mxu0 %v3108
        %3142 = vmatpush.bf16.msra.mxu0 %v3107
        %3143 = vmatpush.bf16.msra.mxu0 %v3106
        %3144 = vmatpush.bf16.msra.mxu0 %v3105
        %3145 = vmatmul.bf16.gmra.mxu0 %v403
        %v3146 = vpop.f32.mrf.mxu0
        %v3147 = vadd.f32 0.0, %v3146
        %v3148 = vpop.f32.mrf.mxu0
        %v3149 = vadd.f32 0.0, %v3148
        %3150 = vdwg.mxu0
        %3151 = vmatpush.bf16.msra.mxu0 %v3120
        %3152 = vmatpush.bf16.msra.mxu0 %v3119
        %3153 = vmatpush.bf16.msra.mxu0 %v3118
        %3154 = vmatpush.bf16.msra.mxu0 %v3117
        %3155 = vmatpush.bf16.msra.mxu0 %v3116
        %3156 = vmatpush.bf16.msra.mxu0 %v3115
        %3157 = vmatpush.bf16.msra.mxu0 %v3114
        %3158 = vmatpush.bf16.msra.mxu0 %v3113
        %3159 = vmatmul.bf16.gmra.mxu0 %v404
        %v3160 = vpop.f32.mrf.mxu0
        %v3161 = vadd.f32 %v3147, %v3160
        %v3162 = vpop.f32.mrf.mxu0
        %v3163 = vadd.f32 %v3149, %v3162
        %3164 = vdwg.mxu0
        %vm3165 = vcmask 64512
        %v3166 = vsel %vm3165, %v3161, 0.0
        %v3167 = vsel %vm3165, %v3163, 0.0
        %v3168 = vadd.f32 %v3166, %v3167
        %v3169 = vrot.slane %v3168, 4
        %v3170 = vadd.f32 %v3168, %v3169
        %v3171 = vrot.slane %v3170, 2
        %v3172 = vadd.f32 %v3170, %v3171
        %v3173 = vrot.slane %v3172, 1
        %v3174 = vadd.f32 %v3172, %v3173
        %v3175 = vmul.f32 %v3174, 0.00390625
        %v3176 = vld [vmem:[#allocation7] sm:$0x1]
        %v3177 = vmul.f32 %v3175, %v3176
        %v3178 = vld [vmem:[#allocation7 + $0x1] sm:$0x1]
        %v3179 = vadd.f32 %v3177, %v3178
        %v3180 = vmax.f32 %v3179, 0.0
        %v3181 = vpack.c.bf16 %v3180, %v3180
        %v3183 = vpack.i.b16 %v3181, %v3181
        %v3185 = vperm.slane %v3183, 0
        %v3186 = vld [vmem:[#allocation9] sm:$0xf]
        %v3188 = vsel %vm3165, %v3185, 0
        %v3191 = vsel %vm411, %v3186, 0
        %3193 = vmatpush.bf16.msra.mxu0 0
        %3194 = vmatpush.bf16.msra.mxu0 0
        %3195 = vmatpush.bf16.msra.mxu0 0
        %3196 = vmatpush.bf16.msra.mxu0 0
        %3197 = vmatpush.bf16.msra.mxu0 0
        %3198 = vmatpush.bf16.msra.mxu0 0
        %3199 = vmatpush.bf16.msra.mxu0 0
        %3200 = vmatpush.bf16.msra.mxu0 %v3191
        %3201 = vmatmul.bf16.gmra.mxu0 %v3188
        %v3202 = vpop.f32.mrf.mxu0
        %v3203 = vadd.f32 0.0, %v3202
        %v3204 = vpop.f32.mrf.mxu0
        %3205 = vdwg.mxu0
        %v3206 = vpack.c.bf16 %v3005, %v3001
        %v3207 = vpack.c.bf16 %v3006, %v3002
        %v3208 = vpack.c.bf16 %v3007, %v3003
        %v3209 = vpack.c.bf16 %v3008, %v3004
        %v3210 = vld [vmem:[#allocation4] sm:$0xf]
        %v3211 = vld [vmem:[#allocation4 + $0x4] sm:$0xf]
        %v3212 = vld [vmem:[#allocation4 + $0x8] sm:$0xf]
        %v3213 = vld [vmem:[#allocation4 + $0xc] sm:$0xf]
        %v3214 = vld [vmem:[#allocation4 + $0x10] sm:$0xf]
        %v3215 = vld [vmem:[#allocation4 + $0x14] sm:$0xf]
        %v3216 = vld [vmem:[#allocation4 + $0x18] sm:$0xf]
        %v3217 = vld [vmem:[#allocation4 + $0x1c] sm:$0xf]
        %v3218 = vld [vmem:[#allocation4 + $0x20] sm:$0xf]
        %v3219 = vld [vmem:[#allocation4 + $0x24] sm:$0xf]
        %v3220 = vld [vmem:[#allocation4 + $0x28] sm:$0xf]
        %v3221 = vld [vmem:[#allocation4 + $0x2c] sm:$0xf]
        %v3222 = vld [vmem:[#allocation4 + $0x30] sm:$0xf]
        %v3223 = vld [vmem:[#allocation4 + $0x34] sm:$0xf]
        %v3224 = vld [vmem:[#allocation4 + $0x38] sm:$0xf]
        %v3225 = vld [vmem:[#allocation4 + $0x3c] sm:$0xf]
        %v3226 = vld [vmem:[#allocation4 + $0x40] sm:$0xf]
        %v3227 = vld [vmem:[#allocation4 + $0x44] sm:$0xf]
        %v3228 = vld [vmem:[#allocation4 + $0x48] sm:$0xf]
        %v3229 = vld [vmem:[#allocation4 + $0x4c] sm:$0xf]
        %v3230 = vld [vmem:[#allocation4 + $0x50] sm:$0xf]
        %v3231 = vld [vmem:[#allocation4 + $0x54] sm:$0xf]
        %v3232 = vld [vmem:[#allocation4 + $0x58] sm:$0xf]
        %v3233 = vld [vmem:[#allocation4 + $0x5c] sm:$0xf]
        %v3234 = vld [vmem:[#allocation4 + $0x60] sm:$0xf]
        %v3235 = vld [vmem:[#allocation4 + $0x64] sm:$0xf]
        %v3236 = vld [vmem:[#allocation4 + $0x68] sm:$0xf]
        %v3237 = vld [vmem:[#allocation4 + $0x6c] sm:$0xf]
        %v3238 = vld [vmem:[#allocation4 + $0x70] sm:$0xf]
        %v3239 = vld [vmem:[#allocation4 + $0x74] sm:$0xf]
        %v3240 = vld [vmem:[#allocation4 + $0x78] sm:$0xf]
        %v3241 = vld [vmem:[#allocation4 + $0x7c] sm:$0xf]
        %v3242 = vld [vmem:[#allocation4 + $0x80] sm:$0xf]
        %v3243 = vld [vmem:[#allocation4 + $0x84] sm:$0xf]
        %v3244 = vld [vmem:[#allocation4 + $0x88] sm:$0xf]
        %v3245 = vld [vmem:[#allocation4 + $0x8c] sm:$0xf]
        %v3246 = vld [vmem:[#allocation4 + $0x90] sm:$0xf]
        %v3247 = vld [vmem:[#allocation4 + $0x94] sm:$0xf]
        %v3248 = vld [vmem:[#allocation4 + $0x98] sm:$0xf]
        %v3249 = vld [vmem:[#allocation4 + $0x9c] sm:$0xf]
        %v3250 = vld [vmem:[#allocation4 + $0xa0] sm:$0xf]
        %v3251 = vld [vmem:[#allocation4 + $0xa4] sm:$0xf]
        %v3252 = vld [vmem:[#allocation4 + $0xa8] sm:$0xf]
        %v3253 = vld [vmem:[#allocation4 + $0xac] sm:$0xf]
        %v3254 = vld [vmem:[#allocation4 + $0xb0] sm:$0xf]
        %v3255 = vld [vmem:[#allocation4 + $0xb4] sm:$0xf]
        %v3256 = vld [vmem:[#allocation4 + $0xb8] sm:$0xf]
        %v3257 = vld [vmem:[#allocation4 + $0xbc] sm:$0xf]
        %v3258 = vld [vmem:[#allocation4 + $0xc0] sm:$0xf]
        %v3259 = vld [vmem:[#allocation4 + $0xc4] sm:$0xf]
        %v3260 = vld [vmem:[#allocation4 + $0xc8] sm:$0xf]
        %v3261 = vld [vmem:[#allocation4 + $0xcc] sm:$0xf]
        %v3262 = vld [vmem:[#allocation4 + $0xd0] sm:$0xf]
        %v3263 = vld [vmem:[#allocation4 + $0xd4] sm:$0xf]
        %v3264 = vld [vmem:[#allocation4 + $0xd8] sm:$0xf]
        %v3265 = vld [vmem:[#allocation4 + $0xdc] sm:$0xf]
        %v3266 = vld [vmem:[#allocation4 + $0xe0] sm:$0xf]
        %v3267 = vld [vmem:[#allocation4 + $0xe4] sm:$0xf]
        %v3268 = vld [vmem:[#allocation4 + $0xe8] sm:$0xf]
        %v3269 = vld [vmem:[#allocation4 + $0xec] sm:$0xf]
        %v3270 = vld [vmem:[#allocation4 + $0xf0] sm:$0xf]
        %v3271 = vld [vmem:[#allocation4 + $0xf4] sm:$0xf]
        %v3272 = vld [vmem:[#allocation4 + $0xf8] sm:$0xf]
        %v3273 = vld [vmem:[#allocation4 + $0xfc] sm:$0xf]
        %v3274 = vperm.slane %v3203, 0
        %v3339 = vunpack.c.l.b16 %v3210
        %v3340 = vunpack.c.l.b16 %v3211
        %v3341 = vunpack.c.l.b16 %v3212
        %v3342 = vunpack.c.l.b16 %v3213
        %v3343 = vunpack.c.l.b16 %v3214
        %v3344 = vunpack.c.l.b16 %v3215
        %v3345 = vunpack.c.l.b16 %v3216
        %v3346 = vunpack.c.l.b16 %v3217
        %v3347 = vunpack.c.l.b16 %v3218
        %v3348 = vunpack.c.l.b16 %v3219
        %v3349 = vunpack.c.l.b16 %v3220
        %v3350 = vunpack.c.l.b16 %v3221
        %v3351 = vunpack.c.l.b16 %v3222
        %v3352 = vunpack.c.l.b16 %v3223
        %v3353 = vunpack.c.l.b16 %v3224
        %v3354 = vunpack.c.l.b16 %v3225
        %v3355 = vunpack.c.l.b16 %v3226
        %v3356 = vunpack.c.l.b16 %v3227
        %v3357 = vunpack.c.l.b16 %v3228
        %v3358 = vunpack.c.l.b16 %v3229
        %v3359 = vunpack.c.l.b16 %v3230
        %v3360 = vunpack.c.l.b16 %v3231
        %v3361 = vunpack.c.l.b16 %v3232
        %v3362 = vunpack.c.l.b16 %v3233
        %v3363 = vunpack.c.l.b16 %v3234
        %v3364 = vunpack.c.l.b16 %v3235
        %v3365 = vunpack.c.l.b16 %v3236
        %v3366 = vunpack.c.l.b16 %v3237
        %v3367 = vunpack.c.l.b16 %v3238
        %v3368 = vunpack.c.l.b16 %v3239
        %v3369 = vunpack.c.l.b16 %v3240
        %v3370 = vunpack.c.l.b16 %v3241
        %v3371 = vunpack.c.l.b16 %v3242
        %v3372 = vunpack.c.l.b16 %v3243
        %v3373 = vunpack.c.l.b16 %v3244
        %v3374 = vunpack.c.l.b16 %v3245
        %v3375 = vunpack.c.l.b16 %v3246
        %v3376 = vunpack.c.l.b16 %v3247
        %v3377 = vunpack.c.l.b16 %v3248
        %v3378 = vunpack.c.l.b16 %v3249
        %v3379 = vunpack.c.l.b16 %v3250
        %v3380 = vunpack.c.l.b16 %v3251
        %v3381 = vunpack.c.l.b16 %v3252
        %v3382 = vunpack.c.l.b16 %v3253
        %v3383 = vunpack.c.l.b16 %v3254
        %v3384 = vunpack.c.l.b16 %v3255
        %v3385 = vunpack.c.l.b16 %v3256
        %v3386 = vunpack.c.l.b16 %v3257
        %v3387 = vunpack.c.l.b16 %v3258
        %v3388 = vunpack.c.l.b16 %v3259
        %v3389 = vunpack.c.l.b16 %v3260
        %v3390 = vunpack.c.l.b16 %v3261
        %v3391 = vunpack.c.l.b16 %v3262
        %v3392 = vunpack.c.l.b16 %v3263
        %v3393 = vunpack.c.l.b16 %v3264
        %v3394 = vunpack.c.l.b16 %v3265
        %v3395 = vunpack.c.l.b16 %v3266
        %v3396 = vunpack.c.l.b16 %v3267
        %v3397 = vunpack.c.l.b16 %v3268
        %v3398 = vunpack.c.l.b16 %v3269
        %v3399 = vunpack.c.l.b16 %v3270
        %v3400 = vunpack.c.l.b16 %v3271
        %v3401 = vunpack.c.l.b16 %v3272
        %v3402 = vunpack.c.l.b16 %v3273
        %v3403 = vpack.c.b16 %v3340, %v3339
        %v3404 = vpack.c.b16 %v3342, %v3341
        %v3405 = vpack.c.b16 %v3344, %v3343
        %v3406 = vpack.c.b16 %v3346, %v3345
        %v3407 = vpack.c.b16 %v3348, %v3347
        %v3408 = vpack.c.b16 %v3350, %v3349
        %v3409 = vpack.c.b16 %v3352, %v3351
        %v3410 = vpack.c.b16 %v3354, %v3353
        %v3411 = vpack.c.b16 %v3356, %v3355
        %v3412 = vpack.c.b16 %v3358, %v3357
        %v3413 = vpack.c.b16 %v3360, %v3359
        %v3414 = vpack.c.b16 %v3362, %v3361
        %v3415 = vpack.c.b16 %v3364, %v3363
        %v3416 = vpack.c.b16 %v3366, %v3365
        %v3417 = vpack.c.b16 %v3368, %v3367
        %v3418 = vpack.c.b16 %v3370, %v3369
        %v3419 = vpack.c.b16 %v3372, %v3371
        %v3420 = vpack.c.b16 %v3374, %v3373
        %v3421 = vpack.c.b16 %v3376, %v3375
        %v3422 = vpack.c.b16 %v3378, %v3377
        %v3423 = vpack.c.b16 %v3380, %v3379
        %v3424 = vpack.c.b16 %v3382, %v3381
        %v3425 = vpack.c.b16 %v3384, %v3383
        %v3426 = vpack.c.b16 %v3386, %v3385
        %v3427 = vpack.c.b16 %v3388, %v3387
        %v3428 = vpack.c.b16 %v3390, %v3389
        %v3429 = vpack.c.b16 %v3392, %v3391
        %v3430 = vpack.c.b16 %v3394, %v3393
        %v3431 = vpack.c.b16 %v3396, %v3395
        %v3432 = vpack.c.b16 %v3398, %v3397
        %v3433 = vpack.c.b16 %v3400, %v3399
        %v3434 = vpack.c.b16 %v3402, %v3401
        %3467 = vmatpush.bf16.msra.mxu0 %v3410
        %3468 = vmatpush.bf16.msra.mxu0 %v3409
        %3469 = vmatpush.bf16.msra.mxu0 %v3408
        %3470 = vmatpush.bf16.msra.mxu0 %v3407
        %3471 = vmatpush.bf16.msra.mxu0 %v3406
        %3472 = vmatpush.bf16.msra.mxu0 %v3405
        %3473 = vmatpush.bf16.msra.mxu0 %v3404
        %3474 = vmatpush.bf16.msra.mxu0 %v3403
        %3475 = vmatmul.bf16.gmra.mxu0 %v3206
        %v3476 = vpop.f32.mrf.mxu0
        %v3477 = vadd.f32 %v3274, %v3476
        %v3478 = vpop.f32.mrf.mxu0
        %v3479 = vadd.f32 %v3274, %v3478
        %3480 = vdwg.mxu0
        %3481 = vmatpush.bf16.msra.mxu0 %v3418
        %3482 = vmatpush.bf16.msra.mxu0 %v3417
        %3483 = vmatpush.bf16.msra.mxu0 %v3416
        %3484 = vmatpush.bf16.msra.mxu0 %v3415
        %3485 = vmatpush.bf16.msra.mxu0 %v3414
        %3486 = vmatpush.bf16.msra.mxu0 %v3413
        %3487 = vmatpush.bf16.msra.mxu0 %v3412
        %3488 = vmatpush.bf16.msra.mxu0 %v3411
        %3489 = vmatmul.bf16.gmra.mxu0 %v3207
        %v3490 = vpop.f32.mrf.mxu0
        %v3491 = vadd.f32 %v3477, %v3490
        %v3492 = vpop.f32.mrf.mxu0
        %v3493 = vadd.f32 %v3479, %v3492
        %3494 = vdwg.mxu0
        %3495 = vmatpush.bf16.msra.mxu0 %v3426
        %3496 = vmatpush.bf16.msra.mxu0 %v3425
        %3497 = vmatpush.bf16.msra.mxu0 %v3424
        %3498 = vmatpush.bf16.msra.mxu0 %v3423
        %3499 = vmatpush.bf16.msra.mxu0 %v3422
        %3500 = vmatpush.bf16.msra.mxu0 %v3421
        %3501 = vmatpush.bf16.msra.mxu0 %v3420
        %3502 = vmatpush.bf16.msra.mxu0 %v3419
        %3503 = vmatmul.bf16.gmra.mxu0 %v3208
        %v3504 = vpop.f32.mrf.mxu0
        %v3505 = vadd.f32 %v3491, %v3504
        %v3506 = vpop.f32.mrf.mxu0
        %v3507 = vadd.f32 %v3493, %v3506
        %3508 = vdwg.mxu0
        %3509 = vmatpush.bf16.msra.mxu0 %v3434
        %3510 = vmatpush.bf16.msra.mxu0 %v3433
        %3511 = vmatpush.bf16.msra.mxu0 %v3432
        %3512 = vmatpush.bf16.msra.mxu0 %v3431
        %3513 = vmatpush.bf16.msra.mxu0 %v3430
        %3514 = vmatpush.bf16.msra.mxu0 %v3429
        %3515 = vmatpush.bf16.msra.mxu0 %v3428
        %3516 = vmatpush.bf16.msra.mxu0 %v3427
        %3517 = vmatmul.bf16.gmra.mxu0 %v3209
        %v3518 = vpop.f32.mrf.mxu0
        %v3519 = vadd.f32 %v3505, %v3518
        %v3520 = vpop.f32.mrf.mxu0
        %v3521 = vadd.f32 %v3507, %v3520
        %3522 = vdwg.mxu0
        %v3523 = vld [vmem:[#allocation10] sm:$0x1]
        %v3525 = vperm.slane %v3523, 0
        %v3527 = vadd.f32 %v3519, %v3525
        %v3528 = vadd.f32 %v3521, %v3525
        %v3529 = vmax.f32 %v3527, 0.0
        %v3530 = vmax.f32 %v3528, 0.0
        %3531 = vst [vmem:[%s397] sm:$0xff] %v3529
        %3532 = vst [vmem:[%s397 + $0x8] sm:$0xff] %v3530
        %p3533 = scmp.lt.s32.totalorder %s23, 1
        %s3534 = scalar_select %p3533, %s23, 1
        %s3535 = smul.addr %s3534, 2
        %s3536 = smul.addr %s3535, 8
        %s3537 = scalar_lea.vmem %s8, %s3536
        // Predicated region
        $region77: #{fn.1} parent=51 // pred_check
          %p3538 = pneg %p214
        $region78: #{fn.1} parent=51 // pred_check_branch
          %3540 = sbr.rel (%p3538) target = $region80
        $region79: #{fn.1} parent=51 // pred_region
          _
        $region80: #{fn.1} parent=51 // pred_fallthru
          _
      $region52: #{fn.1} parent=5 // pred_fallthru
        _
      %p3541 = scmp.le.s32.totalorder 2, %s18
      // Predicated region
      $region81: #{fn.1} parent=5 // pred_check
        %p3542 = pneg %p3541
      $region82: #{fn.1} parent=5 // pred_check_branch
        %3544 = sbr.rel (%p3542) target = $region84
      $region83: #{fn.1} parent=5 // pred_region
        %s3545 = ssub.s32 %s18, 2
        // Predicated region
        $region85: #{fn.1} parent=83 // pred_check
          %p3546 = pneg %p220
        $region86: #{fn.1} parent=83 // pred_check_branch
          %3548 = sbr.rel (%p3546) target = $region88
        $region87: #{fn.1} parent=83 // pred_region
          %p3549 = scmp.lt.s32.totalorder %s24, 1
          %s3550 = scalar_select %p3549, %s24, 1
          %s3551 = smul.addr %s3550, 2
          %s3552 = smul.addr %s3551, 8
          %s3553 = scalar_lea.vmem %s8, %s3552
        $region88: #{fn.1} parent=83 // pred_fallthru
          _
      $region84: #{fn.1} parent=5 // pred_fallthru
        _
    $region6: #{fn.1} parent=1 // loop_footer
      %s22 = sadd.s32 1, %s18
    $region7: #{fn.1} parent=1 // loop_footer_branch
      %17 = sbr.rel target = $region3
    $region8: #{fn.1} parent=1 // loop_exit
      _
    %3554 = vsyncpa [#allocation3], 1
    %s3555 = scalar_lea.sflag [#allocation3], 1
    %3556 = vsyncpa %s3555, 1
    %3557 = vsyncpa [#allocation5], 1
    %3558 = vsyncpa [#allocation8], 1
    %3559 = vsyncpa [#allocation11], 1

</llo_original>
